<compile_context>
chip_gen: v7x
topology: tpu7x:2x2x1
jax: 0.10.0
libtpu: 0.0.40
codegen_flags: <defaults>
</compile_context>

<pallas_src>
import functools

import jax
import jax.numpy as jnp
from jax.experimental import pallas as pl
from jax.experimental.pallas import tpu as pltpu


# ----------------------------------------------------------------------------
# In-kernel helpers
# ----------------------------------------------------------------------------
def _mm(a, b):
    """2-D matmul: bf16 operands on the MXU, f32 accumulation."""
    return jnp.dot(a.astype(jnp.bfloat16), b.astype(jnp.bfloat16),
                   preferred_element_type=jnp.float32)


def _bmm(spec, a, b):
    """Batched matmul (single leading batch dim), bf16 operands / f32 accum."""
    return jnp.einsum(spec, a.astype(jnp.bfloat16), b.astype(jnp.bfloat16),
                      preferred_element_type=jnp.float32)


def _layernorm(x, w, b, eps=1e-5):
    mu = jnp.mean(x, axis=-1, keepdims=True)
    var = jnp.mean((x - mu) ** 2, axis=-1, keepdims=True)
    return (x - mu) * jax.lax.rsqrt(var + eps) * w + b


# ----------------------------------------------------------------------------
# Pallas kernel: one batch tile (B_TILE sequences) per grid step
# ----------------------------------------------------------------------------
def encoder_kernel(src_ref, r_ref, mask_ref,
                   wq_ref, wk_ref, wv_ref, wo_ref,
                   rwb_ref, rrb_ref,
                   l1w_ref, l1b_ref, l2w_ref, l2b_ref,
                   n1w_ref, n1b_ref, n2w_ref, n2b_ref,
                   enw_ref, enb_ref,
                   out_ref,
                   *, n_layers, n_head, d_head, qlen, b_tile):
    B, q, H, dh = b_tile, qlen, n_head, d_head
    e = H * dh
    scale = 1.0 / (dh ** 0.5)

    x = src_ref[...]                 # (B*q, d_model)          f32
    r_head = r_ref[...]              # (B, klen+qlen, H*dh)    precomputed pos proj
    mask_add = mask_ref[...]         # (q, q) additive causal mask (-1e30 / 0)
    rwb = rwb_ref[...]               # (1, H*dh)
    rrb = rrb_ref[...]               # (1, H*dh)

    # tr_weight_share=True -> identical weights per layer.  (For deep stacks
    # this Python loop would become a lax.fori_loop carrying x.)
    for _ in range(n_layers):
        # ---- QKV projections for every head & sequence in one 2-D matmul ----
        q_head = _mm(x, wq_ref[...])             # (B*q, H*dh)
        k_head = _mm(x, wk_ref[...])
        v_head = _mm(x, wv_ref[...])

        # Relative-position biases hoisted out of the head loop.
        q_rw = (q_head + rwb).reshape(B, q, e)
        q_rr = (q_head + rrb).reshape(B, q, e)
        k_h = k_head.reshape(B, q, e)
        v_h = v_head.reshape(B, q, e)

        # ---- attention scores: batched over batch, heads stacked onto the
        #      leading (batch) axis of the 3-D einsum ----
        acs, bds, vs = [], [], []
        for h in range(H):
            sl = slice(h * dh, (h + 1) * dh)
            acs.append(_bmm('bid,bjd->bij', q_rw[:, :, sl], k_h[:, :, sl]))
            bds.append(_bmm('bid,bjd->bij', q_rr[:, :, sl], r_head[:, :, sl]))
            vs.append(v_h[:, :, sl])
        ac = jnp.concatenate(acs, axis=0)        # (H*B, q, q)
        bd_full = jnp.concatenate(bds, axis=0)   # (H*B, q, klen+qlen)
        v_g = jnp.concatenate(vs, axis=0)        # (H*B, q, dh)

        # ---- relative shift: bd[g, i, j] = bd_full[g, i, qlen - i + j] ----
        # Applied once per layer, vectorized over all heads and batch elements.
        # (A fully O(1) shift would need pltpu.roll-with-stride or a tiled-dim
        #  reshape; the windowed-slice form is kept for robust lowering.)
        bd = jnp.concatenate(
            [bd_full[:, i:i + 1, q - i:2 * q - i] for i in range(q)], axis=1)

        # ---- masked softmax over keys (f32) ----
        score = (ac + bd) * scale + mask_add     # mask broadcasts over (H*B)
        m = jnp.max(score, axis=-1, keepdims=True)
        ex = jnp.exp(score - m)
        probs = ex * pl.reciprocal(jnp.sum(ex, axis=-1, keepdims=True),
                                   approx=True)

        # ---- attention output + projection ----
        attn = _bmm('bij,bjd->bid', probs, v_g)  # (H*B, q, dh)
        attn_vec = jnp.concatenate(
            [attn[h * B:(h + 1) * B] for h in range(H)], axis=-1)  # (B, q, H*dh)
        attn_out = _mm(attn_vec.reshape(B * q, e), wo_ref[...])    # (B*q, d)

        x = _layernorm(x + attn_out, n1w_ref[...], n1b_ref[...])

        # ---- feed-forward ----
        # TODO(synk): PyTorch F.gelu default is exact (erf-based); tanh
        #             approximation is used here for robust TPU lowering.
        h1 = jax.nn.gelu(_mm(x, l1w_ref[...]) + l1b_ref[...], approximate=True)
        ff = _mm(h1, l2w_ref[...]) + l2b_ref[...]
        x = _layernorm(x + ff, n2w_ref[...], n2b_ref[...])

    out_ref[...] = _layernorm(x, enw_ref[...], enb_ref[...])   # encoder norm


# ----------------------------------------------------------------------------
# Wrapper (glue)
# ----------------------------------------------------------------------------
def run_encoder(src_bsd, r_all, mask_add, params, *, n_layers, n_head,
                b_tile=None):
    bsz, qlen, d = src_bsd.shape
    plen = r_all.shape[1]
    d_head = d // n_head
    e = n_head * d_head
    dim_ff = params["l1w"].shape[1]

    if b_tile is None:
        b_tile = min(bsz, 16)
    assert bsz % b_tile == 0, "batch must be divisible by the batch tile"
    assert qlen % 8 == 0, "qlen must be a multiple of 8 (sublane tile)"

    src_2d = src_bsd.reshape(bsz * qlen, d)
    rwb_flat = params["rwb"].reshape(1, e)
    rrb_flat = params["rrb"].reshape(1, e)

    kernel = functools.partial(encoder_kernel, n_layers=n_layers,
                               n_head=n_head, d_head=d_head, qlen=qlen,
                               b_tile=b_tile)

    def rep(shape):   # broadcast: same block for every grid step
        return pl.BlockSpec(shape, lambda i: (0,) * len(shape))

    in_specs = [
        pl.BlockSpec((b_tile * qlen, d), lambda i: (i, 0)),    # src (flattened)
        pl.BlockSpec((b_tile, plen, e), lambda i: (i, 0, 0)),  # pos projection
        rep((qlen, qlen)),                                     # additive mask
        rep((d, e)), rep((d, e)), rep((d, e)),                 # wq wk wv
        rep((e, d)),                                           # wo
        rep((1, e)), rep((1, e)),                              # r_w_bias, r_r_bias
        rep((d, dim_ff)), rep((1, dim_ff)),                    # linear1
        rep((dim_ff, d)), rep((1, d)),                         # linear2
        rep((1, d)), rep((1, d)),                              # norm1
        rep((1, d)), rep((1, d)),                              # norm2
        rep((1, d)), rep((1, d)),                              # encoder norm
    ]
    out_spec = pl.BlockSpec((b_tile * qlen, d), lambda i: (i, 0))

    out_2d = pl.pallas_call(
        kernel,
        out_shape=jax.ShapeDtypeStruct((bsz * qlen, d), jnp.float32),
        grid=(bsz // b_tile,),
        in_specs=in_specs,
        out_specs=out_spec,
        compiler_params=pltpu.CompilerParams(
            dimension_semantics=("parallel",),
            vmem_limit_bytes=64 * 1024 * 1024),
    )(src_2d, r_all, mask_add,
      params["wq"], params["wk"], params["wv"], params["wo"],
      rwb_flat, rrb_flat,
      params["l1w"], params["l1b"], params["l2w"], params["l2b"],
      params["n1w"], params["n1b"], params["n2w"], params["n2b"],
      params["enw"], params["enb"])
    return out_2d.reshape(bsz, qlen, d)


def relative_positional_encoding(qlen, klen, d_model, bsz):
    """Mirrors _relative_positional_encoding ('bi', even bsz)."""
    assert bsz % 2 == 0
    freq_seq = jnp.arange(0, d_model, 2.0, dtype=jnp.float32)
    inv_freq = 1.0 / (10000.0 ** (freq_seq / d_model))
    fwd_pos_seq = jnp.arange(klen, -qlen, -1.0, dtype=jnp.float32)
    bwd_pos_seq = jnp.arange(-klen, qlen, 1.0, dtype=jnp.float32)

    def pe(pos_seq):
        sinusoid = pos_seq[:, None] * inv_freq[None, :]
        return jnp.concatenate([jnp.sin(sinusoid), jnp.cos(sinusoid)], axis=-1)

    fwd = pe(fwd_pos_seq)                       # (q+k, d)
    bwd = pe(bwd_pos_seq)                       # (q+k, d)
    pos_emb = jnp.concatenate(
        [jnp.tile(fwd[:, None, :], (1, bsz // 2, 1)),
         jnp.tile(bwd[:, None, :], (1, bsz // 2, 1))], axis=1)   # [q+k, bsz, d]
    return pos_emb, fwd, bwd


def square_subsequent_mask(sz):
    """Mirrors _generate_square_subsequent_mask: 1.0 on strict upper triangle."""
    i = jnp.arange(sz)[:, None]
    j = jnp.arange(sz)[None, :]
    return (j > i).astype(jnp.float32)


def transformer_aggregator_forward(src, params, *, n_layers, n_head,
                                   b_tile=None):
    """src: [qlen, bsz, d_model] (PyTorch layout). Returns (encoding, new_mems, ...)."""
    qlen, bsz, d = src.shape
    pos_emb, fwd_pe, bwd_pe = relative_positional_encoding(qlen, qlen, d, bsz)
    mask = square_subsequent_mask(qlen)
    mask_add = (-1e30) * mask                        # additive mask kept in f32

    # Positional projection precomputed in XLA: only two distinct pos streams
    # (fwd / bwd batch halves) -> project each once and broadcast to the batch.
    half = bsz // 2
    wr_bf = params["wr"].astype(jnp.bfloat16)
    r_fwd = jnp.dot(fwd_pe.astype(jnp.bfloat16), wr_bf,
                    preferred_element_type=jnp.float32)
    r_bwd = jnp.dot(bwd_pe.astype(jnp.bfloat16), wr_bf,
                    preferred_element_type=jnp.float32)
    r_all = jnp.concatenate(
        [jnp.broadcast_to(r_fwd[None], (half,) + r_fwd.shape),
         jnp.broadcast_to(r_bwd[None], (half,) + r_bwd.shape)], axis=0)

    src_bsd = jnp.transpose(src, (1, 0, 2))          # [bsz, qlen, d]
    out_bsd = run_encoder(src_bsd, r_all, mask_add, params,
                          n_layers=n_layers, n_head=n_head, b_tile=b_tile)
    new_mems = [None] * n_layers      # mems=None -> _cache_mem returns None
    return jnp.transpose(out_bsd, (1, 0, 2)), new_mems, pos_emb, mask


# ----------------------------------------------------------------------------
# Deterministic parameter init (shapes from the module's __init__)
# ----------------------------------------------------------------------------
def init_params(key, d_model, n_head, d_head, dim_ff):
    ks = jax.random.split(key, 16)
    nh_dh = n_head * d_head

    def xavier(k, fan_in, fan_out, shape):
        lim = (6.0 / (fan_in + fan_out)) ** 0.5
        return jax.random.uniform(k, shape, jnp.float32, -lim, lim)

    return dict(
        wq=xavier(ks[0], d_model, nh_dh, (d_model, nh_dh)),
        wk=xavier(ks[1], d_model, nh_dh, (d_model, nh_dh)),
        wv=xavier(ks[2], d_model, nh_dh, (d_model, nh_dh)),
        wr=xavier(ks[3], d_model, nh_dh, (d_model, nh_dh)),
        wo=xavier(ks[4], d_model, nh_dh, (d_model, nh_dh)).T,   # (n*dh, d)
        rwb=xavier(ks[5], n_head, d_head, (n_head, d_head)),
        rrb=xavier(ks[6], n_head, d_head, (n_head, d_head)),
        l1w=xavier(ks[7], d_model, dim_ff, (d_model, dim_ff)),
        l1b=0.01 * jax.random.normal(ks[8], (1, dim_ff), jnp.float32),
        l2w=xavier(ks[9], dim_ff, d_model, (dim_ff, d_model)),
        l2b=0.01 * jax.random.normal(ks[10], (1, d_model), jnp.float32),
        n1w=1.0 + 0.05 * jax.random.normal(ks[11], (1, d_model), jnp.float32),
        n1b=0.05 * jax.random.normal(ks[12], (1, d_model), jnp.float32),
        n2w=1.0 + 0.05 * jax.random.normal(ks[13], (1, d_model), jnp.float32),
        n2b=0.05 * jax.random.normal(ks[14], (1, d_model), jnp.float32),
        enw=1.0 + 0.05 * jax.random.normal(ks[15], (1, d_model), jnp.float32),
        enb=jnp.zeros((1, d_model), jnp.float32),
    )


# ----------------------------------------------------------------------------
# Pure-JAX reference (mirrors the PyTorch code path, [seq, batch, d] layout).
# Matmul operands are cast to bf16 with f32 accumulation so the reference uses
# the same MXU numerics as the kernel; softmax/LayerNorm stay in f32.
# ----------------------------------------------------------------------------
def reference_forward(src, pos_emb, mask, params, *, n_layers, n_head):
    qlen, bsz, d = src.shape
    d_head = d // n_head
    scale = 1.0 / d_head ** 0.5
    wq = params['wq'].reshape(d, n_head, d_head)
    wk = params['wk'].reshape(d, n_head, d_head)
    wv = params['wv'].reshape(d, n_head, d_head)
    wr = params['wr'].reshape(d, n_head, d_head)
    wo = params['wo'].T.reshape(d, n_head, d_head)

    def mm(spec, a, b):
        return jnp.einsum(spec, a.astype(jnp.bfloat16), b.astype(jnp.bfloat16),
                          preferred_element_type=jnp.float32)

    def rel_shift(x, klen):
        q, p, b, n = x.shape
        x = x.reshape(p, q, b, n)[1:]
        x = x.reshape(q, p - 1, b, n)[:, :klen]
        return x

    def ln(x, w, b):
        mu = x.mean(-1, keepdims=True)
        var = ((x - mu) ** 2).mean(-1, keepdims=True)
        return (x - mu) / jnp.sqrt(var + 1e-5) * w[0] + b[0]

    out = src
    for _ in range(n_layers):
        q_h = mm('ibh,hnd->ibnd', out, wq)
        k_h = mm('ibh,hnd->ibnd', out, wk)
        v_h = mm('ibh,hnd->ibnd', out, wv)
        r_h = mm('ibh,hnd->ibnd', pos_emb, wr)
        ac = mm('ibnd,jbnd->ijbn', q_h + params['rwb'], k_h)
        bd = mm('ibnd,jbnd->ijbn', q_h + params['rrb'], r_h)
        bd = rel_shift(bd, ac.shape[1])
        score = (ac + bd) * scale - 1e30 * mask[:, :, None, None]
        prob = jax.nn.softmax(score, axis=1)
        attn_vec = mm('ijbn,jbnd->ibnd', prob, v_h)
        attn_out = mm('ibnd,hnd->ibh', attn_vec, wo)
        out = ln(out + attn_out, params['n1w'], params['n1b'])
        h1 = jax.nn.gelu(mm('ibh,hf->ibf', out, params['l1w']) + params['l1b'][0],
                         approximate=True)
        ff = mm('ibf,fh->ibh', h1, params['l2w']) + params['l2b'][0]
        out = ln(out + ff, params['n2w'], params['n2b'])
    return ln(out, params['enw'], params['enb'])


# ----------------------------------------------------------------------------
if __name__ == "__main__":
    qlen, bsz, d_model, n_head, dim_ff, n_layers = 8, 2, 32, 4, 64, 1
    d_head = d_model // n_head

    key = jax.random.PRNGKey(0)
    k_src, k_par = jax.random.split(key)
    src = jax.random.normal(k_src, (qlen, bsz, d_model), jnp.float32)
    params = init_params(k_par, d_model, n_head, d_head, dim_ff)

    out, new_mems, pos_emb, mask = transformer_aggregator_forward(
        src, params, n_layers=n_layers, n_head=n_head)
    out = jax.block_until_ready(out)

    ref = reference_forward(src, pos_emb, mask, params,
                            n_layers=n_layers, n_head=n_head)
    assert out.shape == (qlen, bsz, d_model)
    err = float(jnp.max(jnp.abs(out - ref)))
    assert jnp.allclose(out, ref, atol=2e-2, rtol=2e-2), err
    print("KERNEL_OK")
</pallas_src>

<mosaic_0001>
module attributes {stable_mosaic.version = 11 : i64} {
  func.func @encoder_kernel(%arg0: i32, %arg1: memref<16x32xf32, #tpu.memory_space<vmem>>, %arg2: memref<2x16x32xf32, #tpu.memory_space<vmem>>, %arg3: memref<8x8xf32, #tpu.memory_space<vmem>>, %arg4: memref<32x32xf32, #tpu.memory_space<vmem>>, %arg5: memref<32x32xf32, #tpu.memory_space<vmem>>, %arg6: memref<32x32xf32, #tpu.memory_space<vmem>>, %arg7: memref<32x32xf32, #tpu.memory_space<vmem>>, %arg8: memref<1x32xf32, #tpu.memory_space<vmem>>, %arg9: memref<1x32xf32, #tpu.memory_space<vmem>>, %arg10: memref<32x64xf32, #tpu.memory_space<vmem>>, %arg11: memref<1x64xf32, #tpu.memory_space<vmem>>, %arg12: memref<64x32xf32, #tpu.memory_space<vmem>>, %arg13: memref<1x32xf32, #tpu.memory_space<vmem>>, %arg14: memref<1x32xf32, #tpu.memory_space<vmem>>, %arg15: memref<1x32xf32, #tpu.memory_space<vmem>>, %arg16: memref<1x32xf32, #tpu.memory_space<vmem>>, %arg17: memref<1x32xf32, #tpu.memory_space<vmem>>, %arg18: memref<1x32xf32, #tpu.memory_space<vmem>>, %arg19: memref<1x32xf32, #tpu.memory_space<vmem>>, %arg20: memref<16x32xf32, #tpu.memory_space<vmem>>) attributes {dimension_semantics = [#tpu.dimension_semantics<parallel>], iteration_bounds = array<i64: 1>, scalar_prefetch = 0 : i64, scratch_operands = 0 : i64, tpu.core_type = #tpu.core_type<tc>, window_params = [{transform_indices = @transform_0, window_bounds = array<i64: 16, 32>}, {transform_indices = @transform_1, window_bounds = array<i64: 2, 16, 32>}, {pipeline_mode = #tpu.pipeline_mode<synchronous>, transform_indices = @transform_2, window_bounds = array<i64: 8, 8>}, {pipeline_mode = #tpu.pipeline_mode<synchronous>, transform_indices = @transform_3, window_bounds = array<i64: 32, 32>}, {pipeline_mode = #tpu.pipeline_mode<synchronous>, transform_indices = @transform_4, window_bounds = array<i64: 32, 32>}, {pipeline_mode = #tpu.pipeline_mode<synchronous>, transform_indices = @transform_5, window_bounds = array<i64: 32, 32>}, {pipeline_mode = #tpu.pipeline_mode<synchronous>, transform_indices = @transform_6, window_bounds = array<i64: 32, 32>}, {pipeline_mode = #tpu.pipeline_mode<synchronous>, transform_indices = @transform_7, window_bounds = array<i64: 1, 32>}, {pipeline_mode = #tpu.pipeline_mode<synchronous>, transform_indices = @transform_8, window_bounds = array<i64: 1, 32>}, {pipeline_mode = #tpu.pipeline_mode<synchronous>, transform_indices = @transform_9, window_bounds = array<i64: 32, 64>}, {pipeline_mode = #tpu.pipeline_mode<synchronous>, transform_indices = @transform_10, window_bounds = array<i64: 1, 64>}, {pipeline_mode = #tpu.pipeline_mode<synchronous>, transform_indices = @transform_11, window_bounds = array<i64: 64, 32>}, {pipeline_mode = #tpu.pipeline_mode<synchronous>, transform_indices = @transform_12, window_bounds = array<i64: 1, 32>}, {pipeline_mode = #tpu.pipeline_mode<synchronous>, transform_indices = @transform_13, window_bounds = array<i64: 1, 32>}, {pipeline_mode = #tpu.pipeline_mode<synchronous>, transform_indices = @transform_14, window_bounds = array<i64: 1, 32>}, {pipeline_mode = #tpu.pipeline_mode<synchronous>, transform_indices = @transform_15, window_bounds = array<i64: 1, 32>}, {pipeline_mode = #tpu.pipeline_mode<synchronous>, transform_indices = @transform_16, window_bounds = array<i64: 1, 32>}, {pipeline_mode = #tpu.pipeline_mode<synchronous>, transform_indices = @transform_17, window_bounds = array<i64: 1, 32>}, {pipeline_mode = #tpu.pipeline_mode<synchronous>, transform_indices = @transform_18, window_bounds = array<i64: 1, 32>}, {transform_indices = @transform_19, window_bounds = array<i64: 16, 32>}]} {
    %c0 = arith.constant 0 : index
    %c0_0 = arith.constant 0 : index
    %0 = vector.load %arg1[%c0, %c0_0] : memref<16x32xf32, #tpu.memory_space<vmem>>, vector<16x32xf32>
    %c0_1 = arith.constant 0 : index
    %c0_2 = arith.constant 0 : index
    %c0_3 = arith.constant 0 : index
    %1 = vector.load %arg2[%c0_1, %c0_2, %c0_3] : memref<2x16x32xf32, #tpu.memory_space<vmem>>, vector<2x16x32xf32>
    %c0_4 = arith.constant 0 : index
    %c0_5 = arith.constant 0 : index
    %2 = vector.load %arg3[%c0_4, %c0_5] : memref<8x8xf32, #tpu.memory_space<vmem>>, vector<8x8xf32>
    %c0_6 = arith.constant 0 : index
    %c0_7 = arith.constant 0 : index
    %3 = vector.load %arg8[%c0_6, %c0_7] : memref<1x32xf32, #tpu.memory_space<vmem>>, vector<1x32xf32>
    %c0_8 = arith.constant 0 : index
    %c0_9 = arith.constant 0 : index
    %4 = vector.load %arg9[%c0_8, %c0_9] : memref<1x32xf32, #tpu.memory_space<vmem>>, vector<1x32xf32>
    %c0_10 = arith.constant 0 : index
    %c0_11 = arith.constant 0 : index
    %5 = vector.load %arg4[%c0_10, %c0_11] : memref<32x32xf32, #tpu.memory_space<vmem>>, vector<32x32xf32>
    %6 = arith.truncf %0 : vector<16x32xf32> to vector<16x32xbf16>
    %7 = arith.truncf %5 : vector<32x32xf32> to vector<32x32xbf16>
    %cst = arith.constant dense<0.000000e+00> : vector<16x32xf32>
    %8 = tpu.matmul %6, %7, %cst {dimension_numbers = #tpu.dot_dimension_numbers<[1], [0], [0], [1], [0, 0, 1, 1], [], []>} : vector<16x32xbf16>, vector<32x32xbf16>, vector<16x32xf32> -> vector<16x32xf32>
    %c0_12 = arith.constant 0 : index
    %c0_13 = arith.constant 0 : index
    %9 = vector.load %arg5[%c0_12, %c0_13] : memref<32x32xf32, #tpu.memory_space<vmem>>, vector<32x32xf32>
    %10 = arith.truncf %0 : vector<16x32xf32> to vector<16x32xbf16>
    %11 = arith.truncf %9 : vector<32x32xf32> to vector<32x32xbf16>
    %cst_14 = arith.constant dense<0.000000e+00> : vector<16x32xf32>
    %12 = tpu.matmul %10, %11, %cst_14 {dimension_numbers = #tpu.dot_dimension_numbers<[1], [0], [0], [1], [0, 0, 1, 1], [], []>} : vector<16x32xbf16>, vector<32x32xbf16>, vector<16x32xf32> -> vector<16x32xf32>
    %c0_15 = arith.constant 0 : index
    %c0_16 = arith.constant 0 : index
    %13 = vector.load %arg6[%c0_15, %c0_16] : memref<32x32xf32, #tpu.memory_space<vmem>>, vector<32x32xf32>
    %14 = arith.truncf %0 : vector<16x32xf32> to vector<16x32xbf16>
    %15 = arith.truncf %13 : vector<32x32xf32> to vector<32x32xbf16>
    %cst_17 = arith.constant dense<0.000000e+00> : vector<16x32xf32>
    %16 = tpu.matmul %14, %15, %cst_17 {dimension_numbers = #tpu.dot_dimension_numbers<[1], [0], [0], [1], [0, 0, 1, 1], [], []>} : vector<16x32xbf16>, vector<32x32xbf16>, vector<16x32xf32> -> vector<16x32xf32>
    %17 = vector.broadcast %3 : vector<1x32xf32> to vector<16x32xf32>
    %18 = arith.addf %8, %17 : vector<16x32xf32>
    %19 = vector.shape_cast %18 : vector<16x32xf32> to vector<2x8x32xf32>
    %20 = vector.broadcast %4 : vector<1x32xf32> to vector<16x32xf32>
    %21 = arith.addf %8, %20 : vector<16x32xf32>
    %22 = vector.shape_cast %21 : vector<16x32xf32> to vector<2x8x32xf32>
    %23 = vector.shape_cast %12 : vector<16x32xf32> to vector<2x8x32xf32>
    %24 = vector.shape_cast %16 : vector<16x32xf32> to vector<2x8x32xf32>
    %25 = vector.extract_strided_slice %19 {offsets = [0, 0, 0], sizes = [2, 8, 8], strides = [1, 1, 1]} : vector<2x8x32xf32> to vector<2x8x8xf32>
    %26 = vector.extract_strided_slice %23 {offsets = [0, 0, 0], sizes = [2, 8, 8], strides = [1, 1, 1]} : vector<2x8x32xf32> to vector<2x8x8xf32>
    %27 = arith.truncf %25 : vector<2x8x8xf32> to vector<2x8x8xbf16>
    %28 = arith.truncf %26 : vector<2x8x8xf32> to vector<2x8x8xbf16>
    "tpu.trace_start"() <{level = 10 : i32, message = "bid,bjd->bij"}> : () -> ()
    %cst_18 = arith.constant dense<0.000000e+00> : vector<2x8x8xf32>
    %29 = tpu.matmul %27, %28, %cst_18 {dimension_numbers = #tpu.dot_dimension_numbers<[2], [2], [1], [1], [0, 0, 0, 1, 1, 1], [0], [0]>} : vector<2x8x8xbf16>, vector<2x8x8xbf16>, vector<2x8x8xf32> -> vector<2x8x8xf32>
    "tpu.trace_stop"() : () -> ()
    %30 = vector.extract_strided_slice %22 {offsets = [0, 0, 0], sizes = [2, 8, 8], strides = [1, 1, 1]} : vector<2x8x32xf32> to vector<2x8x8xf32>
    %31 = vector.extract_strided_slice %1 {offsets = [0, 0, 0], sizes = [2, 16, 8], strides = [1, 1, 1]} : vector<2x16x32xf32> to vector<2x16x8xf32>
    %32 = arith.truncf %30 : vector<2x8x8xf32> to vector<2x8x8xbf16>
    %33 = arith.truncf %31 : vector<2x16x8xf32> to vector<2x16x8xbf16>
    "tpu.trace_start"() <{level = 10 : i32, message = "bid,bjd->bij"}> : () -> ()
    %cst_19 = arith.constant dense<0.000000e+00> : vector<2x8x16xf32>
    %34 = tpu.matmul %32, %33, %cst_19 {dimension_numbers = #tpu.dot_dimension_numbers<[2], [2], [1], [1], [0, 0, 0, 1, 1, 1], [0], [0]>} : vector<2x8x8xbf16>, vector<2x16x8xbf16>, vector<2x8x16xf32> -> vector<2x8x16xf32>
    "tpu.trace_stop"() : () -> ()
    %35 = vector.extract_strided_slice %24 {offsets = [0, 0, 0], sizes = [2, 8, 8], strides = [1, 1, 1]} : vector<2x8x32xf32> to vector<2x8x8xf32>
    %36 = vector.extract_strided_slice %19 {offsets = [0, 0, 8], sizes = [2, 8, 8], strides = [1, 1, 1]} : vector<2x8x32xf32> to vector<2x8x8xf32>
    %37 = vector.extract_strided_slice %23 {offsets = [0, 0, 8], sizes = [2, 8, 8], strides = [1, 1, 1]} : vector<2x8x32xf32> to vector<2x8x8xf32>
    %38 = arith.truncf %36 : vector<2x8x8xf32> to vector<2x8x8xbf16>
    %39 = arith.truncf %37 : vector<2x8x8xf32> to vector<2x8x8xbf16>
    "tpu.trace_start"() <{level = 10 : i32, message = "bid,bjd->bij"}> : () -> ()
    %cst_20 = arith.constant dense<0.000000e+00> : vector<2x8x8xf32>
    %40 = tpu.matmul %38, %39, %cst_20 {dimension_numbers = #tpu.dot_dimension_numbers<[2], [2], [1], [1], [0, 0, 0, 1, 1, 1], [0], [0]>} : vector<2x8x8xbf16>, vector<2x8x8xbf16>, vector<2x8x8xf32> -> vector<2x8x8xf32>
    "tpu.trace_stop"() : () -> ()
    %41 = vector.extract_strided_slice %22 {offsets = [0, 0, 8], sizes = [2, 8, 8], strides = [1, 1, 1]} : vector<2x8x32xf32> to vector<2x8x8xf32>
    %42 = vector.extract_strided_slice %1 {offsets = [0, 0, 8], sizes = [2, 16, 8], strides = [1, 1, 1]} : vector<2x16x32xf32> to vector<2x16x8xf32>
    %43 = arith.truncf %41 : vector<2x8x8xf32> to vector<2x8x8xbf16>
    %44 = arith.truncf %42 : vector<2x16x8xf32> to vector<2x16x8xbf16>
    "tpu.trace_start"() <{level = 10 : i32, message = "bid,bjd->bij"}> : () -> ()
    %cst_21 = arith.constant dense<0.000000e+00> : vector<2x8x16xf32>
    %45 = tpu.matmul %43, %44, %cst_21 {dimension_numbers = #tpu.dot_dimension_numbers<[2], [2], [1], [1], [0, 0, 0, 1, 1, 1], [0], [0]>} : vector<2x8x8xbf16>, vector<2x16x8xbf16>, vector<2x8x16xf32> -> vector<2x8x16xf32>
    "tpu.trace_stop"() : () -> ()
    %46 = vector.extract_strided_slice %24 {offsets = [0, 0, 8], sizes = [2, 8, 8], strides = [1, 1, 1]} : vector<2x8x32xf32> to vector<2x8x8xf32>
    %47 = vector.extract_strided_slice %19 {offsets = [0, 0, 16], sizes = [2, 8, 8], strides = [1, 1, 1]} : vector<2x8x32xf32> to vector<2x8x8xf32>
    %48 = vector.extract_strided_slice %23 {offsets = [0, 0, 16], sizes = [2, 8, 8], strides = [1, 1, 1]} : vector<2x8x32xf32> to vector<2x8x8xf32>
    %49 = arith.truncf %47 : vector<2x8x8xf32> to vector<2x8x8xbf16>
    %50 = arith.truncf %48 : vector<2x8x8xf32> to vector<2x8x8xbf16>
    "tpu.trace_start"() <{level = 10 : i32, message = "bid,bjd->bij"}> : () -> ()
    %cst_22 = arith.constant dense<0.000000e+00> : vector<2x8x8xf32>
    %51 = tpu.matmul %49, %50, %cst_22 {dimension_numbers = #tpu.dot_dimension_numbers<[2], [2], [1], [1], [0, 0, 0, 1, 1, 1], [0], [0]>} : vector<2x8x8xbf16>, vector<2x8x8xbf16>, vector<2x8x8xf32> -> vector<2x8x8xf32>
    "tpu.trace_stop"() : () -> ()
    %52 = vector.extract_strided_slice %22 {offsets = [0, 0, 16], sizes = [2, 8, 8], strides = [1, 1, 1]} : vector<2x8x32xf32> to vector<2x8x8xf32>
    %53 = vector.extract_strided_slice %1 {offsets = [0, 0, 16], sizes = [2, 16, 8], strides = [1, 1, 1]} : vector<2x16x32xf32> to vector<2x16x8xf32>
    %54 = arith.truncf %52 : vector<2x8x8xf32> to vector<2x8x8xbf16>
    %55 = arith.truncf %53 : vector<2x16x8xf32> to vector<2x16x8xbf16>
    "tpu.trace_start"() <{level = 10 : i32, message = "bid,bjd->bij"}> : () -> ()
    %cst_23 = arith.constant dense<0.000000e+00> : vector<2x8x16xf32>
    %56 = tpu.matmul %54, %55, %cst_23 {dimension_numbers = #tpu.dot_dimension_numbers<[2], [2], [1], [1], [0, 0, 0, 1, 1, 1], [0], [0]>} : vector<2x8x8xbf16>, vector<2x16x8xbf16>, vector<2x8x16xf32> -> vector<2x8x16xf32>
    "tpu.trace_stop"() : () -> ()
    %57 = vector.extract_strided_slice %24 {offsets = [0, 0, 16], sizes = [2, 8, 8], strides = [1, 1, 1]} : vector<2x8x32xf32> to vector<2x8x8xf32>
    %58 = vector.extract_strided_slice %19 {offsets = [0, 0, 24], sizes = [2, 8, 8], strides = [1, 1, 1]} : vector<2x8x32xf32> to vector<2x8x8xf32>
    %59 = vector.extract_strided_slice %23 {offsets = [0, 0, 24], sizes = [2, 8, 8], strides = [1, 1, 1]} : vector<2x8x32xf32> to vector<2x8x8xf32>
    %60 = arith.truncf %58 : vector<2x8x8xf32> to vector<2x8x8xbf16>
    %61 = arith.truncf %59 : vector<2x8x8xf32> to vector<2x8x8xbf16>
    "tpu.trace_start"() <{level = 10 : i32, message = "bid,bjd->bij"}> : () -> ()
    %cst_24 = arith.constant dense<0.000000e+00> : vector<2x8x8xf32>
    %62 = tpu.matmul %60, %61, %cst_24 {dimension_numbers = #tpu.dot_dimension_numbers<[2], [2], [1], [1], [0, 0, 0, 1, 1, 1], [0], [0]>} : vector<2x8x8xbf16>, vector<2x8x8xbf16>, vector<2x8x8xf32> -> vector<2x8x8xf32>
    "tpu.trace_stop"() : () -> ()
    %63 = vector.extract_strided_slice %22 {offsets = [0, 0, 24], sizes = [2, 8, 8], strides = [1, 1, 1]} : vector<2x8x32xf32> to vector<2x8x8xf32>
    %64 = vector.extract_strided_slice %1 {offsets = [0, 0, 24], sizes = [2, 16, 8], strides = [1, 1, 1]} : vector<2x16x32xf32> to vector<2x16x8xf32>
    %65 = arith.truncf %63 : vector<2x8x8xf32> to vector<2x8x8xbf16>
    %66 = arith.truncf %64 : vector<2x16x8xf32> to vector<2x16x8xbf16>
    "tpu.trace_start"() <{level = 10 : i32, message = "bid,bjd->bij"}> : () -> ()
    %cst_25 = arith.constant dense<0.000000e+00> : vector<2x8x16xf32>
    %67 = tpu.matmul %65, %66, %cst_25 {dimension_numbers = #tpu.dot_dimension_numbers<[2], [2], [1], [1], [0, 0, 0, 1, 1, 1], [0], [0]>} : vector<2x8x8xbf16>, vector<2x16x8xbf16>, vector<2x8x16xf32> -> vector<2x8x16xf32>
    "tpu.trace_stop"() : () -> ()
    %68 = vector.extract_strided_slice %24 {offsets = [0, 0, 24], sizes = [2, 8, 8], strides = [1, 1, 1]} : vector<2x8x32xf32> to vector<2x8x8xf32>
    %69 = tpu.concatenate %29, %40, %51, %62 in 0 : vector<2x8x8xf32>, vector<2x8x8xf32>, vector<2x8x8xf32>, vector<2x8x8xf32> -> vector<8x8x8xf32>
    %70 = tpu.concatenate %34, %45, %56, %67 in 0 : vector<2x8x16xf32>, vector<2x8x16xf32>, vector<2x8x16xf32>, vector<2x8x16xf32> -> vector<8x8x16xf32>
    %71 = tpu.concatenate %35, %46, %57, %68 in 0 : vector<2x8x8xf32>, vector<2x8x8xf32>, vector<2x8x8xf32>, vector<2x8x8xf32> -> vector<8x8x8xf32>
    %72 = vector.extract_strided_slice %70 {offsets = [0, 0, 8], sizes = [8, 1, 8], strides = [1, 1, 1]} : vector<8x8x16xf32> to vector<8x1x8xf32>
    %73 = vector.extract_strided_slice %70 {offsets = [0, 1, 7], sizes = [8, 1, 8], strides = [1, 1, 1]} : vector<8x8x16xf32> to vector<8x1x8xf32>
    %74 = vector.extract_strided_slice %70 {offsets = [0, 2, 6], sizes = [8, 1, 8], strides = [1, 1, 1]} : vector<8x8x16xf32> to vector<8x1x8xf32>
    %75 = vector.extract_strided_slice %70 {offsets = [0, 3, 5], sizes = [8, 1, 8], strides = [1, 1, 1]} : vector<8x8x16xf32> to vector<8x1x8xf32>
    %76 = vector.extract_strided_slice %70 {offsets = [0, 4, 4], sizes = [8, 1, 8], strides = [1, 1, 1]} : vector<8x8x16xf32> to vector<8x1x8xf32>
    %77 = vector.extract_strided_slice %70 {offsets = [0, 5, 3], sizes = [8, 1, 8], strides = [1, 1, 1]} : vector<8x8x16xf32> to vector<8x1x8xf32>
    %78 = vector.extract_strided_slice %70 {offsets = [0, 6, 2], sizes = [8, 1, 8], strides = [1, 1, 1]} : vector<8x8x16xf32> to vector<8x1x8xf32>
    %79 = vector.extract_strided_slice %70 {offsets = [0, 7, 1], sizes = [8, 1, 8], strides = [1, 1, 1]} : vector<8x8x16xf32> to vector<8x1x8xf32>
    %80 = tpu.concatenate %72, %73, %74, %75, %76, %77, %78, %79 in 1 : vector<8x1x8xf32>, vector<8x1x8xf32>, vector<8x1x8xf32>, vector<8x1x8xf32>, vector<8x1x8xf32>, vector<8x1x8xf32>, vector<8x1x8xf32>, vector<8x1x8xf32> -> vector<8x8x8xf32>
    %81 = arith.addf %69, %80 : vector<8x8x8xf32>
    %cst_26 = arith.constant 0.353553385 : f32
    %82 = vector.broadcast %cst_26 : f32 to vector<8x8x8xf32>
    %83 = arith.mulf %81, %82 : vector<8x8x8xf32>
    %84 = vector.shape_cast %2 : vector<8x8xf32> to vector<1x8x8xf32>
    %85 = vector.broadcast %84 : vector<1x8x8xf32> to vector<8x8x8xf32>
    %86 = arith.addf %83, %85 : vector<8x8x8xf32>
    %cst_27 = arith.constant dense<0xFF800000> : vector<8x8xf32>
    %87 = vector.multi_reduction <maximumf>, %86, %cst_27 [2] : vector<8x8x8xf32> to vector<8x8xf32>
    %88 = vector.shape_cast %87 : vector<8x8xf32> to vector<8x8x1xf32>
    %89 = vector.broadcast %88 : vector<8x8x1xf32> to vector<8x8x8xf32>
    %90 = arith.subf %86, %89 : vector<8x8x8xf32>
    %91 = math.exp %90 : vector<8x8x8xf32>
    %cst_28 = arith.constant dense<0.000000e+00> : vector<8x8xf32>
    %92 = vector.multi_reduction <add>, %91, %cst_28 [2] : vector<8x8x8xf32> to vector<8x8xf32>
    %93 = vector.shape_cast %92 : vector<8x8xf32> to vector<8x8x1xf32>
    %94 = tpu.reciprocal %93 {approx = true} : vector<8x8x1xf32> -> vector<8x8x1xf32>
    %95 = vector.broadcast %94 : vector<8x8x1xf32> to vector<8x8x8xf32>
    %96 = arith.mulf %91, %95 : vector<8x8x8xf32>
    %97 = arith.truncf %96 : vector<8x8x8xf32> to vector<8x8x8xbf16>
    %98 = arith.truncf %71 : vector<8x8x8xf32> to vector<8x8x8xbf16>
    "tpu.trace_start"() <{level = 10 : i32, message = "bij,bjd->bid"}> : () -> ()
    %cst_29 = arith.constant dense<0.000000e+00> : vector<8x8x8xf32>
    %99 = tpu.matmul %97, %98, %cst_29 {dimension_numbers = #tpu.dot_dimension_numbers<[2], [1], [1], [2], [0, 0, 0, 1, 1, 2], [0], [0]>} : vector<8x8x8xbf16>, vector<8x8x8xbf16>, vector<8x8x8xf32> -> vector<8x8x8xf32>
    "tpu.trace_stop"() : () -> ()
    %100 = vector.extract_strided_slice %99 {offsets = [0, 0, 0], sizes = [2, 8, 8], strides = [1, 1, 1]} : vector<8x8x8xf32> to vector<2x8x8xf32>
    %101 = vector.extract_strided_slice %99 {offsets = [2, 0, 0], sizes = [2, 8, 8], strides = [1, 1, 1]} : vector<8x8x8xf32> to vector<2x8x8xf32>
    %102 = vector.extract_strided_slice %99 {offsets = [4, 0, 0], sizes = [2, 8, 8], strides = [1, 1, 1]} : vector<8x8x8xf32> to vector<2x8x8xf32>
    %103 = vector.extract_strided_slice %99 {offsets = [6, 0, 0], sizes = [2, 8, 8], strides = [1, 1, 1]} : vector<8x8x8xf32> to vector<2x8x8xf32>
    %104 = tpu.concatenate %100, %101, %102, %103 in 2 : vector<2x8x8xf32>, vector<2x8x8xf32>, vector<2x8x8xf32>, vector<2x8x8xf32> -> vector<2x8x32xf32>
    %105 = vector.shape_cast %104 : vector<2x8x32xf32> to vector<16x32xf32>
    %c0_30 = arith.constant 0 : index
    %c0_31 = arith.constant 0 : index
    %106 = vector.load %arg7[%c0_30, %c0_31] : memref<32x32xf32, #tpu.memory_space<vmem>>, vector<32x32xf32>
    %107 = arith.truncf %105 : vector<16x32xf32> to vector<16x32xbf16>
    %108 = arith.truncf %106 : vector<32x32xf32> to vector<32x32xbf16>
    %cst_32 = arith.constant dense<0.000000e+00> : vector<16x32xf32>
    %109 = tpu.matmul %107, %108, %cst_32 {dimension_numbers = #tpu.dot_dimension_numbers<[1], [0], [0], [1], [0, 0, 1, 1], [], []>} : vector<16x32xbf16>, vector<32x32xbf16>, vector<16x32xf32> -> vector<16x32xf32>
    %110 = arith.addf %0, %109 : vector<16x32xf32>
    %c0_33 = arith.constant 0 : index
    %c0_34 = arith.constant 0 : index
    %111 = vector.load %arg14[%c0_33, %c0_34] : memref<1x32xf32, #tpu.memory_space<vmem>>, vector<1x32xf32>
    %c0_35 = arith.constant 0 : index
    %c0_36 = arith.constant 0 : index
    %112 = vector.load %arg15[%c0_35, %c0_36] : memref<1x32xf32, #tpu.memory_space<vmem>>, vector<1x32xf32>
    %cst_37 = arith.constant dense<0.000000e+00> : vector<16xf32>
    %113 = vector.multi_reduction <add>, %110, %cst_37 [1] : vector<16x32xf32> to vector<16xf32>
    %114 = vector.shape_cast %113 : vector<16xf32> to vector<16x1xf32>
    %cst_38 = arith.constant 3.200000e+01 : f32
    %115 = vector.broadcast %cst_38 : f32 to vector<16x1xf32>
    %116 = arith.divf %114, %115 : vector<16x1xf32>
    %117 = vector.broadcast %116 : vector<16x1xf32> to vector<16x32xf32>
    %118 = arith.subf %110, %117 : vector<16x32xf32>
    %119 = arith.mulf %118, %118 : vector<16x32xf32>
    %cst_39 = arith.constant dense<0.000000e+00> : vector<16xf32>
    %120 = vector.multi_reduction <add>, %119, %cst_39 [1] : vector<16x32xf32> to vector<16xf32>
    %121 = vector.shape_cast %120 : vector<16xf32> to vector<16x1xf32>
    %cst_40 = arith.constant 3.200000e+01 : f32
    %122 = vector.broadcast %cst_40 : f32 to vector<16x1xf32>
    %123 = arith.divf %121, %122 : vector<16x1xf32>
    %124 = vector.broadcast %116 : vector<16x1xf32> to vector<16x32xf32>
    %125 = arith.subf %110, %124 : vector<16x32xf32>
    %cst_41 = arith.constant 9.99999974E-6 : f32
    %126 = vector.broadcast %cst_41 : f32 to vector<16x1xf32>
    %127 = arith.addf %123, %126 : vector<16x1xf32>
    %128 = math.rsqrt %127 : vector<16x1xf32>
    %129 = vector.broadcast %128 : vector<16x1xf32> to vector<16x32xf32>
    %130 = arith.mulf %125, %129 : vector<16x32xf32>
    %131 = vector.broadcast %111 : vector<1x32xf32> to vector<16x32xf32>
    %132 = arith.mulf %130, %131 : vector<16x32xf32>
    %133 = vector.broadcast %112 : vector<1x32xf32> to vector<16x32xf32>
    %134 = arith.addf %132, %133 : vector<16x32xf32>
    %c0_42 = arith.constant 0 : index
    %c0_43 = arith.constant 0 : index
    %135 = vector.load %arg10[%c0_42, %c0_43] : memref<32x64xf32, #tpu.memory_space<vmem>>, vector<32x64xf32>
    %136 = arith.truncf %134 : vector<16x32xf32> to vector<16x32xbf16>
    %137 = arith.truncf %135 : vector<32x64xf32> to vector<32x64xbf16>
    %cst_44 = arith.constant dense<0.000000e+00> : vector<16x64xf32>
    %138 = tpu.matmul %136, %137, %cst_44 {dimension_numbers = #tpu.dot_dimension_numbers<[1], [0], [0], [1], [0, 0, 1, 1], [], []>} : vector<16x32xbf16>, vector<32x64xbf16>, vector<16x64xf32> -> vector<16x64xf32>
    %c0_45 = arith.constant 0 : index
    %c0_46 = arith.constant 0 : index
    %139 = vector.load %arg11[%c0_45, %c0_46] : memref<1x64xf32, #tpu.memory_space<vmem>>, vector<1x64xf32>
    %140 = vector.broadcast %139 : vector<1x64xf32> to vector<16x64xf32>
    %141 = arith.addf %138, %140 : vector<16x64xf32>
    %142 = arith.mulf %141, %141 : vector<16x64xf32>
    %143 = arith.mulf %141, %142 : vector<16x64xf32>
    %cst_47 = arith.constant 4.471500e-02 : f32
    %144 = vector.broadcast %cst_47 : f32 to vector<16x64xf32>
    %145 = arith.mulf %144, %143 : vector<16x64xf32>
    %146 = arith.addf %141, %145 : vector<16x64xf32>
    %cst_48 = arith.constant 0.797884583 : f32
    %147 = vector.broadcast %cst_48 : f32 to vector<16x64xf32>
    %148 = arith.mulf %147, %146 : vector<16x64xf32>
    %149 = math.tanh %148 : vector<16x64xf32>
    %cst_49 = arith.constant 1.000000e+00 : f32
    %150 = vector.broadcast %cst_49 : f32 to vector<16x64xf32>
    %151 = arith.addf %150, %149 : vector<16x64xf32>
    %cst_50 = arith.constant 5.000000e-01 : f32
    %152 = vector.broadcast %cst_50 : f32 to vector<16x64xf32>
    %153 = arith.mulf %152, %151 : vector<16x64xf32>
    %154 = arith.mulf %141, %153 : vector<16x64xf32>
    %c0_51 = arith.constant 0 : index
    %c0_52 = arith.constant 0 : index
    %155 = vector.load %arg12[%c0_51, %c0_52] : memref<64x32xf32, #tpu.memory_space<vmem>>, vector<64x32xf32>
    %156 = arith.truncf %154 : vector<16x64xf32> to vector<16x64xbf16>
    %157 = arith.truncf %155 : vector<64x32xf32> to vector<64x32xbf16>
    %cst_53 = arith.constant dense<0.000000e+00> : vector<16x32xf32>
    %158 = tpu.matmul %156, %157, %cst_53 {dimension_numbers = #tpu.dot_dimension_numbers<[1], [0], [0], [1], [0, 0, 1, 1], [], []>} : vector<16x64xbf16>, vector<64x32xbf16>, vector<16x32xf32> -> vector<16x32xf32>
    %c0_54 = arith.constant 0 : index
    %c0_55 = arith.constant 0 : index
    %159 = vector.load %arg13[%c0_54, %c0_55] : memref<1x32xf32, #tpu.memory_space<vmem>>, vector<1x32xf32>
    %160 = vector.broadcast %159 : vector<1x32xf32> to vector<16x32xf32>
    %161 = arith.addf %158, %160 : vector<16x32xf32>
    %162 = arith.addf %134, %161 : vector<16x32xf32>
    %c0_56 = arith.constant 0 : index
    %c0_57 = arith.constant 0 : index
    %163 = vector.load %arg16[%c0_56, %c0_57] : memref<1x32xf32, #tpu.memory_space<vmem>>, vector<1x32xf32>
    %c0_58 = arith.constant 0 : index
    %c0_59 = arith.constant 0 : index
    %164 = vector.load %arg17[%c0_58, %c0_59] : memref<1x32xf32, #tpu.memory_space<vmem>>, vector<1x32xf32>
    %cst_60 = arith.constant dense<0.000000e+00> : vector<16xf32>
    %165 = vector.multi_reduction <add>, %162, %cst_60 [1] : vector<16x32xf32> to vector<16xf32>
    %166 = vector.shape_cast %165 : vector<16xf32> to vector<16x1xf32>
    %cst_61 = arith.constant 3.200000e+01 : f32
    %167 = vector.broadcast %cst_61 : f32 to vector<16x1xf32>
    %168 = arith.divf %166, %167 : vector<16x1xf32>
    %169 = vector.broadcast %168 : vector<16x1xf32> to vector<16x32xf32>
    %170 = arith.subf %162, %169 : vector<16x32xf32>
    %171 = arith.mulf %170, %170 : vector<16x32xf32>
    %cst_62 = arith.constant dense<0.000000e+00> : vector<16xf32>
    %172 = vector.multi_reduction <add>, %171, %cst_62 [1] : vector<16x32xf32> to vector<16xf32>
    %173 = vector.shape_cast %172 : vector<16xf32> to vector<16x1xf32>
    %cst_63 = arith.constant 3.200000e+01 : f32
    %174 = vector.broadcast %cst_63 : f32 to vector<16x1xf32>
    %175 = arith.divf %173, %174 : vector<16x1xf32>
    %176 = vector.broadcast %168 : vector<16x1xf32> to vector<16x32xf32>
    %177 = arith.subf %162, %176 : vector<16x32xf32>
    %cst_64 = arith.constant 9.99999974E-6 : f32
    %178 = vector.broadcast %cst_64 : f32 to vector<16x1xf32>
    %179 = arith.addf %175, %178 : vector<16x1xf32>
    %180 = math.rsqrt %179 : vector<16x1xf32>
    %181 = vector.broadcast %180 : vector<16x1xf32> to vector<16x32xf32>
    %182 = arith.mulf %177, %181 : vector<16x32xf32>
    %183 = vector.broadcast %163 : vector<1x32xf32> to vector<16x32xf32>
    %184 = arith.mulf %182, %183 : vector<16x32xf32>
    %185 = vector.broadcast %164 : vector<1x32xf32> to vector<16x32xf32>
    %186 = arith.addf %184, %185 : vector<16x32xf32>
    %c0_65 = arith.constant 0 : index
    %c0_66 = arith.constant 0 : index
    %187 = vector.load %arg18[%c0_65, %c0_66] : memref<1x32xf32, #tpu.memory_space<vmem>>, vector<1x32xf32>
    %c0_67 = arith.constant 0 : index
    %c0_68 = arith.constant 0 : index
    %188 = vector.load %arg19[%c0_67, %c0_68] : memref<1x32xf32, #tpu.memory_space<vmem>>, vector<1x32xf32>
    %cst_69 = arith.constant dense<0.000000e+00> : vector<16xf32>
    %189 = vector.multi_reduction <add>, %186, %cst_69 [1] : vector<16x32xf32> to vector<16xf32>
    %190 = vector.shape_cast %189 : vector<16xf32> to vector<16x1xf32>
    %cst_70 = arith.constant 3.200000e+01 : f32
    %191 = vector.broadcast %cst_70 : f32 to vector<16x1xf32>
    %192 = arith.divf %190, %191 : vector<16x1xf32>
    %193 = vector.broadcast %192 : vector<16x1xf32> to vector<16x32xf32>
    %194 = arith.subf %186, %193 : vector<16x32xf32>
    %195 = arith.mulf %194, %194 : vector<16x32xf32>
    %cst_71 = arith.constant dense<0.000000e+00> : vector<16xf32>
    %196 = vector.multi_reduction <add>, %195, %cst_71 [1] : vector<16x32xf32> to vector<16xf32>
    %197 = vector.shape_cast %196 : vector<16xf32> to vector<16x1xf32>
    %cst_72 = arith.constant 3.200000e+01 : f32
    %198 = vector.broadcast %cst_72 : f32 to vector<16x1xf32>
    %199 = arith.divf %197, %198 : vector<16x1xf32>
    %200 = vector.broadcast %192 : vector<16x1xf32> to vector<16x32xf32>
    %201 = arith.subf %186, %200 : vector<16x32xf32>
    %cst_73 = arith.constant 9.99999974E-6 : f32
    %202 = vector.broadcast %cst_73 : f32 to vector<16x1xf32>
    %203 = arith.addf %199, %202 : vector<16x1xf32>
    %204 = math.rsqrt %203 : vector<16x1xf32>
    %205 = vector.broadcast %204 : vector<16x1xf32> to vector<16x32xf32>
    %206 = arith.mulf %201, %205 : vector<16x32xf32>
    %207 = vector.broadcast %187 : vector<1x32xf32> to vector<16x32xf32>
    %208 = arith.mulf %206, %207 : vector<16x32xf32>
    %209 = vector.broadcast %188 : vector<1x32xf32> to vector<16x32xf32>
    %210 = arith.addf %208, %209 : vector<16x32xf32>
    %c0_74 = arith.constant 0 : index
    %c0_75 = arith.constant 0 : index
    %211 = vector.load %arg20[%c0_74, %c0_75] : memref<16x32xf32, #tpu.memory_space<vmem>>, vector<16x32xf32>
    tpu.vector_store %arg20[%c0_74, %c0_75], %210 {strides = array<i32>} : memref<16x32xf32, #tpu.memory_space<vmem>>, vector<16x32xf32>,
    return
  }
  func.func @transform_0(%arg0: i32) -> (i32, i32) {
    %c0_i32 = arith.constant 0 : i32
    %c0_i32_0 = arith.constant 0 : i32
    return %arg0, %c0_i32 : i32, i32
  }
  func.func @transform_1(%arg0: i32) -> (i32, i32, i32) {
    %c0_i32 = arith.constant 0 : i32
    %c0_i32_0 = arith.constant 0 : i32
    %c0_i32_1 = arith.constant 0 : i32
    return %arg0, %c0_i32, %c0_i32_0 : i32, i32, i32
  }
  func.func @transform_2(%arg0: i32) -> (i32, i32) {
    %c0_i32 = arith.constant 0 : i32
    %c0_i32_0 = arith.constant 0 : i32
    %c0_i32_1 = arith.constant 0 : i32
    return %c0_i32, %c0_i32_0 : i32, i32
  }
  func.func @transform_3(%arg0: i32) -> (i32, i32) {
    %c0_i32 = arith.constant 0 : i32
    %c0_i32_0 = arith.constant 0 : i32
    %c0_i32_1 = arith.constant 0 : i32
    return %c0_i32, %c0_i32_0 : i32, i32
  }
  func.func @transform_4(%arg0: i32) -> (i32, i32) {
    %c0_i32 = arith.constant 0 : i32
    %c0_i32_0 = arith.constant 0 : i32
    %c0_i32_1 = arith.constant 0 : i32
    return %c0_i32, %c0_i32_0 : i32, i32
  }
  func.func @transform_5(%arg0: i32) -> (i32, i32) {
    %c0_i32 = arith.constant 0 : i32
    %c0_i32_0 = arith.constant 0 : i32
    %c0_i32_1 = arith.constant 0 : i32
    return %c0_i32, %c0_i32_0 : i32, i32
  }
  func.func @transform_6(%arg0: i32) -> (i32, i32) {
    %c0_i32 = arith.constant 0 : i32
    %c0_i32_0 = arith.constant 0 : i32
    %c0_i32_1 = arith.constant 0 : i32
    return %c0_i32, %c0_i32_0 : i32, i32
  }
  func.func @transform_7(%arg0: i32) -> (i32, i32) {
    %c0_i32 = arith.constant 0 : i32
    %c0_i32_0 = arith.constant 0 : i32
    %c0_i32_1 = arith.constant 0 : i32
    return %c0_i32, %c0_i32_0 : i32, i32
  }
  func.func @transform_8(%arg0: i32) -> (i32, i32) {
    %c0_i32 = arith.constant 0 : i32
    %c0_i32_0 = arith.constant 0 : i32
    %c0_i32_1 = arith.constant 0 : i32
    return %c0_i32, %c0_i32_0 : i32, i32
  }
  func.func @transform_9(%arg0: i32) -> (i32, i32) {
    %c0_i32 = arith.constant 0 : i32
    %c0_i32_0 = arith.constant 0 : i32
    %c0_i32_1 = arith.constant 0 : i32
    return %c0_i32, %c0_i32_0 : i32, i32
  }
  func.func @transform_10(%arg0: i32) -> (i32, i32) {
    %c0_i32 = arith.constant 0 : i32
    %c0_i32_0 = arith.constant 0 : i32
    %c0_i32_1 = arith.constant 0 : i32
    return %c0_i32, %c0_i32_0 : i32, i32
  }
  func.func @transform_11(%arg0: i32) -> (i32, i32) {
    %c0_i32 = arith.constant 0 : i32
    %c0_i32_0 = arith.constant 0 : i32
    %c0_i32_1 = arith.constant 0 : i32
    return %c0_i32, %c0_i32_0 : i32, i32
  }
  func.func @transform_12(%arg0: i32) -> (i32, i32) {
    %c0_i32 = arith.constant 0 : i32
    %c0_i32_0 = arith.constant 0 : i32
    %c0_i32_1 = arith.constant 0 : i32
    return %c0_i32, %c0_i32_0 : i32, i32
  }
  func.func @transform_13(%arg0: i32) -> (i32, i32) {
    %c0_i32 = arith.constant 0 : i32
    %c0_i32_0 = arith.constant 0 : i32
    %c0_i32_1 = arith.constant 0 : i32
    return %c0_i32, %c0_i32_0 : i32, i32
  }
  func.func @transform_14(%arg0: i32) -> (i32, i32) {
    %c0_i32 = arith.constant 0 : i32
    %c0_i32_0 = arith.constant 0 : i32
    %c0_i32_1 = arith.constant 0 : i32
    return %c0_i32, %c0_i32_0 : i32, i32
  }
  func.func @transform_15(%arg0: i32) -> (i32, i32) {
    %c0_i32 = arith.constant 0 : i32
    %c0_i32_0 = arith.constant 0 : i32
    %c0_i32_1 = arith.constant 0 : i32
    return %c0_i32, %c0_i32_0 : i32, i32
  }
  func.func @transform_16(%arg0: i32) -> (i32, i32) {
    %c0_i32 = arith.constant 0 : i32
    %c0_i32_0 = arith.constant 0 : i32
    %c0_i32_1 = arith.constant 0 : i32
    return %c0_i32, %c0_i32_0 : i32, i32
  }
  func.func @transform_17(%arg0: i32) -> (i32, i32) {
    %c0_i32 = arith.constant 0 : i32
    %c0_i32_0 = arith.constant 0 : i32
    %c0_i32_1 = arith.constant 0 : i32
    return %c0_i32, %c0_i32_0 : i32, i32
  }
  func.func @transform_18(%arg0: i32) -> (i32, i32) {
    %c0_i32 = arith.constant 0 : i32
    %c0_i32_0 = arith.constant 0 : i32
    %c0_i32_1 = arith.constant 0 : i32
    return %c0_i32, %c0_i32_0 : i32, i32
  }
  func.func @transform_19(%arg0: i32) -> (i32, i32) {
    %c0_i32 = arith.constant 0 : i32
    %c0_i32_0 = arith.constant 0 : i32
    return %arg0, %c0_i32 : i32, i32
  }
}

</mosaic_0001>

<llo_original>
// kernel: tpu_custom_call.1
$region0: #{tpu_custom_call.1}
  #allocation0 [shape = 'u32[]', space=smem, size = 0x4, offset = 0x4, fixed_abs, tag = 'smem constant byte address 0x4 - core index']
  #allocation1 [shape = 'u32[144,128]{1,0:T(1,128)}', space=vmem, size = 0x12000, scoped, tag = 'internal scratch']
  %s0 = inlined_call_operand.hbm [shape: f32[16,32], index: 0, kind: input, shape index: {}]
  %s1 = inlined_call_operand.hbm [shape: f32[2,16,32], index: 1, kind: input, shape index: {}]
  %s2 = inlined_call_operand.hbm [shape: f32[8,8], index: 2, kind: input, shape index: {}]
  %s3 = inlined_call_operand.hbm [shape: f32[32,32], index: 3, kind: input, shape index: {}]
  %s4 = inlined_call_operand.hbm [shape: f32[32,32], index: 4, kind: input, shape index: {}]
  %s5 = inlined_call_operand.hbm [shape: f32[32,32], index: 5, kind: input, shape index: {}]
  %s6 = inlined_call_operand.hbm [shape: f32[32,32], index: 6, kind: input, shape index: {}]
  %s7 = inlined_call_operand.hbm [shape: f32[1,32], index: 7, kind: input, shape index: {}]
  %s8 = inlined_call_operand.hbm [shape: f32[1,32], index: 8, kind: input, shape index: {}]
  %s9 = inlined_call_operand.hbm [shape: f32[32,64], index: 9, kind: input, shape index: {}]
  %s10 = inlined_call_operand.hbm [shape: f32[1,64], index: 10, kind: input, shape index: {}]
  %s11 = inlined_call_operand.hbm [shape: f32[64,32], index: 11, kind: input, shape index: {}]
  %s12 = inlined_call_operand.hbm [shape: f32[1,32], index: 12, kind: input, shape index: {}]
  %s13 = inlined_call_operand.hbm [shape: f32[1,32], index: 13, kind: input, shape index: {}]
  %s14 = inlined_call_operand.hbm [shape: f32[1,32], index: 14, kind: input, shape index: {}]
  %s15 = inlined_call_operand.hbm [shape: f32[1,32], index: 15, kind: input, shape index: {}]
  %s16 = inlined_call_operand.hbm [shape: f32[1,32], index: 16, kind: input, shape index: {}]
  %s17 = inlined_call_operand.hbm [shape: f32[1,32], index: 17, kind: input, shape index: {}]
  %s18 = inlined_call_operand.hbm [shape: f32[1,32], index: 18, kind: input, shape index: {}]
  %s19 = inlined_call_operand.hbm [shape: f32[16,32], index: 19, kind: output, shape index: {}]
  %s20 = sld [smem:[#allocation0]]
  $region162: #{tpu_custom_call.1} parent=0
    _
  %s22 = ssub.s32 1, %s20
  %s23 = scalar_select 0, %s22, %s20
  $region1: #{tpu_custom_call.1} parent=0
    #allocation2 [shape = 'u8[8192]{0}', space=vmem, size = 0x2000, scoped, tag = 'input window, operand 0, single buffered']
    #allocation3 [shape = 's32[1]{0}', space=sflag, size = 0x4, scoped, tag = 'scoped memory for tpu_custom_call.1']
    #allocation4 [shape = 's32[1]{0}', space=sflag, size = 0x4, scoped, tag = 'scoped memory for tpu_custom_call.1']
    #allocation5 [shape = 'u8[16384]{0}', space=vmem, size = 0x4000, scoped, tag = 'input window, operand 1, single buffered']
    #allocation6 [shape = 's32[1]{0}', space=sflag, size = 0x4, scoped, tag = 'scoped memory for tpu_custom_call.1']
    #allocation7 [shape = 'u8[4096]{0}', space=vmem, size = 0x1000, scoped, tag = 'input window, operand 2, single buffered']
    #allocation8 [shape = 'u8[16384]{0}', space=vmem, size = 0x4000, scoped, tag = 'input window, operand 3, single buffered']
    #allocation9 [shape = 's32[1]{0}', space=sflag, size = 0x4, scoped, tag = 'scoped memory for tpu_custom_call.1']
    #allocation10 [shape = 'u8[16384]{0}', space=vmem, size = 0x4000, scoped, tag = 'input window, operand 4, single buffered']
    #allocation11 [shape = 'u8[16384]{0}', space=vmem, size = 0x4000, scoped, tag = 'input window, operand 5, single buffered']
    #allocation12 [shape = 's32[1]{0}', space=sflag, size = 0x4, scoped, tag = 'scoped memory for tpu_custom_call.1']
    #allocation13 [shape = 'u8[16384]{0}', space=vmem, size = 0x4000, scoped, tag = 'input window, operand 6, single buffered']
    #allocation14 [shape = 'u8[512]{0}', space=vmem, size = 0x400, scoped, tag = 'input window, operand 7, single buffered']
    #allocation15 [shape = 's32[1]{0}', space=sflag, size = 0x4, scoped, tag = 'scoped memory for tpu_custom_call.1']
    #allocation16 [shape = 'u8[512]{0}', space=vmem, size = 0x400, scoped, tag = 'input window, operand 8, single buffered']
    #allocation17 [shape = 'u8[16384]{0}', space=vmem, size = 0x4000, scoped, tag = 'input window, operand 9, single buffered']
    #allocation18 [shape = 's32[1]{0}', space=sflag, size = 0x4, scoped, tag = 'scoped memory for tpu_custom_call.1']
    #allocation19 [shape = 'u8[512]{0}', space=vmem, size = 0x400, scoped, tag = 'input window, operand 10, single buffered']
    #allocation20 [shape = 'u8[32768]{0}', space=vmem, size = 0x8000, scoped, tag = 'input window, operand 11, single buffered']
    #allocation21 [shape = 's32[1]{0}', space=sflag, size = 0x4, scoped, tag = 'scoped memory for tpu_custom_call.1']
    #allocation22 [shape = 'u8[512]{0}', space=vmem, size = 0x400, scoped, tag = 'input window, operand 12, single buffered']
    #allocation23 [shape = 'u8[512]{0}', space=vmem, size = 0x400, scoped, tag = 'input window, operand 13, single buffered']
    #allocation24 [shape = 's32[1]{0}', space=sflag, size = 0x4, scoped, tag = 'scoped memory for tpu_custom_call.1']
    #allocation25 [shape = 'u8[512]{0}', space=vmem, size = 0x400, scoped, tag = 'input window, operand 14, single buffered']
    #allocation26 [shape = 'u8[512]{0}', space=vmem, size = 0x400, scoped, tag = 'input window, operand 15, single buffered']
    #allocation27 [shape = 's32[1]{0}', space=sflag, size = 0x4, scoped, tag = 'scoped memory for tpu_custom_call.1']
    #allocation28 [shape = 'u8[512]{0}', space=vmem, size = 0x400, scoped, tag = 'input window, operand 16, single buffered']
    #allocation29 [shape = 'u8[512]{0}', space=vmem, size = 0x400, scoped, tag = 'input window, operand 17, single buffered']
    #allocation30 [shape = 's32[1]{0}', space=sflag, size = 0x4, scoped, tag = 'scoped memory for tpu_custom_call.1']
    #allocation31 [shape = 'u8[512]{0}', space=vmem, size = 0x400, scoped, tag = 'input window, operand 18, single buffered']
    #allocation32 [shape = 'u8[8192]{0}', space=vmem, size = 0x2000, scoped, tag = 'output window, operand 0, single buffered']
    %24 = vsyncpa [#allocation3], 0
    %25 = vsyncpa [#allocation6], 0
    %26 = vsyncpa [#allocation9], 0
    %27 = vsyncpa [#allocation12], 0
    %28 = vsyncpa [#allocation15], 0
    %29 = vsyncpa [#allocation18], 0
    %30 = vsyncpa [#allocation21], 0
    %31 = vsyncpa [#allocation24], 0
    %32 = vsyncpa [#allocation27], 0
    %33 = vsyncpa [#allocation30], 0
    %34 = vsyncpa [#allocation4], 0
    // Predicated region
    $region2: #{tpu_custom_call.1} parent=1 // pred_check
      _
    $region3: #{tpu_custom_call.1} parent=1 // pred_check_branch
      %36 = sbr.rel (0) target = $region5
    $region4: #{tpu_custom_call.1} parent=1 // pred_region
      %s38 = ssub.s32 256, 256
      %39 = vsyncadd [#allocation3], %s38
      %s40 = sshll.u32 [#allocation2], 4
      %s41 = int_to_ptr.vmem [resolvable:$true] %s40
      %46 = dma.hbm_to_vmem [thread:$0]  %s0, 256, %s41, [#allocation3], 128, 128, 8
    $region5: #{tpu_custom_call.1} parent=1 // pred_fallthru
      _
    // Predicated region
    $region6: #{tpu_custom_call.1} parent=1 // pred_check
      _
    $region7: #{tpu_custom_call.1} parent=1 // pred_check_branch
      %48 = sbr.rel (0) target = $region9
    $region8: #{tpu_custom_call.1} parent=1 // pred_region
      %s50 = ssub.s32 512, 512
      %51 = vsyncadd [#allocation6], %s50
      %s52 = sshll.u32 [#allocation5], 4
      %s53 = int_to_ptr.vmem [resolvable:$true] %s52
      %58 = dma.hbm_to_vmem [thread:$0]  %s1, 512, %s53, [#allocation6], 128, 128, 8
    $region9: #{tpu_custom_call.1} parent=1 // pred_fallthru
      _
    // Predicated region
    $region10: #{tpu_custom_call.1} parent=1 // pred_check
      _
    $region11: #{tpu_custom_call.1} parent=1 // pred_check_branch
      %60 = sbr.rel (0) target = $region13
    $region12: #{tpu_custom_call.1} parent=1 // pred_region
      %s62 = ssub.s32 128, 128
      %63 = vsyncadd [#allocation6], %s62
      %s65 = sshll.u32 [#allocation7], 4
      %s66 = int_to_ptr.vmem [resolvable:$true] %s65
      %68 = dma.hbm_to_vmem [thread:$0]  %s2, 128, %s66, [#allocation6]
    $region13: #{tpu_custom_call.1} parent=1 // pred_fallthru
      _
    // Predicated region
    $region14: #{tpu_custom_call.1} parent=1 // pred_check
      _
    $region15: #{tpu_custom_call.1} parent=1 // pred_check_branch
      %70 = sbr.rel (0) target = $region17
    $region16: #{tpu_custom_call.1} parent=1 // pred_region
      %s72 = ssub.s32 512, 512
      %73 = vsyncadd [#allocation9], %s72
      %s74 = sshll.u32 [#allocation8], 4
      %s75 = int_to_ptr.vmem [resolvable:$true] %s74
      %80 = dma.hbm_to_vmem [thread:$0]  %s3, 512, %s75, [#allocation9], 128, 128, 8
    $region17: #{tpu_custom_call.1} parent=1 // pred_fallthru
      _
    // Predicated region
    $region18: #{tpu_custom_call.1} parent=1 // pred_check
      _
    $region19: #{tpu_custom_call.1} parent=1 // pred_check_branch
      %82 = sbr.rel (0) target = $region21
    $region20: #{tpu_custom_call.1} parent=1 // pred_region
      %s84 = ssub.s32 512, 512
      %85 = vsyncadd [#allocation9], %s84
      %s86 = sshll.u32 [#allocation10], 4
      %s87 = int_to_ptr.vmem [resolvable:$true] %s86
      %92 = dma.hbm_to_vmem [thread:$0]  %s4, 512, %s87, [#allocation9], 128, 128, 8
    $region21: #{tpu_custom_call.1} parent=1 // pred_fallthru
      _
    // Predicated region
    $region22: #{tpu_custom_call.1} parent=1 // pred_check
      _
    $region23: #{tpu_custom_call.1} parent=1 // pred_check_branch
      %94 = sbr.rel (0) target = $region25
    $region24: #{tpu_custom_call.1} parent=1 // pred_region
      %s96 = ssub.s32 512, 512
      %97 = vsyncadd [#allocation12], %s96
      %s98 = sshll.u32 [#allocation11], 4
      %s99 = int_to_ptr.vmem [resolvable:$true] %s98
      %104 = dma.hbm_to_vmem [thread:$0]  %s5, 512, %s99, [#allocation12], 128, 128, 8
    $region25: #{tpu_custom_call.1} parent=1 // pred_fallthru
      _
    // Predicated region
    $region26: #{tpu_custom_call.1} parent=1 // pred_check
      _
    $region27: #{tpu_custom_call.1} parent=1 // pred_check_branch
      %106 = sbr.rel (0) target = $region29
    $region28: #{tpu_custom_call.1} parent=1 // pred_region
      %s108 = ssub.s32 512, 512
      %109 = vsyncadd [#allocation12], %s108
      %s110 = sshll.u32 [#allocation13], 4
      %s111 = int_to_ptr.vmem [resolvable:$true] %s110
      %116 = dma.hbm_to_vmem [thread:$0]  %s6, 512, %s111, [#allocation12], 128, 128, 8
    $region29: #{tpu_custom_call.1} parent=1 // pred_fallthru
      _
    // Predicated region
    $region30: #{tpu_custom_call.1} parent=1 // pred_check
      _
    $region31: #{tpu_custom_call.1} parent=1 // pred_check_branch
      %118 = sbr.rel (0) target = $region33
    $region32: #{tpu_custom_call.1} parent=1 // pred_region
      %s120 = ssub.s32 16, 16
      %121 = vsyncadd [#allocation15], %s120
      %s123 = sshll.u32 [#allocation14], 4
      %s124 = int_to_ptr.vmem [resolvable:$true] %s123
      %126 = dma.hbm_to_vmem [thread:$0]  %s7, 16, %s124, [#allocation15]
    $region33: #{tpu_custom_call.1} parent=1 // pred_fallthru
      _
    // Predicated region
    $region34: #{tpu_custom_call.1} parent=1 // pred_check
      _
    $region35: #{tpu_custom_call.1} parent=1 // pred_check_branch
      %128 = sbr.rel (0) target = $region37
    $region36: #{tpu_custom_call.1} parent=1 // pred_region
      %s130 = ssub.s32 16, 16
      %131 = vsyncadd [#allocation15], %s130
      %s133 = sshll.u32 [#allocation16], 4
      %s134 = int_to_ptr.vmem [resolvable:$true] %s133
      %136 = dma.hbm_to_vmem [thread:$0]  %s8, 16, %s134, [#allocation15]
    $region37: #{tpu_custom_call.1} parent=1 // pred_fallthru
      _
    // Predicated region
    $region38: #{tpu_custom_call.1} parent=1 // pred_check
      _
    $region39: #{tpu_custom_call.1} parent=1 // pred_check_branch
      %138 = sbr.rel (0) target = $region41
    $region40: #{tpu_custom_call.1} parent=1 // pred_region
      %s140 = ssub.s32 512, 512
      %141 = vsyncadd [#allocation18], %s140
      %s142 = sshll.u32 [#allocation17], 4
      %s143 = int_to_ptr.vmem [resolvable:$true] %s142
      %148 = dma.hbm_to_vmem [thread:$0]  %s9, 512, %s143, [#allocation18], 128, 128, 8
    $region41: #{tpu_custom_call.1} parent=1 // pred_fallthru
      _
    // Predicated region
    $region42: #{tpu_custom_call.1} parent=1 // pred_check
      _
    $region43: #{tpu_custom_call.1} parent=1 // pred_check_branch
      %150 = sbr.rel (0) target = $region45
    $region44: #{tpu_custom_call.1} parent=1 // pred_region
      %s152 = ssub.s32 16, 16
      %153 = vsyncadd [#allocation18], %s152
      %s155 = sshll.u32 [#allocation19], 4
      %s156 = int_to_ptr.vmem [resolvable:$true] %s155
      %158 = dma.hbm_to_vmem [thread:$0]  %s10, 16, %s156, [#allocation18]
    $region45: #{tpu_custom_call.1} parent=1 // pred_fallthru
      _
    // Predicated region
    $region46: #{tpu_custom_call.1} parent=1 // pred_check
      _
    $region47: #{tpu_custom_call.1} parent=1 // pred_check_branch
      %160 = sbr.rel (0) target = $region49
    $region48: #{tpu_custom_call.1} parent=1 // pred_region
      %s162 = ssub.s32 1024, 1024
      %163 = vsyncadd [#allocation21], %s162
      %s164 = sshll.u32 [#allocation20], 4
      %s165 = int_to_ptr.vmem [resolvable:$true] %s164
      %170 = dma.hbm_to_vmem [thread:$0]  %s11, 1024, %s165, [#allocation21], 128, 128, 8
    $region49: #{tpu_custom_call.1} parent=1 // pred_fallthru
      _
    // Predicated region
    $region50: #{tpu_custom_call.1} parent=1 // pred_check
      _
    $region51: #{tpu_custom_call.1} parent=1 // pred_check_branch
      %172 = sbr.rel (0) target = $region53
    $region52: #{tpu_custom_call.1} parent=1 // pred_region
      %s174 = ssub.s32 16, 16
      %175 = vsyncadd [#allocation21], %s174
      %s177 = sshll.u32 [#allocation22], 4
      %s178 = int_to_ptr.vmem [resolvable:$true] %s177
      %180 = dma.hbm_to_vmem [thread:$0]  %s12, 16, %s178, [#allocation21]
    $region53: #{tpu_custom_call.1} parent=1 // pred_fallthru
      _
    // Predicated region
    $region54: #{tpu_custom_call.1} parent=1 // pred_check
      _
    $region55: #{tpu_custom_call.1} parent=1 // pred_check_branch
      %182 = sbr.rel (0) target = $region57
    $region56: #{tpu_custom_call.1} parent=1 // pred_region
      %s184 = ssub.s32 16, 16
      %185 = vsyncadd [#allocation24], %s184
      %s187 = sshll.u32 [#allocation23], 4
      %s188 = int_to_ptr.vmem [resolvable:$true] %s187
      %190 = dma.hbm_to_vmem [thread:$0]  %s13, 16, %s188, [#allocation24]
    $region57: #{tpu_custom_call.1} parent=1 // pred_fallthru
      _
    // Predicated region
    $region58: #{tpu_custom_call.1} parent=1 // pred_check
      _
    $region59: #{tpu_custom_call.1} parent=1 // pred_check_branch
      %192 = sbr.rel (0) target = $region61
    $region60: #{tpu_custom_call.1} parent=1 // pred_region
      %s194 = ssub.s32 16, 16
      %195 = vsyncadd [#allocation24], %s194
      %s197 = sshll.u32 [#allocation25], 4
      %s198 = int_to_ptr.vmem [resolvable:$true] %s197
      %200 = dma.hbm_to_vmem [thread:$0]  %s14, 16, %s198, [#allocation24]
    $region61: #{tpu_custom_call.1} parent=1 // pred_fallthru
      _
    // Predicated region
    $region62: #{tpu_custom_call.1} parent=1 // pred_check
      _
    $region63: #{tpu_custom_call.1} parent=1 // pred_check_branch
      %202 = sbr.rel (0) target = $region65
    $region64: #{tpu_custom_call.1} parent=1 // pred_region
      %s204 = ssub.s32 16, 16
      %205 = vsyncadd [#allocation27], %s204
      %s207 = sshll.u32 [#allocation26], 4
      %s208 = int_to_ptr.vmem [resolvable:$true] %s207
      %210 = dma.hbm_to_vmem [thread:$0]  %s15, 16, %s208, [#allocation27]
    $region65: #{tpu_custom_call.1} parent=1 // pred_fallthru
      _
    // Predicated region
    $region66: #{tpu_custom_call.1} parent=1 // pred_check
      _
    $region67: #{tpu_custom_call.1} parent=1 // pred_check_branch
      %212 = sbr.rel (0) target = $region69
    $region68: #{tpu_custom_call.1} parent=1 // pred_region
      %s214 = ssub.s32 16, 16
      %215 = vsyncadd [#allocation27], %s214
      %s217 = sshll.u32 [#allocation28], 4
      %s218 = int_to_ptr.vmem [resolvable:$true] %s217
      %220 = dma.hbm_to_vmem [thread:$0]  %s16, 16, %s218, [#allocation27]
    $region69: #{tpu_custom_call.1} parent=1 // pred_fallthru
      _
    // Predicated region
    $region70: #{tpu_custom_call.1} parent=1 // pred_check
      _
    $region71: #{tpu_custom_call.1} parent=1 // pred_check_branch
      %222 = sbr.rel (0) target = $region73
    $region72: #{tpu_custom_call.1} parent=1 // pred_region
      %s224 = ssub.s32 16, 16
      %225 = vsyncadd [#allocation30], %s224
      %s227 = sshll.u32 [#allocation29], 4
      %s228 = int_to_ptr.vmem [resolvable:$true] %s227
      %230 = dma.hbm_to_vmem [thread:$0]  %s17, 16, %s228, [#allocation30]
    $region73: #{tpu_custom_call.1} parent=1 // pred_fallthru
      _
    // Predicated region
    $region74: #{tpu_custom_call.1} parent=1 // pred_check
      _
    $region75: #{tpu_custom_call.1} parent=1 // pred_check_branch
      %232 = sbr.rel (0) target = $region77
    $region76: #{tpu_custom_call.1} parent=1 // pred_region
      %s234 = ssub.s32 16, 16
      %235 = vsyncadd [#allocation30], %s234
      %s237 = sshll.u32 [#allocation31], 4
      %s238 = int_to_ptr.vmem [resolvable:$true] %s237
      %240 = dma.hbm_to_vmem [thread:$0]  %s18, 16, %s238, [#allocation30]
    $region77: #{tpu_custom_call.1} parent=1 // pred_fallthru
      _
    // Predicated region
    $region78: #{tpu_custom_call.1} parent=1 // pred_check
      _
    $region79: #{tpu_custom_call.1} parent=1 // pred_check_branch
      %242 = sbr.rel (0) target = $region81
    $region80: #{tpu_custom_call.1} parent=1 // pred_region
      %243 = dma.done [#allocation3], 256
    $region81: #{tpu_custom_call.1} parent=1 // pred_fallthru
      _
    // Predicated region
    $region82: #{tpu_custom_call.1} parent=1 // pred_check
      _
    $region83: #{tpu_custom_call.1} parent=1 // pred_check_branch
      %245 = sbr.rel (0) target = $region85
    $region84: #{tpu_custom_call.1} parent=1 // pred_region
      %246 = dma.done [#allocation6], 512
    $region85: #{tpu_custom_call.1} parent=1 // pred_fallthru
      _
    // Predicated region
    $region86: #{tpu_custom_call.1} parent=1 // pred_check
      _
    $region87: #{tpu_custom_call.1} parent=1 // pred_check_branch
      %248 = sbr.rel (0) target = $region89
    $region88: #{tpu_custom_call.1} parent=1 // pred_region
      %249 = dma.done [#allocation6], 128
    $region89: #{tpu_custom_call.1} parent=1 // pred_fallthru
      _
    // Predicated region
    $region90: #{tpu_custom_call.1} parent=1 // pred_check
      _
    $region91: #{tpu_custom_call.1} parent=1 // pred_check_branch
      %251 = sbr.rel (0) target = $region93
    $region92: #{tpu_custom_call.1} parent=1 // pred_region
      %252 = dma.done [#allocation9], 512
    $region93: #{tpu_custom_call.1} parent=1 // pred_fallthru
      _
    // Predicated region
    $region94: #{tpu_custom_call.1} parent=1 // pred_check
      _
    $region95: #{tpu_custom_call.1} parent=1 // pred_check_branch
      %254 = sbr.rel (0) target = $region97
    $region96: #{tpu_custom_call.1} parent=1 // pred_region
      %255 = dma.done [#allocation9], 512
    $region97: #{tpu_custom_call.1} parent=1 // pred_fallthru
      _
    // Predicated region
    $region98: #{tpu_custom_call.1} parent=1 // pred_check
      _
    $region99: #{tpu_custom_call.1} parent=1 // pred_check_branch
      %257 = sbr.rel (0) target = $region101
    $region100: #{tpu_custom_call.1} parent=1 // pred_region
      %258 = dma.done [#allocation12], 512
    $region101: #{tpu_custom_call.1} parent=1 // pred_fallthru
      _
    // Predicated region
    $region102: #{tpu_custom_call.1} parent=1 // pred_check
      _
    $region103: #{tpu_custom_call.1} parent=1 // pred_check_branch
      %260 = sbr.rel (0) target = $region105
    $region104: #{tpu_custom_call.1} parent=1 // pred_region
      %261 = dma.done [#allocation12], 512
    $region105: #{tpu_custom_call.1} parent=1 // pred_fallthru
      _
    // Predicated region
    $region106: #{tpu_custom_call.1} parent=1 // pred_check
      _
    $region107: #{tpu_custom_call.1} parent=1 // pred_check_branch
      %263 = sbr.rel (0) target = $region109
    $region108: #{tpu_custom_call.1} parent=1 // pred_region
      %264 = dma.done [#allocation15], 16
    $region109: #{tpu_custom_call.1} parent=1 // pred_fallthru
      _
    // Predicated region
    $region110: #{tpu_custom_call.1} parent=1 // pred_check
      _
    $region111: #{tpu_custom_call.1} parent=1 // pred_check_branch
      %266 = sbr.rel (0) target = $region113
    $region112: #{tpu_custom_call.1} parent=1 // pred_region
      %267 = dma.done [#allocation15], 16
    $region113: #{tpu_custom_call.1} parent=1 // pred_fallthru
      _
    // Predicated region
    $region114: #{tpu_custom_call.1} parent=1 // pred_check
      _
    $region115: #{tpu_custom_call.1} parent=1 // pred_check_branch
      %269 = sbr.rel (0) target = $region117
    $region116: #{tpu_custom_call.1} parent=1 // pred_region
      %270 = dma.done [#allocation18], 512
    $region117: #{tpu_custom_call.1} parent=1 // pred_fallthru
      _
    // Predicated region
    $region118: #{tpu_custom_call.1} parent=1 // pred_check
      _
    $region119: #{tpu_custom_call.1} parent=1 // pred_check_branch
      %272 = sbr.rel (0) target = $region121
    $region120: #{tpu_custom_call.1} parent=1 // pred_region
      %273 = dma.done [#allocation18], 16
    $region121: #{tpu_custom_call.1} parent=1 // pred_fallthru
      _
    // Predicated region
    $region122: #{tpu_custom_call.1} parent=1 // pred_check
      _
    $region123: #{tpu_custom_call.1} parent=1 // pred_check_branch
      %275 = sbr.rel (0) target = $region125
    $region124: #{tpu_custom_call.1} parent=1 // pred_region
      %276 = dma.done [#allocation21], 1024
    $region125: #{tpu_custom_call.1} parent=1 // pred_fallthru
      _
    // Predicated region
    $region126: #{tpu_custom_call.1} parent=1 // pred_check
      _
    $region127: #{tpu_custom_call.1} parent=1 // pred_check_branch
      %278 = sbr.rel (0) target = $region129
    $region128: #{tpu_custom_call.1} parent=1 // pred_region
      %279 = dma.done [#allocation21], 16
    $region129: #{tpu_custom_call.1} parent=1 // pred_fallthru
      _
    // Predicated region
    $region130: #{tpu_custom_call.1} parent=1 // pred_check
      _
    $region131: #{tpu_custom_call.1} parent=1 // pred_check_branch
      %281 = sbr.rel (0) target = $region133
    $region132: #{tpu_custom_call.1} parent=1 // pred_region
      %282 = dma.done [#allocation24], 16
    $region133: #{tpu_custom_call.1} parent=1 // pred_fallthru
      _
    // Predicated region
    $region134: #{tpu_custom_call.1} parent=1 // pred_check
      _
    $region135: #{tpu_custom_call.1} parent=1 // pred_check_branch
      %284 = sbr.rel (0) target = $region137
    $region136: #{tpu_custom_call.1} parent=1 // pred_region
      %285 = dma.done [#allocation24], 16
    $region137: #{tpu_custom_call.1} parent=1 // pred_fallthru
      _
    // Predicated region
    $region138: #{tpu_custom_call.1} parent=1 // pred_check
      _
    $region139: #{tpu_custom_call.1} parent=1 // pred_check_branch
      %287 = sbr.rel (0) target = $region141
    $region140: #{tpu_custom_call.1} parent=1 // pred_region
      %288 = dma.done [#allocation27], 16
    $region141: #{tpu_custom_call.1} parent=1 // pred_fallthru
      _
    // Predicated region
    $region142: #{tpu_custom_call.1} parent=1 // pred_check
      _
    $region143: #{tpu_custom_call.1} parent=1 // pred_check_branch
      %290 = sbr.rel (0) target = $region145
    $region144: #{tpu_custom_call.1} parent=1 // pred_region
      %291 = dma.done [#allocation27], 16
    $region145: #{tpu_custom_call.1} parent=1 // pred_fallthru
      _
    // Predicated region
    $region146: #{tpu_custom_call.1} parent=1 // pred_check
      _
    $region147: #{tpu_custom_call.1} parent=1 // pred_check_branch
      %293 = sbr.rel (0) target = $region149
    $region148: #{tpu_custom_call.1} parent=1 // pred_region
      %294 = dma.done [#allocation30], 16
    $region149: #{tpu_custom_call.1} parent=1 // pred_fallthru
      _
    // Predicated region
    $region150: #{tpu_custom_call.1} parent=1 // pred_check
      _
    $region151: #{tpu_custom_call.1} parent=1 // pred_check_branch
      %296 = sbr.rel (0) target = $region153
    $region152: #{tpu_custom_call.1} parent=1 // pred_region
      %297 = dma.done [#allocation30], 16
    $region153: #{tpu_custom_call.1} parent=1 // pred_fallthru
      _
    %v299 = vld [vmem:[#allocation2] sm:$0xff]
    %v300 = vld [vmem:[#allocation2 + $0x8] sm:$0xff]
    %v301 = vld [vmem:[#allocation5] sm:$0xff]
    %v302 = vld [vmem:[#allocation5 + $0x8] sm:$0xff]
    %v303 = vld [vmem:[#allocation5 + $0x10] sm:$0xff]
    %v304 = vld [vmem:[#allocation5 + $0x18] sm:$0xff]
    %v305 = vld [vmem:[#allocation7] sm:$0xff]
    %v306 = vld [vmem:[#allocation14] sm:$0x1]
    %v307 = vld [vmem:[#allocation16] sm:$0x1]
    %v308 = vld [vmem:[#allocation8] sm:$0xff]
    %v309 = vld [vmem:[#allocation8 + $0x8] sm:$0xff]
    %v310 = vld [vmem:[#allocation8 + $0x10] sm:$0xff]
    %v311 = vld [vmem:[#allocation8 + $0x18] sm:$0xff]
    %v312 = vpack.c.bf16 %v300, %v299
    %v313 = vpack.c.bf16 %v309, %v308
    %v314 = vpack.c.bf16 %v311, %v310
    %vm315 = vcmask 261120
    %v317 = vsel %vm315, %v312, 0
    %319 = vmatprep.subr.bf16.mxu0 0
    %320 = vmatpush1.bf16.msra.mxu0 %v313
    %321 = vmatprep.subr.bf16.mxu0 0
    %322 = vmatpush1.bf16.msra.mxu0 %v314
    %323 = vmatprep.subr.bf16.mxu0 0
    %324 = vmatpush1.bf16.msra.mxu0 0
    %325 = vmatprep.subr.bf16.mxu0 0
    %326 = vmatpush1.bf16.msra.mxu0 0
    %327 = vmatprep.subr.bf16.mxu0 0
    %328 = vmatpush1.bf16.msra.mxu0 0
    %329 = vmatprep.subr.bf16.mxu0 0
    %330 = vmatpush1.bf16.msra.mxu0 0
    %331 = vmatprep.subr.bf16.mxu0 0
    %332 = vmatpush1.bf16.msra.mxu0 0
    %333 = vmatprep.subr.bf16.mxu0 0
    %334 = vmatpush1.bf16.msra.mxu0 0
    %335 = vmatprep.subr.bf16.mxu0 0
    %336 = vmatpush1.bf16.msra.mxu0 0
    %337 = vmatprep.subr.bf16.mxu0 0
    %338 = vmatpush1.bf16.msra.mxu0 0
    %339 = vmatprep.subr.bf16.mxu0 0
    %340 = vmatpush1.bf16.msra.mxu0 0
    %341 = vmatprep.subr.bf16.mxu0 0
    %342 = vmatpush1.bf16.msra.mxu0 0
    %343 = vmatprep.subr.bf16.mxu0 0
    %344 = vmatpush1.bf16.msra.mxu0 0
    %345 = vmatprep.subr.bf16.mxu0 0
    %346 = vmatpush1.bf16.msra.mxu0 0
    %347 = vmatprep.subr.bf16.mxu0 0
    %348 = vmatpush1.bf16.msra.mxu0 0
    %349 = vmatprep.subr.bf16.mxu0 0
    %350 = vmatpush1.bf16.msra.mxu0 0
    %351 = vmatprep.mubr.bf16.mxu0 0
    %352 = vmatmul.mubr.bf16.gmra.mrb[0].mxu0 %v317
    %v353 = vpop.f32.mrb[0].mxu0
    %v354 = vadd.f32 0.0, %v353
    %v355 = vpop.f32.mrb[0].mxu0
    %v356 = vpop.f32.mrb[0].mxu0
    %v357 = vadd.f32 0.0, %v356
    %v358 = vpop.f32.mrb[0].mxu0
    %359 = vdwg.mxu0
    %v360 = vld [vmem:[#allocation10] sm:$0xff]
    %v361 = vld [vmem:[#allocation10 + $0x8] sm:$0xff]
    %v362 = vld [vmem:[#allocation10 + $0x10] sm:$0xff]
    %v363 = vld [vmem:[#allocation10 + $0x18] sm:$0xff]
    %v364 = vpack.c.bf16 %v361, %v360
    %v365 = vpack.c.bf16 %v363, %v362
    %366 = vmatprep.subr.bf16.mxu0 0
    %367 = vmatpush1.bf16.msra.mxu0 %v364
    %368 = vmatprep.subr.bf16.mxu0 0
    %369 = vmatpush1.bf16.msra.mxu0 %v365
    %370 = vmatprep.subr.bf16.mxu0 0
    %371 = vmatpush1.bf16.msra.mxu0 0
    %372 = vmatprep.subr.bf16.mxu0 0
    %373 = vmatpush1.bf16.msra.mxu0 0
    %374 = vmatprep.subr.bf16.mxu0 0
    %375 = vmatpush1.bf16.msra.mxu0 0
    %376 = vmatprep.subr.bf16.mxu0 0
    %377 = vmatpush1.bf16.msra.mxu0 0
    %378 = vmatprep.subr.bf16.mxu0 0
    %379 = vmatpush1.bf16.msra.mxu0 0
    %380 = vmatprep.subr.bf16.mxu0 0
    %381 = vmatpush1.bf16.msra.mxu0 0
    %382 = vmatprep.subr.bf16.mxu0 0
    %383 = vmatpush1.bf16.msra.mxu0 0
    %384 = vmatprep.subr.bf16.mxu0 0
    %385 = vmatpush1.bf16.msra.mxu0 0
    %386 = vmatprep.subr.bf16.mxu0 0
    %387 = vmatpush1.bf16.msra.mxu0 0
    %388 = vmatprep.subr.bf16.mxu0 0
    %389 = vmatpush1.bf16.msra.mxu0 0
    %390 = vmatprep.subr.bf16.mxu0 0
    %391 = vmatpush1.bf16.msra.mxu0 0
    %392 = vmatprep.subr.bf16.mxu0 0
    %393 = vmatpush1.bf16.msra.mxu0 0
    %394 = vmatprep.subr.bf16.mxu0 0
    %395 = vmatpush1.bf16.msra.mxu0 0
    %396 = vmatprep.subr.bf16.mxu0 0
    %397 = vmatpush1.bf16.msra.mxu0 0
    %398 = vmatprep.mubr.bf16.mxu0 0
    %399 = vmatmul.mubr.bf16.gmra.mrb[0].mxu0 %v317
    %v400 = vpop.f32.mrb[0].mxu0
    %v401 = vadd.f32 0.0, %v400
    %v402 = vpop.f32.mrb[0].mxu0
    %v403 = vpop.f32.mrb[0].mxu0
    %v404 = vadd.f32 0.0, %v403
    %v405 = vpop.f32.mrb[0].mxu0
    %406 = vdwg.mxu0
    %v407 = vld [vmem:[#allocation11] sm:$0xff]
    %v408 = vld [vmem:[#allocation11 + $0x8] sm:$0xff]
    %v409 = vld [vmem:[#allocation11 + $0x10] sm:$0xff]
    %v410 = vld [vmem:[#allocation11 + $0x18] sm:$0xff]
    %v411 = vpack.c.bf16 %v408, %v407
    %v412 = vpack.c.bf16 %v410, %v409
    %413 = vmatprep.subr.bf16.mxu0 0
    %414 = vmatpush1.bf16.msra.mxu0 %v411
    %415 = vmatprep.subr.bf16.mxu0 0
    %416 = vmatpush1.bf16.msra.mxu0 %v412
    %417 = vmatprep.subr.bf16.mxu0 0
    %418 = vmatpush1.bf16.msra.mxu0 0
    %419 = vmatprep.subr.bf16.mxu0 0
    %420 = vmatpush1.bf16.msra.mxu0 0
    %421 = vmatprep.subr.bf16.mxu0 0
    %422 = vmatpush1.bf16.msra.mxu0 0
    %423 = vmatprep.subr.bf16.mxu0 0
    %424 = vmatpush1.bf16.msra.mxu0 0
    %425 = vmatprep.subr.bf16.mxu0 0
    %426 = vmatpush1.bf16.msra.mxu0 0
    %427 = vmatprep.subr.bf16.mxu0 0
    %428 = vmatpush1.bf16.msra.mxu0 0
    %429 = vmatprep.subr.bf16.mxu0 0
    %430 = vmatpush1.bf16.msra.mxu0 0
    %431 = vmatprep.subr.bf16.mxu0 0
    %432 = vmatpush1.bf16.msra.mxu0 0
    %433 = vmatprep.subr.bf16.mxu0 0
    %434 = vmatpush1.bf16.msra.mxu0 0
    %435 = vmatprep.subr.bf16.mxu0 0
    %436 = vmatpush1.bf16.msra.mxu0 0
    %437 = vmatprep.subr.bf16.mxu0 0
    %438 = vmatpush1.bf16.msra.mxu0 0
    %439 = vmatprep.subr.bf16.mxu0 0
    %440 = vmatpush1.bf16.msra.mxu0 0
    %441 = vmatprep.subr.bf16.mxu0 0
    %442 = vmatpush1.bf16.msra.mxu0 0
    %443 = vmatprep.subr.bf16.mxu0 0
    %444 = vmatpush1.bf16.msra.mxu0 0
    %445 = vmatprep.mubr.bf16.mxu0 0
    %446 = vmatmul.mubr.bf16.gmra.mrb[0].mxu0 %v317
    %v447 = vpop.f32.mrb[0].mxu0
    %v448 = vadd.f32 0.0, %v447
    %v449 = vpop.f32.mrb[0].mxu0
    %v450 = vpop.f32.mrb[0].mxu0
    %v451 = vadd.f32 0.0, %v450
    %v452 = vpop.f32.mrb[0].mxu0
    %453 = vdwg.mxu0
    %v455 = vlaneseq
    %v456 = vshrl.u32 %v455, 7
    %v457 = vsub.s32 0, %v456
    %v458 = vrot.slane %v306, %v457
    %v460 = vadd.f32 %v354, %v458
    %v461 = vadd.f32 %v357, %v458
    %v463 = vlaneseq
    %v464 = vshrl.u32 %v463, 7
    %v465 = vsub.s32 0, %v464
    %v466 = vrot.slane %v307, %v465
    %v468 = vadd.f32 %v354, %v466
    %v469 = vadd.f32 %v357, %v466
    %v470 = vpack.c.bf16 %v460, %v460
    %v471 = vpack.c.bf16 %v461, %v461
    %v472 = vpack.c.bf16 %v401, %v401
    %v473 = vpack.c.bf16 %v404, %v404
    %vm474 = vcmask 64512
    %v476 = vsel %vm474, %v470, 0
    %v479 = vsel %vm474, %v472, 0
    %481 = vmatprep.subr.bf16.mxu0 0
    %482 = vmatpush1.bf16.xpose.msra.mxu0 %v479
    %483 = vmatprep.subr.bf16.mxu0 0
    %484 = vmatpush1.bf16.xpose.msra.mxu0 0
    %485 = vmatprep.subr.bf16.mxu0 0
    %486 = vmatpush1.bf16.xpose.msra.mxu0 0
    %487 = vmatprep.subr.bf16.mxu0 0
    %488 = vmatpush1.bf16.xpose.msra.mxu0 0
    %489 = vmatprep.subr.bf16.mxu0 0
    %490 = vmatpush1.bf16.xpose.msra.mxu0 0
    %491 = vmatprep.subr.bf16.mxu0 0
    %492 = vmatpush1.bf16.xpose.msra.mxu0 0
    %493 = vmatprep.subr.bf16.mxu0 0
    %494 = vmatpush1.bf16.xpose.msra.mxu0 0
    %495 = vmatprep.subr.bf16.mxu0 0
    %496 = vmatpush1.bf16.xpose.msra.mxu0 0
    %497 = vmatprep.subr.bf16.mxu0 0
    %498 = vmatpush1.bf16.xpose.msra.mxu0 0
    %499 = vmatprep.subr.bf16.mxu0 0
    %500 = vmatpush1.bf16.xpose.msra.mxu0 0
    %501 = vmatprep.subr.bf16.mxu0 0
    %502 = vmatpush1.bf16.xpose.msra.mxu0 0
    %503 = vmatprep.subr.bf16.mxu0 0
    %504 = vmatpush1.bf16.xpose.msra.mxu0 0
    %505 = vmatprep.subr.bf16.mxu0 0
    %506 = vmatpush1.bf16.xpose.msra.mxu0 0
    %507 = vmatprep.subr.bf16.mxu0 0
    %508 = vmatpush1.bf16.xpose.msra.mxu0 0
    %509 = vmatprep.subr.bf16.mxu0 0
    %510 = vmatpush1.bf16.xpose.msra.mxu0 0
    %511 = vmatprep.subr.bf16.mxu0 0
    %512 = vmatpush1.bf16.xpose.msra.mxu0 0
    %513 = vmatprep.mubr.bf16.mxu0 0
    %514 = vmatmul.mubr.bf16.gmra.mrb[0].mxu0 %v476
    %v515 = vpop.f32.mrb[0].mxu0
    %v516 = vadd.f32 0.0, %v515
    %v517 = vpop.f32.mrb[0].mxu0
    %v518 = vpop.f32.mrb[0].mxu0
    %v519 = vpop.f32.mrb[0].mxu0
    %520 = vdwg.mxu0
    %v522 = vsel %vm474, %v471, 0
    %v525 = vsel %vm474, %v473, 0
    %527 = vmatprep.subr.bf16.mxu0 0
    %528 = vmatpush1.bf16.xpose.msra.mxu0 %v525
    %529 = vmatprep.subr.bf16.mxu0 0
    %530 = vmatpush1.bf16.xpose.msra.mxu0 0
    %531 = vmatprep.subr.bf16.mxu0 0
    %532 = vmatpush1.bf16.xpose.msra.mxu0 0
    %533 = vmatprep.subr.bf16.mxu0 0
    %534 = vmatpush1.bf16.xpose.msra.mxu0 0
    %535 = vmatprep.subr.bf16.mxu0 0
    %536 = vmatpush1.bf16.xpose.msra.mxu0 0
    %537 = vmatprep.subr.bf16.mxu0 0
    %538 = vmatpush1.bf16.xpose.msra.mxu0 0
    %539 = vmatprep.subr.bf16.mxu0 0
    %540 = vmatpush1.bf16.xpose.msra.mxu0 0
    %541 = vmatprep.subr.bf16.mxu0 0
    %542 = vmatpush1.bf16.xpose.msra.mxu0 0
    %543 = vmatprep.subr.bf16.mxu0 0
    %544 = vmatpush1.bf16.xpose.msra.mxu0 0
    %545 = vmatprep.subr.bf16.mxu0 0
    %546 = vmatpush1.bf16.xpose.msra.mxu0 0
    %547 = vmatprep.subr.bf16.mxu0 0
    %548 = vmatpush1.bf16.xpose.msra.mxu0 0
    %549 = vmatprep.subr.bf16.mxu0 0
    %550 = vmatpush1.bf16.xpose.msra.mxu0 0
    %551 = vmatprep.subr.bf16.mxu0 0
    %552 = vmatpush1.bf16.xpose.msra.mxu0 0
    %553 = vmatprep.subr.bf16.mxu0 0
    %554 = vmatpush1.bf16.xpose.msra.mxu0 0
    %555 = vmatprep.subr.bf16.mxu0 0
    %556 = vmatpush1.bf16.xpose.msra.mxu0 0
    %557 = vmatprep.subr.bf16.mxu0 0
    %558 = vmatpush1.bf16.xpose.msra.mxu0 0
    %559 = vmatprep.mubr.bf16.mxu0 0
    %560 = vmatmul.mubr.bf16.gmra.mrb[0].mxu0 %v522
    %v561 = vpop.f32.mrb[0].mxu0
    %v562 = vadd.f32 0.0, %v561
    %v563 = vpop.f32.mrb[0].mxu0
    %v564 = vpop.f32.mrb[0].mxu0
    %v565 = vpop.f32.mrb[0].mxu0
    %566 = vdwg.mxu0
    %v567 = vpack.c.bf16 %v468, %v468
    %v568 = vpack.c.bf16 %v469, %v469
    %v569 = vpack.c.bf16 %v302, %v301
    %v570 = vpack.c.bf16 %v304, %v303
    %v572 = vsel %vm474, %v567, 0
    %v575 = vsel %vm474, %v569, 0
    %577 = vmatprep.subr.bf16.mxu0 0
    %578 = vmatpush1.bf16.xpose.msra.mxu0 %v575
    %579 = vmatprep.subr.bf16.mxu0 0
    %580 = vmatpush1.bf16.xpose.msra.mxu0 0
    %581 = vmatprep.subr.bf16.mxu0 0
    %582 = vmatpush1.bf16.xpose.msra.mxu0 0
    %583 = vmatprep.subr.bf16.mxu0 0
    %584 = vmatpush1.bf16.xpose.msra.mxu0 0
    %585 = vmatprep.subr.bf16.mxu0 0
    %586 = vmatpush1.bf16.xpose.msra.mxu0 0
    %587 = vmatprep.subr.bf16.mxu0 0
    %588 = vmatpush1.bf16.xpose.msra.mxu0 0
    %589 = vmatprep.subr.bf16.mxu0 0
    %590 = vmatpush1.bf16.xpose.msra.mxu0 0
    %591 = vmatprep.subr.bf16.mxu0 0
    %592 = vmatpush1.bf16.xpose.msra.mxu0 0
    %593 = vmatprep.subr.bf16.mxu0 0
    %594 = vmatpush1.bf16.xpose.msra.mxu0 0
    %595 = vmatprep.subr.bf16.mxu0 0
    %596 = vmatpush1.bf16.xpose.msra.mxu0 0
    %597 = vmatprep.subr.bf16.mxu0 0
    %598 = vmatpush1.bf16.xpose.msra.mxu0 0
    %599 = vmatprep.subr.bf16.mxu0 0
    %600 = vmatpush1.bf16.xpose.msra.mxu0 0
    %601 = vmatprep.subr.bf16.mxu0 0
    %602 = vmatpush1.bf16.xpose.msra.mxu0 0
    %603 = vmatprep.subr.bf16.mxu0 0
    %604 = vmatpush1.bf16.xpose.msra.mxu0 0
    %605 = vmatprep.subr.bf16.mxu0 0
    %606 = vmatpush1.bf16.xpose.msra.mxu0 0
    %607 = vmatprep.subr.bf16.mxu0 0
    %608 = vmatpush1.bf16.xpose.msra.mxu0 0
    %609 = vmatprep.mubr.bf16.mxu0 0
    %610 = vmatmul.mubr.bf16.gmra.mrb[0].mxu0 %v572
    %v611 = vpop.f32.mrb[0].mxu0
    %v612 = vadd.f32 0.0, %v611
    %v613 = vpop.f32.mrb[0].mxu0
    %v614 = vpop.f32.mrb[0].mxu0
    %v615 = vpop.f32.mrb[0].mxu0
    %616 = vdwg.mxu0
    %v618 = vsel %vm474, %v568, 0
    %v621 = vsel %vm474, %v570, 0
    %623 = vmatprep.subr.bf16.mxu0 0
    %624 = vmatpush1.bf16.xpose.msra.mxu0 %v621
    %625 = vmatprep.subr.bf16.mxu0 0
    %626 = vmatpush1.bf16.xpose.msra.mxu0 0
    %627 = vmatprep.subr.bf16.mxu0 0
    %628 = vmatpush1.bf16.xpose.msra.mxu0 0
    %629 = vmatprep.subr.bf16.mxu0 0
    %630 = vmatpush1.bf16.xpose.msra.mxu0 0
    %631 = vmatprep.subr.bf16.mxu0 0
    %632 = vmatpush1.bf16.xpose.msra.mxu0 0
    %633 = vmatprep.subr.bf16.mxu0 0
    %634 = vmatpush1.bf16.xpose.msra.mxu0 0
    %635 = vmatprep.subr.bf16.mxu0 0
    %636 = vmatpush1.bf16.xpose.msra.mxu0 0
    %637 = vmatprep.subr.bf16.mxu0 0
    %638 = vmatpush1.bf16.xpose.msra.mxu0 0
    %639 = vmatprep.subr.bf16.mxu0 0
    %640 = vmatpush1.bf16.xpose.msra.mxu0 0
    %641 = vmatprep.subr.bf16.mxu0 0
    %642 = vmatpush1.bf16.xpose.msra.mxu0 0
    %643 = vmatprep.subr.bf16.mxu0 0
    %644 = vmatpush1.bf16.xpose.msra.mxu0 0
    %645 = vmatprep.subr.bf16.mxu0 0
    %646 = vmatpush1.bf16.xpose.msra.mxu0 0
    %647 = vmatprep.subr.bf16.mxu0 0
    %648 = vmatpush1.bf16.xpose.msra.mxu0 0
    %649 = vmatprep.subr.bf16.mxu0 0
    %650 = vmatpush1.bf16.xpose.msra.mxu0 0
    %651 = vmatprep.subr.bf16.mxu0 0
    %652 = vmatpush1.bf16.xpose.msra.mxu0 0
    %653 = vmatprep.subr.bf16.mxu0 0
    %654 = vmatpush1.bf16.xpose.msra.mxu0 0
    %655 = vmatprep.mubr.bf16.mxu0 0
    %656 = vmatmul.mubr.bf16.gmra.mrb[0].mxu0 %v618
    %v657 = vpop.f32.mrb[0].mxu0
    %v658 = vadd.f32 0.0, %v657
    %v659 = vpop.f32.mrb[0].mxu0
    %v660 = vpop.f32.mrb[0].mxu0
    %v661 = vpop.f32.mrb[0].mxu0
    %662 = vdwg.mxu0
    %664 = vrot.lane.b32.xlu0 %v470, 120
    %v665 = vpop.permute.xlu0 %664
    %667 = vrot.lane.b32.xlu0 %v472, 120
    %v668 = vpop.permute.xlu0 %667
    %v670 = vsel %vm474, %v665, 0
    %v673 = vsel %vm474, %v668, 0
    %675 = vmatprep.subr.bf16.mxu0 0
    %676 = vmatpush1.bf16.xpose.msra.mxu0 %v673
    %677 = vmatprep.subr.bf16.mxu0 0
    %678 = vmatpush1.bf16.xpose.msra.mxu0 0
    %679 = vmatprep.subr.bf16.mxu0 0
    %680 = vmatpush1.bf16.xpose.msra.mxu0 0
    %681 = vmatprep.subr.bf16.mxu0 0
    %682 = vmatpush1.bf16.xpose.msra.mxu0 0
    %683 = vmatprep.subr.bf16.mxu0 0
    %684 = vmatpush1.bf16.xpose.msra.mxu0 0
    %685 = vmatprep.subr.bf16.mxu0 0
    %686 = vmatpush1.bf16.xpose.msra.mxu0 0
    %687 = vmatprep.subr.bf16.mxu0 0
    %688 = vmatpush1.bf16.xpose.msra.mxu0 0
    %689 = vmatprep.subr.bf16.mxu0 0
    %690 = vmatpush1.bf16.xpose.msra.mxu0 0
    %691 = vmatprep.subr.bf16.mxu0 0
    %692 = vmatpush1.bf16.xpose.msra.mxu0 0
    %693 = vmatprep.subr.bf16.mxu0 0
    %694 = vmatpush1.bf16.xpose.msra.mxu0 0
    %695 = vmatprep.subr.bf16.mxu0 0
    %696 = vmatpush1.bf16.xpose.msra.mxu0 0
    %697 = vmatprep.subr.bf16.mxu0 0
    %698 = vmatpush1.bf16.xpose.msra.mxu0 0
    %699 = vmatprep.subr.bf16.mxu0 0
    %700 = vmatpush1.bf16.xpose.msra.mxu0 0
    %701 = vmatprep.subr.bf16.mxu0 0
    %702 = vmatpush1.bf16.xpose.msra.mxu0 0
    %703 = vmatprep.subr.bf16.mxu0 0
    %704 = vmatpush1.bf16.xpose.msra.mxu0 0
    %705 = vmatprep.subr.bf16.mxu0 0
    %706 = vmatpush1.bf16.xpose.msra.mxu0 0
    %707 = vmatprep.mubr.bf16.mxu0 0
    %708 = vmatmul.mubr.bf16.gmra.mrb[0].mxu0 %v670
    %v709 = vpop.f32.mrb[0].mxu0
    %v710 = vadd.f32 0.0, %v709
    %v711 = vpop.f32.mrb[0].mxu0
    %v712 = vpop.f32.mrb[0].mxu0
    %v713 = vpop.f32.mrb[0].mxu0
    %714 = vdwg.mxu0
    %716 = vrot.lane.b32.xlu0 %v471, 120
    %v717 = vpop.permute.xlu0 %716
    %719 = vrot.lane.b32.xlu0 %v473, 120
    %v720 = vpop.permute.xlu0 %719
    %v722 = vsel %vm474, %v717, 0
    %v725 = vsel %vm474, %v720, 0
    %727 = vmatprep.subr.bf16.mxu0 0
    %728 = vmatpush1.bf16.xpose.msra.mxu0 %v725
    %729 = vmatprep.subr.bf16.mxu0 0
    %730 = vmatpush1.bf16.xpose.msra.mxu0 0
    %731 = vmatprep.subr.bf16.mxu0 0
    %732 = vmatpush1.bf16.xpose.msra.mxu0 0
    %733 = vmatprep.subr.bf16.mxu0 0
    %734 = vmatpush1.bf16.xpose.msra.mxu0 0
    %735 = vmatprep.subr.bf16.mxu0 0
    %736 = vmatpush1.bf16.xpose.msra.mxu0 0
    %737 = vmatprep.subr.bf16.mxu0 0
    %738 = vmatpush1.bf16.xpose.msra.mxu0 0
    %739 = vmatprep.subr.bf16.mxu0 0
    %740 = vmatpush1.bf16.xpose.msra.mxu0 0
    %741 = vmatprep.subr.bf16.mxu0 0
    %742 = vmatpush1.bf16.xpose.msra.mxu0 0
    %743 = vmatprep.subr.bf16.mxu0 0
    %744 = vmatpush1.bf16.xpose.msra.mxu0 0
    %745 = vmatprep.subr.bf16.mxu0 0
    %746 = vmatpush1.bf16.xpose.msra.mxu0 0
    %747 = vmatprep.subr.bf16.mxu0 0
    %748 = vmatpush1.bf16.xpose.msra.mxu0 0
    %749 = vmatprep.subr.bf16.mxu0 0
    %750 = vmatpush1.bf16.xpose.msra.mxu0 0
    %751 = vmatprep.subr.bf16.mxu0 0
    %752 = vmatpush1.bf16.xpose.msra.mxu0 0
    %753 = vmatprep.subr.bf16.mxu0 0
    %754 = vmatpush1.bf16.xpose.msra.mxu0 0
    %755 = vmatprep.subr.bf16.mxu0 0
    %756 = vmatpush1.bf16.xpose.msra.mxu0 0
    %757 = vmatprep.subr.bf16.mxu0 0
    %758 = vmatpush1.bf16.xpose.msra.mxu0 0
    %759 = vmatprep.mubr.bf16.mxu0 0
    %760 = vmatmul.mubr.bf16.gmra.mrb[0].mxu0 %v722
    %v761 = vpop.f32.mrb[0].mxu0
    %v762 = vadd.f32 0.0, %v761
    %v763 = vpop.f32.mrb[0].mxu0
    %v764 = vpop.f32.mrb[0].mxu0
    %v765 = vpop.f32.mrb[0].mxu0
    %766 = vdwg.mxu0
    %768 = vrot.lane.b32.xlu0 %v567, 120
    %v769 = vpop.permute.xlu0 %768
    %771 = vrot.lane.b32.xlu0 %v569, 120
    %v772 = vpop.permute.xlu0 %771
    %v774 = vsel %vm474, %v769, 0
    %v777 = vsel %vm474, %v772, 0
    %779 = vmatprep.subr.bf16.mxu0 0
    %780 = vmatpush1.bf16.xpose.msra.mxu0 %v777
    %781 = vmatprep.subr.bf16.mxu0 0
    %782 = vmatpush1.bf16.xpose.msra.mxu0 0
    %783 = vmatprep.subr.bf16.mxu0 0
    %784 = vmatpush1.bf16.xpose.msra.mxu0 0
    %785 = vmatprep.subr.bf16.mxu0 0
    %786 = vmatpush1.bf16.xpose.msra.mxu0 0
    %787 = vmatprep.subr.bf16.mxu0 0
    %788 = vmatpush1.bf16.xpose.msra.mxu0 0
    %789 = vmatprep.subr.bf16.mxu0 0
    %790 = vmatpush1.bf16.xpose.msra.mxu0 0
    %791 = vmatprep.subr.bf16.mxu0 0
    %792 = vmatpush1.bf16.xpose.msra.mxu0 0
    %793 = vmatprep.subr.bf16.mxu0 0
    %794 = vmatpush1.bf16.xpose.msra.mxu0 0
    %795 = vmatprep.subr.bf16.mxu0 0
    %796 = vmatpush1.bf16.xpose.msra.mxu0 0
    %797 = vmatprep.subr.bf16.mxu0 0
    %798 = vmatpush1.bf16.xpose.msra.mxu0 0
    %799 = vmatprep.subr.bf16.mxu0 0
    %800 = vmatpush1.bf16.xpose.msra.mxu0 0
    %801 = vmatprep.subr.bf16.mxu0 0
    %802 = vmatpush1.bf16.xpose.msra.mxu0 0
    %803 = vmatprep.subr.bf16.mxu0 0
    %804 = vmatpush1.bf16.xpose.msra.mxu0 0
    %805 = vmatprep.subr.bf16.mxu0 0
    %806 = vmatpush1.bf16.xpose.msra.mxu0 0
    %807 = vmatprep.subr.bf16.mxu0 0
    %808 = vmatpush1.bf16.xpose.msra.mxu0 0
    %809 = vmatprep.subr.bf16.mxu0 0
    %810 = vmatpush1.bf16.xpose.msra.mxu0 0
    %811 = vmatprep.mubr.bf16.mxu0 0
    %812 = vmatmul.mubr.bf16.gmra.mrb[0].mxu0 %v774
    %v813 = vpop.f32.mrb[0].mxu0
    %v814 = vadd.f32 0.0, %v813
    %v815 = vpop.f32.mrb[0].mxu0
    %v816 = vpop.f32.mrb[0].mxu0
    %v817 = vpop.f32.mrb[0].mxu0
    %818 = vdwg.mxu0
    %820 = vrot.lane.b32.xlu0 %v568, 120
    %v821 = vpop.permute.xlu0 %820
    %823 = vrot.lane.b32.xlu0 %v570, 120
    %v824 = vpop.permute.xlu0 %823
    %v826 = vsel %vm474, %v821, 0
    %v829 = vsel %vm474, %v824, 0
    %831 = vmatprep.subr.bf16.mxu0 0
    %832 = vmatpush1.bf16.xpose.msra.mxu0 %v829
    %833 = vmatprep.subr.bf16.mxu0 0
    %834 = vmatpush1.bf16.xpose.msra.mxu0 0
    %835 = vmatprep.subr.bf16.mxu0 0
    %836 = vmatpush1.bf16.xpose.msra.mxu0 0
    %837 = vmatprep.subr.bf16.mxu0 0
    %838 = vmatpush1.bf16.xpose.msra.mxu0 0
    %839 = vmatprep.subr.bf16.mxu0 0
    %840 = vmatpush1.bf16.xpose.msra.mxu0 0
    %841 = vmatprep.subr.bf16.mxu0 0
    %842 = vmatpush1.bf16.xpose.msra.mxu0 0
    %843 = vmatprep.subr.bf16.mxu0 0
    %844 = vmatpush1.bf16.xpose.msra.mxu0 0
    %845 = vmatprep.subr.bf16.mxu0 0
    %846 = vmatpush1.bf16.xpose.msra.mxu0 0
    %847 = vmatprep.subr.bf16.mxu0 0
    %848 = vmatpush1.bf16.xpose.msra.mxu0 0
    %849 = vmatprep.subr.bf16.mxu0 0
    %850 = vmatpush1.bf16.xpose.msra.mxu0 0
    %851 = vmatprep.subr.bf16.mxu0 0
    %852 = vmatpush1.bf16.xpose.msra.mxu0 0
    %853 = vmatprep.subr.bf16.mxu0 0
    %854 = vmatpush1.bf16.xpose.msra.mxu0 0
    %855 = vmatprep.subr.bf16.mxu0 0
    %856 = vmatpush1.bf16.xpose.msra.mxu0 0
    %857 = vmatprep.subr.bf16.mxu0 0
    %858 = vmatpush1.bf16.xpose.msra.mxu0 0
    %859 = vmatprep.subr.bf16.mxu0 0
    %860 = vmatpush1.bf16.xpose.msra.mxu0 0
    %861 = vmatprep.subr.bf16.mxu0 0
    %862 = vmatpush1.bf16.xpose.msra.mxu0 0
    %863 = vmatprep.mubr.bf16.mxu0 0
    %864 = vmatmul.mubr.bf16.gmra.mrb[0].mxu0 %v826
    %v865 = vpop.f32.mrb[0].mxu0
    %v866 = vadd.f32 0.0, %v865
    %v867 = vpop.f32.mrb[0].mxu0
    %v868 = vpop.f32.mrb[0].mxu0
    %v869 = vpop.f32.mrb[0].mxu0
    %870 = vdwg.mxu0
    %871 = vrot.lane.b32.xlu0 %v470, 112
    %v872 = vpop.permute.xlu0 %871
    %873 = vrot.lane.b32.xlu0 %v472, 112
    %v874 = vpop.permute.xlu0 %873
    %v876 = vsel %vm474, %v872, 0
    %v879 = vsel %vm474, %v874, 0
    %881 = vmatprep.subr.bf16.mxu0 0
    %882 = vmatpush1.bf16.xpose.msra.mxu0 %v879
    %883 = vmatprep.subr.bf16.mxu0 0
    %884 = vmatpush1.bf16.xpose.msra.mxu0 0
    %885 = vmatprep.subr.bf16.mxu0 0
    %886 = vmatpush1.bf16.xpose.msra.mxu0 0
    %887 = vmatprep.subr.bf16.mxu0 0
    %888 = vmatpush1.bf16.xpose.msra.mxu0 0
    %889 = vmatprep.subr.bf16.mxu0 0
    %890 = vmatpush1.bf16.xpose.msra.mxu0 0
    %891 = vmatprep.subr.bf16.mxu0 0
    %892 = vmatpush1.bf16.xpose.msra.mxu0 0
    %893 = vmatprep.subr.bf16.mxu0 0
    %894 = vmatpush1.bf16.xpose.msra.mxu0 0
    %895 = vmatprep.subr.bf16.mxu0 0
    %896 = vmatpush1.bf16.xpose.msra.mxu0 0
    %897 = vmatprep.subr.bf16.mxu0 0
    %898 = vmatpush1.bf16.xpose.msra.mxu0 0
    %899 = vmatprep.subr.bf16.mxu0 0
    %900 = vmatpush1.bf16.xpose.msra.mxu0 0
    %901 = vmatprep.subr.bf16.mxu0 0
    %902 = vmatpush1.bf16.xpose.msra.mxu0 0
    %903 = vmatprep.subr.bf16.mxu0 0
    %904 = vmatpush1.bf16.xpose.msra.mxu0 0
    %905 = vmatprep.subr.bf16.mxu0 0
    %906 = vmatpush1.bf16.xpose.msra.mxu0 0
    %907 = vmatprep.subr.bf16.mxu0 0
    %908 = vmatpush1.bf16.xpose.msra.mxu0 0
    %909 = vmatprep.subr.bf16.mxu0 0
    %910 = vmatpush1.bf16.xpose.msra.mxu0 0
    %911 = vmatprep.subr.bf16.mxu0 0
    %912 = vmatpush1.bf16.xpose.msra.mxu0 0
    %913 = vmatprep.mubr.bf16.mxu0 0
    %914 = vmatmul.mubr.bf16.gmra.mrb[0].mxu0 %v876
    %v915 = vpop.f32.mrb[0].mxu0
    %v916 = vadd.f32 0.0, %v915
    %v917 = vpop.f32.mrb[0].mxu0
    %v918 = vpop.f32.mrb[0].mxu0
    %v919 = vpop.f32.mrb[0].mxu0
    %920 = vdwg.mxu0
    %921 = vrot.lane.b32.xlu0 %v471, 112
    %v922 = vpop.permute.xlu0 %921
    %923 = vrot.lane.b32.xlu0 %v473, 112
    %v924 = vpop.permute.xlu0 %923
    %v926 = vsel %vm474, %v922, 0
    %v929 = vsel %vm474, %v924, 0
    %931 = vmatprep.subr.bf16.mxu0 0
    %932 = vmatpush1.bf16.xpose.msra.mxu0 %v929
    %933 = vmatprep.subr.bf16.mxu0 0
    %934 = vmatpush1.bf16.xpose.msra.mxu0 0
    %935 = vmatprep.subr.bf16.mxu0 0
    %936 = vmatpush1.bf16.xpose.msra.mxu0 0
    %937 = vmatprep.subr.bf16.mxu0 0
    %938 = vmatpush1.bf16.xpose.msra.mxu0 0
    %939 = vmatprep.subr.bf16.mxu0 0
    %940 = vmatpush1.bf16.xpose.msra.mxu0 0
    %941 = vmatprep.subr.bf16.mxu0 0
    %942 = vmatpush1.bf16.xpose.msra.mxu0 0
    %943 = vmatprep.subr.bf16.mxu0 0
    %944 = vmatpush1.bf16.xpose.msra.mxu0 0
    %945 = vmatprep.subr.bf16.mxu0 0
    %946 = vmatpush1.bf16.xpose.msra.mxu0 0
    %947 = vmatprep.subr.bf16.mxu0 0
    %948 = vmatpush1.bf16.xpose.msra.mxu0 0
    %949 = vmatprep.subr.bf16.mxu0 0
    %950 = vmatpush1.bf16.xpose.msra.mxu0 0
    %951 = vmatprep.subr.bf16.mxu0 0
    %952 = vmatpush1.bf16.xpose.msra.mxu0 0
    %953 = vmatprep.subr.bf16.mxu0 0
    %954 = vmatpush1.bf16.xpose.msra.mxu0 0
    %955 = vmatprep.subr.bf16.mxu0 0
    %956 = vmatpush1.bf16.xpose.msra.mxu0 0
    %957 = vmatprep.subr.bf16.mxu0 0
    %958 = vmatpush1.bf16.xpose.msra.mxu0 0
    %959 = vmatprep.subr.bf16.mxu0 0
    %960 = vmatpush1.bf16.xpose.msra.mxu0 0
    %961 = vmatprep.subr.bf16.mxu0 0
    %962 = vmatpush1.bf16.xpose.msra.mxu0 0
    %963 = vmatprep.mubr.bf16.mxu0 0
    %964 = vmatmul.mubr.bf16.gmra.mrb[0].mxu0 %v926
    %v965 = vpop.f32.mrb[0].mxu0
    %v966 = vadd.f32 0.0, %v965
    %v967 = vpop.f32.mrb[0].mxu0
    %v968 = vpop.f32.mrb[0].mxu0
    %v969 = vpop.f32.mrb[0].mxu0
    %970 = vdwg.mxu0
    %971 = vrot.lane.b32.xlu0 %v567, 112
    %v972 = vpop.permute.xlu0 %971
    %973 = vrot.lane.b32.xlu0 %v569, 112
    %v974 = vpop.permute.xlu0 %973
    %v976 = vsel %vm474, %v972, 0
    %v979 = vsel %vm474, %v974, 0
    %981 = vmatprep.subr.bf16.mxu0 0
    %982 = vmatpush1.bf16.xpose.msra.mxu0 %v979
    %983 = vmatprep.subr.bf16.mxu0 0
    %984 = vmatpush1.bf16.xpose.msra.mxu0 0
    %985 = vmatprep.subr.bf16.mxu0 0
    %986 = vmatpush1.bf16.xpose.msra.mxu0 0
    %987 = vmatprep.subr.bf16.mxu0 0
    %988 = vmatpush1.bf16.xpose.msra.mxu0 0
    %989 = vmatprep.subr.bf16.mxu0 0
    %990 = vmatpush1.bf16.xpose.msra.mxu0 0
    %991 = vmatprep.subr.bf16.mxu0 0
    %992 = vmatpush1.bf16.xpose.msra.mxu0 0
    %993 = vmatprep.subr.bf16.mxu0 0
    %994 = vmatpush1.bf16.xpose.msra.mxu0 0
    %995 = vmatprep.subr.bf16.mxu0 0
    %996 = vmatpush1.bf16.xpose.msra.mxu0 0
    %997 = vmatprep.subr.bf16.mxu0 0
    %998 = vmatpush1.bf16.xpose.msra.mxu0 0
    %999 = vmatprep.subr.bf16.mxu0 0
    %1000 = vmatpush1.bf16.xpose.msra.mxu0 0
    %1001 = vmatprep.subr.bf16.mxu0 0
    %1002 = vmatpush1.bf16.xpose.msra.mxu0 0
    %1003 = vmatprep.subr.bf16.mxu0 0
    %1004 = vmatpush1.bf16.xpose.msra.mxu0 0
    %1005 = vmatprep.subr.bf16.mxu0 0
    %1006 = vmatpush1.bf16.xpose.msra.mxu0 0
    %1007 = vmatprep.subr.bf16.mxu0 0
    %1008 = vmatpush1.bf16.xpose.msra.mxu0 0
    %1009 = vmatprep.subr.bf16.mxu0 0
    %1010 = vmatpush1.bf16.xpose.msra.mxu0 0
    %1011 = vmatprep.subr.bf16.mxu0 0
    %1012 = vmatpush1.bf16.xpose.msra.mxu0 0
    %1013 = vmatprep.mubr.bf16.mxu0 0
    %1014 = vmatmul.mubr.bf16.gmra.mrb[0].mxu0 %v976
    %v1015 = vpop.f32.mrb[0].mxu0
    %v1016 = vadd.f32 0.0, %v1015
    %v1017 = vpop.f32.mrb[0].mxu0
    %v1018 = vpop.f32.mrb[0].mxu0
    %v1019 = vpop.f32.mrb[0].mxu0
    %1020 = vdwg.mxu0
    %1021 = vrot.lane.b32.xlu0 %v568, 112
    %v1022 = vpop.permute.xlu0 %1021
    %1023 = vrot.lane.b32.xlu0 %v570, 112
    %v1024 = vpop.permute.xlu0 %1023
    %v1026 = vsel %vm474, %v1022, 0
    %v1029 = vsel %vm474, %v1024, 0
    %1031 = vmatprep.subr.bf16.mxu0 0
    %1032 = vmatpush1.bf16.xpose.msra.mxu0 %v1029
    %1033 = vmatprep.subr.bf16.mxu0 0
    %1034 = vmatpush1.bf16.xpose.msra.mxu0 0
    %1035 = vmatprep.subr.bf16.mxu0 0
    %1036 = vmatpush1.bf16.xpose.msra.mxu0 0
    %1037 = vmatprep.subr.bf16.mxu0 0
    %1038 = vmatpush1.bf16.xpose.msra.mxu0 0
    %1039 = vmatprep.subr.bf16.mxu0 0
    %1040 = vmatpush1.bf16.xpose.msra.mxu0 0
    %1041 = vmatprep.subr.bf16.mxu0 0
    %1042 = vmatpush1.bf16.xpose.msra.mxu0 0
    %1043 = vmatprep.subr.bf16.mxu0 0
    %1044 = vmatpush1.bf16.xpose.msra.mxu0 0
    %1045 = vmatprep.subr.bf16.mxu0 0
    %1046 = vmatpush1.bf16.xpose.msra.mxu0 0
    %1047 = vmatprep.subr.bf16.mxu0 0
    %1048 = vmatpush1.bf16.xpose.msra.mxu0 0
    %1049 = vmatprep.subr.bf16.mxu0 0
    %1050 = vmatpush1.bf16.xpose.msra.mxu0 0
    %1051 = vmatprep.subr.bf16.mxu0 0
    %1052 = vmatpush1.bf16.xpose.msra.mxu0 0
    %1053 = vmatprep.subr.bf16.mxu0 0
    %1054 = vmatpush1.bf16.xpose.msra.mxu0 0
    %1055 = vmatprep.subr.bf16.mxu0 0
    %1056 = vmatpush1.bf16.xpose.msra.mxu0 0
    %1057 = vmatprep.subr.bf16.mxu0 0
    %1058 = vmatpush1.bf16.xpose.msra.mxu0 0
    %1059 = vmatprep.subr.bf16.mxu0 0
    %1060 = vmatpush1.bf16.xpose.msra.mxu0 0
    %1061 = vmatprep.subr.bf16.mxu0 0
    %1062 = vmatpush1.bf16.xpose.msra.mxu0 0
    %1063 = vmatprep.mubr.bf16.mxu0 0
    %1064 = vmatmul.mubr.bf16.gmra.mrb[0].mxu0 %v1026
    %v1065 = vpop.f32.mrb[0].mxu0
    %v1066 = vadd.f32 0.0, %v1065
    %v1067 = vpop.f32.mrb[0].mxu0
    %v1068 = vpop.f32.mrb[0].mxu0
    %v1069 = vpop.f32.mrb[0].mxu0
    %1070 = vdwg.mxu0
    %1071 = vrot.lane.b32.xlu0 %v470, 104
    %v1072 = vpop.permute.xlu0 %1071
    %1073 = vrot.lane.b32.xlu0 %v472, 104
    %v1074 = vpop.permute.xlu0 %1073
    %v1076 = vsel %vm474, %v1072, 0
    %v1079 = vsel %vm474, %v1074, 0
    %1081 = vmatprep.subr.bf16.mxu0 0
    %1082 = vmatpush1.bf16.xpose.msra.mxu0 %v1079
    %1083 = vmatprep.subr.bf16.mxu0 0
    %1084 = vmatpush1.bf16.xpose.msra.mxu0 0
    %1085 = vmatprep.subr.bf16.mxu0 0
    %1086 = vmatpush1.bf16.xpose.msra.mxu0 0
    %1087 = vmatprep.subr.bf16.mxu0 0
    %1088 = vmatpush1.bf16.xpose.msra.mxu0 0
    %1089 = vmatprep.subr.bf16.mxu0 0
    %1090 = vmatpush1.bf16.xpose.msra.mxu0 0
    %1091 = vmatprep.subr.bf16.mxu0 0
    %1092 = vmatpush1.bf16.xpose.msra.mxu0 0
    %1093 = vmatprep.subr.bf16.mxu0 0
    %1094 = vmatpush1.bf16.xpose.msra.mxu0 0
    %1095 = vmatprep.subr.bf16.mxu0 0
    %1096 = vmatpush1.bf16.xpose.msra.mxu0 0
    %1097 = vmatprep.subr.bf16.mxu0 0
    %1098 = vmatpush1.bf16.xpose.msra.mxu0 0
    %1099 = vmatprep.subr.bf16.mxu0 0
    %1100 = vmatpush1.bf16.xpose.msra.mxu0 0
    %1101 = vmatprep.subr.bf16.mxu0 0
    %1102 = vmatpush1.bf16.xpose.msra.mxu0 0
    %1103 = vmatprep.subr.bf16.mxu0 0
    %1104 = vmatpush1.bf16.xpose.msra.mxu0 0
    %1105 = vmatprep.subr.bf16.mxu0 0
    %1106 = vmatpush1.bf16.xpose.msra.mxu0 0
    %1107 = vmatprep.subr.bf16.mxu0 0
    %1108 = vmatpush1.bf16.xpose.msra.mxu0 0
    %1109 = vmatprep.subr.bf16.mxu0 0
    %1110 = vmatpush1.bf16.xpose.msra.mxu0 0
    %1111 = vmatprep.subr.bf16.mxu0 0
    %1112 = vmatpush1.bf16.xpose.msra.mxu0 0
    %1113 = vmatprep.mubr.bf16.mxu0 0
    %1114 = vmatmul.mubr.bf16.gmra.mrb[0].mxu0 %v1076
    %v1115 = vpop.f32.mrb[0].mxu0
    %v1116 = vadd.f32 0.0, %v1115
    %v1117 = vpop.f32.mrb[0].mxu0
    %v1118 = vpop.f32.mrb[0].mxu0
    %v1119 = vpop.f32.mrb[0].mxu0
    %1120 = vdwg.mxu0
    %1121 = vrot.lane.b32.xlu0 %v471, 104
    %v1122 = vpop.permute.xlu0 %1121
    %1123 = vrot.lane.b32.xlu0 %v473, 104
    %v1124 = vpop.permute.xlu0 %1123
    %v1126 = vsel %vm474, %v1122, 0
    %v1129 = vsel %vm474, %v1124, 0
    %1131 = vmatprep.subr.bf16.mxu0 0
    %1132 = vmatpush1.bf16.xpose.msra.mxu0 %v1129
    %1133 = vmatprep.subr.bf16.mxu0 0
    %1134 = vmatpush1.bf16.xpose.msra.mxu0 0
    %1135 = vmatprep.subr.bf16.mxu0 0
    %1136 = vmatpush1.bf16.xpose.msra.mxu0 0
    %1137 = vmatprep.subr.bf16.mxu0 0
    %1138 = vmatpush1.bf16.xpose.msra.mxu0 0
    %1139 = vmatprep.subr.bf16.mxu0 0
    %1140 = vmatpush1.bf16.xpose.msra.mxu0 0
    %1141 = vmatprep.subr.bf16.mxu0 0
    %1142 = vmatpush1.bf16.xpose.msra.mxu0 0
    %1143 = vmatprep.subr.bf16.mxu0 0
    %1144 = vmatpush1.bf16.xpose.msra.mxu0 0
    %1145 = vmatprep.subr.bf16.mxu0 0
    %1146 = vmatpush1.bf16.xpose.msra.mxu0 0
    %1147 = vmatprep.subr.bf16.mxu0 0
    %1148 = vmatpush1.bf16.xpose.msra.mxu0 0
    %1149 = vmatprep.subr.bf16.mxu0 0
    %1150 = vmatpush1.bf16.xpose.msra.mxu0 0
    %1151 = vmatprep.subr.bf16.mxu0 0
    %1152 = vmatpush1.bf16.xpose.msra.mxu0 0
    %1153 = vmatprep.subr.bf16.mxu0 0
    %1154 = vmatpush1.bf16.xpose.msra.mxu0 0
    %1155 = vmatprep.subr.bf16.mxu0 0
    %1156 = vmatpush1.bf16.xpose.msra.mxu0 0
    %1157 = vmatprep.subr.bf16.mxu0 0
    %1158 = vmatpush1.bf16.xpose.msra.mxu0 0
    %1159 = vmatprep.subr.bf16.mxu0 0
    %1160 = vmatpush1.bf16.xpose.msra.mxu0 0
    %1161 = vmatprep.subr.bf16.mxu0 0
    %1162 = vmatpush1.bf16.xpose.msra.mxu0 0
    %1163 = vmatprep.mubr.bf16.mxu0 0
    %1164 = vmatmul.mubr.bf16.gmra.mrb[0].mxu0 %v1126
    %v1165 = vpop.f32.mrb[0].mxu0
    %v1166 = vadd.f32 0.0, %v1165
    %v1167 = vpop.f32.mrb[0].mxu0
    %v1168 = vpop.f32.mrb[0].mxu0
    %v1169 = vpop.f32.mrb[0].mxu0
    %1170 = vdwg.mxu0
    %1171 = vrot.lane.b32.xlu0 %v567, 104
    %v1172 = vpop.permute.xlu0 %1171
    %1173 = vrot.lane.b32.xlu0 %v569, 104
    %v1174 = vpop.permute.xlu0 %1173
    %v1176 = vsel %vm474, %v1172, 0
    %v1179 = vsel %vm474, %v1174, 0
    %1181 = vmatprep.subr.bf16.mxu0 0
    %1182 = vmatpush1.bf16.xpose.msra.mxu0 %v1179
    %1183 = vmatprep.subr.bf16.mxu0 0
    %1184 = vmatpush1.bf16.xpose.msra.mxu0 0
    %1185 = vmatprep.subr.bf16.mxu0 0
    %1186 = vmatpush1.bf16.xpose.msra.mxu0 0
    %1187 = vmatprep.subr.bf16.mxu0 0
    %1188 = vmatpush1.bf16.xpose.msra.mxu0 0
    %1189 = vmatprep.subr.bf16.mxu0 0
    %1190 = vmatpush1.bf16.xpose.msra.mxu0 0
    %1191 = vmatprep.subr.bf16.mxu0 0
    %1192 = vmatpush1.bf16.xpose.msra.mxu0 0
    %1193 = vmatprep.subr.bf16.mxu0 0
    %1194 = vmatpush1.bf16.xpose.msra.mxu0 0
    %1195 = vmatprep.subr.bf16.mxu0 0
    %1196 = vmatpush1.bf16.xpose.msra.mxu0 0
    %1197 = vmatprep.subr.bf16.mxu0 0
    %1198 = vmatpush1.bf16.xpose.msra.mxu0 0
    %1199 = vmatprep.subr.bf16.mxu0 0
    %1200 = vmatpush1.bf16.xpose.msra.mxu0 0
    %1201 = vmatprep.subr.bf16.mxu0 0
    %1202 = vmatpush1.bf16.xpose.msra.mxu0 0
    %1203 = vmatprep.subr.bf16.mxu0 0
    %1204 = vmatpush1.bf16.xpose.msra.mxu0 0
    %1205 = vmatprep.subr.bf16.mxu0 0
    %1206 = vmatpush1.bf16.xpose.msra.mxu0 0
    %1207 = vmatprep.subr.bf16.mxu0 0
    %1208 = vmatpush1.bf16.xpose.msra.mxu0 0
    %1209 = vmatprep.subr.bf16.mxu0 0
    %1210 = vmatpush1.bf16.xpose.msra.mxu0 0
    %1211 = vmatprep.subr.bf16.mxu0 0
    %1212 = vmatpush1.bf16.xpose.msra.mxu0 0
    %1213 = vmatprep.mubr.bf16.mxu0 0
    %1214 = vmatmul.mubr.bf16.gmra.mrb[0].mxu0 %v1176
    %v1215 = vpop.f32.mrb[0].mxu0
    %v1216 = vadd.f32 0.0, %v1215
    %v1217 = vpop.f32.mrb[0].mxu0
    %v1218 = vpop.f32.mrb[0].mxu0
    %v1219 = vpop.f32.mrb[0].mxu0
    %1220 = vdwg.mxu0
    %1221 = vrot.lane.b32.xlu0 %v568, 104
    %v1222 = vpop.permute.xlu0 %1221
    %1223 = vrot.lane.b32.xlu0 %v570, 104
    %v1224 = vpop.permute.xlu0 %1223
    %v1226 = vsel %vm474, %v1222, 0
    %v1229 = vsel %vm474, %v1224, 0
    %1231 = vmatprep.subr.bf16.mxu0 0
    %1232 = vmatpush1.bf16.xpose.msra.mxu0 %v1229
    %1233 = vmatprep.subr.bf16.mxu0 0
    %1234 = vmatpush1.bf16.xpose.msra.mxu0 0
    %1235 = vmatprep.subr.bf16.mxu0 0
    %1236 = vmatpush1.bf16.xpose.msra.mxu0 0
    %1237 = vmatprep.subr.bf16.mxu0 0
    %1238 = vmatpush1.bf16.xpose.msra.mxu0 0
    %1239 = vmatprep.subr.bf16.mxu0 0
    %1240 = vmatpush1.bf16.xpose.msra.mxu0 0
    %1241 = vmatprep.subr.bf16.mxu0 0
    %1242 = vmatpush1.bf16.xpose.msra.mxu0 0
    %1243 = vmatprep.subr.bf16.mxu0 0
    %1244 = vmatpush1.bf16.xpose.msra.mxu0 0
    %1245 = vmatprep.subr.bf16.mxu0 0
    %1246 = vmatpush1.bf16.xpose.msra.mxu0 0
    %1247 = vmatprep.subr.bf16.mxu0 0
    %1248 = vmatpush1.bf16.xpose.msra.mxu0 0
    %1249 = vmatprep.subr.bf16.mxu0 0
    %1250 = vmatpush1.bf16.xpose.msra.mxu0 0
    %1251 = vmatprep.subr.bf16.mxu0 0
    %1252 = vmatpush1.bf16.xpose.msra.mxu0 0
    %1253 = vmatprep.subr.bf16.mxu0 0
    %1254 = vmatpush1.bf16.xpose.msra.mxu0 0
    %1255 = vmatprep.subr.bf16.mxu0 0
    %1256 = vmatpush1.bf16.xpose.msra.mxu0 0
    %1257 = vmatprep.subr.bf16.mxu0 0
    %1258 = vmatpush1.bf16.xpose.msra.mxu0 0
    %1259 = vmatprep.subr.bf16.mxu0 0
    %1260 = vmatpush1.bf16.xpose.msra.mxu0 0
    %1261 = vmatprep.subr.bf16.mxu0 0
    %1262 = vmatpush1.bf16.xpose.msra.mxu0 0
    %1263 = vmatprep.mubr.bf16.mxu0 0
    %1264 = vmatmul.mubr.bf16.gmra.mrb[0].mxu0 %v1226
    %v1265 = vpop.f32.mrb[0].mxu0
    %v1266 = vadd.f32 0.0, %v1265
    %v1267 = vpop.f32.mrb[0].mxu0
    %v1268 = vpop.f32.mrb[0].mxu0
    %v1269 = vpop.f32.mrb[0].mxu0
    %1270 = vdwg.mxu0
    %1273 = vrot.lane.b32.xlu0 %v448, 120
    %v1274 = vpop.permute.xlu0 %1273
    %1275 = vrot.lane.b32.xlu0 %v451, 120
    %v1276 = vpop.permute.xlu0 %1275
    %1279 = vrot.lane.b32.xlu0 %v448, 112
    %v1280 = vpop.permute.xlu0 %1279
    %1281 = vrot.lane.b32.xlu0 %v451, 112
    %v1282 = vpop.permute.xlu0 %1281
    %1285 = vrot.lane.b32.xlu0 %v448, 104
    %v1286 = vpop.permute.xlu0 %1285
    %1287 = vrot.lane.b32.xlu0 %v451, 104
    %v1288 = vpop.permute.xlu0 %1287
    %1299 = vrot.lane.b32.xlu0 %v612, 1
    %v1300 = vpop.permute.xlu0 %1299
    %1301 = vrot.lane.b32.xlu0 %v658, 1
    %v1302 = vpop.permute.xlu0 %1301
    %1303 = vrot.lane.b32.xlu0 %v814, 1
    %v1304 = vpop.permute.xlu0 %1303
    %1305 = vrot.lane.b32.xlu0 %v866, 1
    %v1306 = vpop.permute.xlu0 %1305
    %1307 = vrot.lane.b32.xlu0 %v1016, 1
    %v1308 = vpop.permute.xlu0 %1307
    %1309 = vrot.lane.b32.xlu0 %v1066, 1
    %v1310 = vpop.permute.xlu0 %1309
    %1311 = vrot.lane.b32.xlu0 %v1216, 1
    %v1312 = vpop.permute.xlu0 %1311
    %1313 = vrot.lane.b32.xlu0 %v1266, 1
    %v1314 = vpop.permute.xlu0 %1313
    %1323 = vrot.lane.b32.xlu0 %v612, 2
    %v1324 = vpop.permute.xlu0 %1323
    %1325 = vrot.lane.b32.xlu0 %v658, 2
    %v1326 = vpop.permute.xlu0 %1325
    %1327 = vrot.lane.b32.xlu0 %v814, 2
    %v1328 = vpop.permute.xlu0 %1327
    %1329 = vrot.lane.b32.xlu0 %v866, 2
    %v1330 = vpop.permute.xlu0 %1329
    %1331 = vrot.lane.b32.xlu0 %v1016, 2
    %v1332 = vpop.permute.xlu0 %1331
    %1333 = vrot.lane.b32.xlu0 %v1066, 2
    %v1334 = vpop.permute.xlu0 %1333
    %1335 = vrot.lane.b32.xlu0 %v1216, 2
    %v1336 = vpop.permute.xlu0 %1335
    %1337 = vrot.lane.b32.xlu0 %v1266, 2
    %v1338 = vpop.permute.xlu0 %1337
    %1347 = vrot.lane.b32.xlu0 %v612, 3
    %v1348 = vpop.permute.xlu0 %1347
    %1349 = vrot.lane.b32.xlu0 %v658, 3
    %v1350 = vpop.permute.xlu0 %1349
    %1351 = vrot.lane.b32.xlu0 %v814, 3
    %v1352 = vpop.permute.xlu0 %1351
    %1353 = vrot.lane.b32.xlu0 %v866, 3
    %v1354 = vpop.permute.xlu0 %1353
    %1355 = vrot.lane.b32.xlu0 %v1016, 3
    %v1356 = vpop.permute.xlu0 %1355
    %1357 = vrot.lane.b32.xlu0 %v1066, 3
    %v1358 = vpop.permute.xlu0 %1357
    %1359 = vrot.lane.b32.xlu0 %v1216, 3
    %v1360 = vpop.permute.xlu0 %1359
    %1361 = vrot.lane.b32.xlu0 %v1266, 3
    %v1362 = vpop.permute.xlu0 %1361
    %1371 = vrot.lane.b32.xlu0 %v612, 4
    %v1372 = vpop.permute.xlu0 %1371
    %1373 = vrot.lane.b32.xlu0 %v658, 4
    %v1374 = vpop.permute.xlu0 %1373
    %1375 = vrot.lane.b32.xlu0 %v814, 4
    %v1376 = vpop.permute.xlu0 %1375
    %1377 = vrot.lane.b32.xlu0 %v866, 4
    %v1378 = vpop.permute.xlu0 %1377
    %1379 = vrot.lane.b32.xlu0 %v1016, 4
    %v1380 = vpop.permute.xlu0 %1379
    %1381 = vrot.lane.b32.xlu0 %v1066, 4
    %v1382 = vpop.permute.xlu0 %1381
    %1383 = vrot.lane.b32.xlu0 %v1216, 4
    %v1384 = vpop.permute.xlu0 %1383
    %1385 = vrot.lane.b32.xlu0 %v1266, 4
    %v1386 = vpop.permute.xlu0 %1385
    %1395 = vrot.lane.b32.xlu0 %v612, 5
    %v1396 = vpop.permute.xlu0 %1395
    %1397 = vrot.lane.b32.xlu0 %v658, 5
    %v1398 = vpop.permute.xlu0 %1397
    %1399 = vrot.lane.b32.xlu0 %v814, 5
    %v1400 = vpop.permute.xlu0 %1399
    %1401 = vrot.lane.b32.xlu0 %v866, 5
    %v1402 = vpop.permute.xlu0 %1401
    %1403 = vrot.lane.b32.xlu0 %v1016, 5
    %v1404 = vpop.permute.xlu0 %1403
    %1405 = vrot.lane.b32.xlu0 %v1066, 5
    %v1406 = vpop.permute.xlu0 %1405
    %1407 = vrot.lane.b32.xlu0 %v1216, 5
    %v1408 = vpop.permute.xlu0 %1407
    %1409 = vrot.lane.b32.xlu0 %v1266, 5
    %v1410 = vpop.permute.xlu0 %1409
    %1419 = vrot.lane.b32.xlu0 %v612, 6
    %v1420 = vpop.permute.xlu0 %1419
    %1421 = vrot.lane.b32.xlu0 %v658, 6
    %v1422 = vpop.permute.xlu0 %1421
    %1423 = vrot.lane.b32.xlu0 %v814, 6
    %v1424 = vpop.permute.xlu0 %1423
    %1425 = vrot.lane.b32.xlu0 %v866, 6
    %v1426 = vpop.permute.xlu0 %1425
    %1427 = vrot.lane.b32.xlu0 %v1016, 6
    %v1428 = vpop.permute.xlu0 %1427
    %1429 = vrot.lane.b32.xlu0 %v1066, 6
    %v1430 = vpop.permute.xlu0 %1429
    %1431 = vrot.lane.b32.xlu0 %v1216, 6
    %v1432 = vpop.permute.xlu0 %1431
    %1433 = vrot.lane.b32.xlu0 %v1266, 6
    %v1434 = vpop.permute.xlu0 %1433
    %1443 = vrot.lane.b32.xlu0 %v612, 7
    %v1444 = vpop.permute.xlu0 %1443
    %1445 = vrot.lane.b32.xlu0 %v658, 7
    %v1446 = vpop.permute.xlu0 %1445
    %1447 = vrot.lane.b32.xlu0 %v814, 7
    %v1448 = vpop.permute.xlu0 %1447
    %1449 = vrot.lane.b32.xlu0 %v866, 7
    %v1450 = vpop.permute.xlu0 %1449
    %1451 = vrot.lane.b32.xlu0 %v1016, 7
    %v1452 = vpop.permute.xlu0 %1451
    %1453 = vrot.lane.b32.xlu0 %v1066, 7
    %v1454 = vpop.permute.xlu0 %1453
    %1455 = vrot.lane.b32.xlu0 %v1216, 7
    %v1456 = vpop.permute.xlu0 %1455
    %1457 = vrot.lane.b32.xlu0 %v1266, 7
    %v1458 = vpop.permute.xlu0 %1457
    %vm1467 = vcmask 1040384
    %v1468 = vsel %vm1467, %v612, %v1300
    %v1469 = vsel %vm1467, %v658, %v1302
    %v1470 = vsel %vm1467, %v814, %v1304
    %v1471 = vsel %vm1467, %v866, %v1306
    %v1472 = vsel %vm1467, %v1016, %v1308
    %v1473 = vsel %vm1467, %v1066, %v1310
    %v1474 = vsel %vm1467, %v1216, %v1312
    %v1475 = vsel %vm1467, %v1266, %v1314
    %vm1476 = vcmask 1041408
    %v1477 = vsel %vm1476, %v1468, %v1324
    %v1478 = vsel %vm1476, %v1469, %v1326
    %v1479 = vsel %vm1476, %v1470, %v1328
    %v1480 = vsel %vm1476, %v1471, %v1330
    %v1481 = vsel %vm1476, %v1472, %v1332
    %v1482 = vsel %vm1476, %v1473, %v1334
    %v1483 = vsel %vm1476, %v1474, %v1336
    %v1484 = vsel %vm1476, %v1475, %v1338
    %vm1485 = vcmask 1042432
    %v1486 = vsel %vm1485, %v1477, %v1348
    %v1487 = vsel %vm1485, %v1478, %v1350
    %v1488 = vsel %vm1485, %v1479, %v1352
    %v1489 = vsel %vm1485, %v1480, %v1354
    %v1490 = vsel %vm1485, %v1481, %v1356
    %v1491 = vsel %vm1485, %v1482, %v1358
    %v1492 = vsel %vm1485, %v1483, %v1360
    %v1493 = vsel %vm1485, %v1484, %v1362
    %vm1494 = vcmask 1043456
    %v1495 = vsel %vm1494, %v1486, %v1372
    %v1496 = vsel %vm1494, %v1487, %v1374
    %v1497 = vsel %vm1494, %v1488, %v1376
    %v1498 = vsel %vm1494, %v1489, %v1378
    %v1499 = vsel %vm1494, %v1490, %v1380
    %v1500 = vsel %vm1494, %v1491, %v1382
    %v1501 = vsel %vm1494, %v1492, %v1384
    %v1502 = vsel %vm1494, %v1493, %v1386
    %vm1503 = vcmask 1044480
    %v1504 = vsel %vm1503, %v1495, %v1396
    %v1505 = vsel %vm1503, %v1496, %v1398
    %v1506 = vsel %vm1503, %v1497, %v1400
    %v1507 = vsel %vm1503, %v1498, %v1402
    %v1508 = vsel %vm1503, %v1499, %v1404
    %v1509 = vsel %vm1503, %v1500, %v1406
    %v1510 = vsel %vm1503, %v1501, %v1408
    %v1511 = vsel %vm1503, %v1502, %v1410
    %vm1512 = vcmask 1045504
    %v1513 = vsel %vm1512, %v1504, %v1420
    %v1514 = vsel %vm1512, %v1505, %v1422
    %v1515 = vsel %vm1512, %v1506, %v1424
    %v1516 = vsel %vm1512, %v1507, %v1426
    %v1517 = vsel %vm1512, %v1508, %v1428
    %v1518 = vsel %vm1512, %v1509, %v1430
    %v1519 = vsel %vm1512, %v1510, %v1432
    %v1520 = vsel %vm1512, %v1511, %v1434
    %vm1521 = vcmask 1046528
    %v1522 = vsel %vm1521, %v1513, %v1444
    %v1523 = vsel %vm1521, %v1514, %v1446
    %v1524 = vsel %vm1521, %v1515, %v1448
    %v1525 = vsel %vm1521, %v1516, %v1450
    %v1526 = vsel %vm1521, %v1517, %v1452
    %v1527 = vsel %vm1521, %v1518, %v1454
    %v1528 = vsel %vm1521, %v1519, %v1456
    %v1529 = vsel %vm1521, %v1520, %v1458
    %1538 = vrot.lane.b32.xlu0 %v1522, 120
    %v1539 = vpop.permute.xlu0 %1538
    %1540 = vrot.lane.b32.xlu0 %v1523, 120
    %v1541 = vpop.permute.xlu0 %1540
    %1542 = vrot.lane.b32.xlu0 %v1524, 120
    %v1543 = vpop.permute.xlu0 %1542
    %1544 = vrot.lane.b32.xlu0 %v1525, 120
    %v1545 = vpop.permute.xlu0 %1544
    %1546 = vrot.lane.b32.xlu0 %v1526, 120
    %v1547 = vpop.permute.xlu0 %1546
    %1548 = vrot.lane.b32.xlu0 %v1527, 120
    %v1549 = vpop.permute.xlu0 %1548
    %1550 = vrot.lane.b32.xlu0 %v1528, 120
    %v1551 = vpop.permute.xlu0 %1550
    %1552 = vrot.lane.b32.xlu0 %v1529, 120
    %v1553 = vpop.permute.xlu0 %1552
    %v1562 = vadd.f32 %v516, %v1539
    %v1563 = vadd.f32 %v562, %v1541
    %v1564 = vadd.f32 %v710, %v1543
    %v1565 = vadd.f32 %v762, %v1545
    %v1566 = vadd.f32 %v916, %v1547
    %v1567 = vadd.f32 %v966, %v1549
    %v1568 = vadd.f32 %v1116, %v1551
    %v1569 = vadd.f32 %v1166, %v1553
    %v1570 = vmul.f32 %v1562, 0.35355338
    %v1571 = vmul.f32 %v1563, 0.35355338
    %v1572 = vmul.f32 %v1564, 0.35355338
    %v1573 = vmul.f32 %v1565, 0.35355338
    %v1574 = vmul.f32 %v1566, 0.35355338
    %v1575 = vmul.f32 %v1567, 0.35355338
    %v1576 = vmul.f32 %v1568, 0.35355338
    %v1577 = vmul.f32 %v1569, 0.35355338
    %v1578 = vadd.f32 %v1570, %v305
    %v1579 = vadd.f32 %v1571, %v305
    %v1580 = vadd.f32 %v1572, %v305
    %v1581 = vadd.f32 %v1573, %v305
    %v1582 = vadd.f32 %v1574, %v305
    %v1583 = vadd.f32 %v1575, %v305
    %v1584 = vadd.f32 %v1576, %v305
    %v1585 = vadd.f32 %v1577, %v305
    %v1586 = vsel %vm474, %v1578, -inf
    %1587 = vmax.xlane.f32.xlu0 %v1586
    %v1588 = vpop.xlane.xlu0 %1587
    %v1589 = vsel %vm474, %v1579, -inf
    %1590 = vmax.xlane.f32.xlu0 %v1589
    %v1591 = vpop.xlane.xlu0 %1590
    %v1592 = vsel %vm474, %v1580, -inf
    %1593 = vmax.xlane.f32.xlu0 %v1592
    %v1594 = vpop.xlane.xlu0 %1593
    %v1595 = vsel %vm474, %v1581, -inf
    %1596 = vmax.xlane.f32.xlu0 %v1595
    %v1597 = vpop.xlane.xlu0 %1596
    %v1598 = vsel %vm474, %v1582, -inf
    %1599 = vmax.xlane.f32.xlu0 %v1598
    %v1600 = vpop.xlane.xlu0 %1599
    %v1601 = vsel %vm474, %v1583, -inf
    %1602 = vmax.xlane.f32.xlu0 %v1601
    %v1603 = vpop.xlane.xlu0 %1602
    %v1604 = vsel %vm474, %v1584, -inf
    %1605 = vmax.xlane.f32.xlu0 %v1604
    %v1606 = vpop.xlane.xlu0 %1605
    %v1607 = vsel %vm474, %v1585, -inf
    %1608 = vmax.xlane.f32.xlu0 %v1607
    %v1609 = vpop.xlane.xlu0 %1608
    %v1610 = vsub.f32 %v1578, %v1588
    %v1611 = vsub.f32 %v1579, %v1591
    %v1612 = vsub.f32 %v1580, %v1594
    %v1613 = vsub.f32 %v1581, %v1597
    %v1614 = vsub.f32 %v1582, %v1600
    %v1615 = vsub.f32 %v1583, %v1603
    %v1616 = vsub.f32 %v1584, %v1606
    %v1617 = vsub.f32 %v1585, %v1609
    %v1618 = vmul.f32 %v1610, 1.442695
    %v1619 = vpow.pop %v1618
    %v1620 = vmul.f32 %v1611, 1.442695
    %v1621 = vpow.pop %v1620
    %v1622 = vmul.f32 %v1612, 1.442695
    %v1623 = vpow.pop %v1622
    %v1624 = vmul.f32 %v1613, 1.442695
    %v1625 = vpow.pop %v1624
    %v1626 = vmul.f32 %v1614, 1.442695
    %v1627 = vpow.pop %v1626
    %v1628 = vmul.f32 %v1615, 1.442695
    %v1629 = vpow.pop %v1628
    %v1630 = vmul.f32 %v1616, 1.442695
    %v1631 = vpow.pop %v1630
    %v1632 = vmul.f32 %v1617, 1.442695
    %v1633 = vpow.pop %v1632
    %v1634 = vsel %vm474, %v1619, 0.0
    %1635 = vadd.xlane.f32.xlu0 %v1634
    %v1636 = vpop.xlane.xlu0 %1635
    %v1637 = vsel %vm474, %v1621, 0.0
    %1638 = vadd.xlane.f32.xlu0 %v1637
    %v1639 = vpop.xlane.xlu0 %1638
    %v1640 = vsel %vm474, %v1623, 0.0
    %1641 = vadd.xlane.f32.xlu0 %v1640
    %v1642 = vpop.xlane.xlu0 %1641
    %v1643 = vsel %vm474, %v1625, 0.0
    %1644 = vadd.xlane.f32.xlu0 %v1643
    %v1645 = vpop.xlane.xlu0 %1644
    %v1646 = vsel %vm474, %v1627, 0.0
    %1647 = vadd.xlane.f32.xlu0 %v1646
    %v1648 = vpop.xlane.xlu0 %1647
    %v1649 = vsel %vm474, %v1629, 0.0
    %1650 = vadd.xlane.f32.xlu0 %v1649
    %v1651 = vpop.xlane.xlu0 %1650
    %v1652 = vsel %vm474, %v1631, 0.0
    %1653 = vadd.xlane.f32.xlu0 %v1652
    %v1654 = vpop.xlane.xlu0 %1653
    %v1655 = vsel %vm474, %v1633, 0.0
    %1656 = vadd.xlane.f32.xlu0 %v1655
    %v1657 = vpop.xlane.xlu0 %1656
    %v1658 = vrcp.pop %v1636
    %v1659 = vrcp.pop %v1639
    %v1660 = vrcp.pop %v1642
    %v1661 = vrcp.pop %v1645
    %v1662 = vrcp.pop %v1648
    %v1663 = vrcp.pop %v1651
    %v1664 = vrcp.pop %v1654
    %v1665 = vrcp.pop %v1657
    %v1666 = vmul.f32 %v1619, %v1658
    %v1667 = vmul.f32 %v1621, %v1659
    %v1668 = vmul.f32 %v1623, %v1660
    %v1669 = vmul.f32 %v1625, %v1661
    %v1670 = vmul.f32 %v1627, %v1662
    %v1671 = vmul.f32 %v1629, %v1663
    %v1672 = vmul.f32 %v1631, %v1664
    %v1673 = vmul.f32 %v1633, %v1665
    %v1674 = vpack.c.bf16 %v1666, %v1666
    %v1675 = vpack.c.bf16 %v1667, %v1667
    %v1676 = vpack.c.bf16 %v1668, %v1668
    %v1677 = vpack.c.bf16 %v1669, %v1669
    %v1678 = vpack.c.bf16 %v1670, %v1670
    %v1679 = vpack.c.bf16 %v1671, %v1671
    %v1680 = vpack.c.bf16 %v1672, %v1672
    %v1681 = vpack.c.bf16 %v1673, %v1673
    %v1682 = vpack.c.bf16 %v448, %v448
    %v1683 = vpack.c.bf16 %v451, %v451
    %v1684 = vpack.c.bf16 %v1274, %v1274
    %v1685 = vpack.c.bf16 %v1276, %v1276
    %v1686 = vpack.c.bf16 %v1280, %v1280
    %v1687 = vpack.c.bf16 %v1282, %v1282
    %v1688 = vpack.c.bf16 %v1286, %v1286
    %v1689 = vpack.c.bf16 %v1288, %v1288
    %v1691 = vsel %vm474, %v1674, 0
    %v1694 = vsel %vm1494, %v1682, 0
    %1696 = vmatprep.subr.bf16.mxu0 0
    %1697 = vmatpush1.bf16.msra.mxu0 %v1694
    %1698 = vmatprep.subr.bf16.mxu0 0
    %1699 = vmatpush1.bf16.msra.mxu0 0
    %1700 = vmatprep.subr.bf16.mxu0 0
    %1701 = vmatpush1.bf16.msra.mxu0 0
    %1702 = vmatprep.subr.bf16.mxu0 0
    %1703 = vmatpush1.bf16.msra.mxu0 0
    %1704 = vmatprep.subr.bf16.mxu0 0
    %1705 = vmatpush1.bf16.msra.mxu0 0
    %1706 = vmatprep.subr.bf16.mxu0 0
    %1707 = vmatpush1.bf16.msra.mxu0 0
    %1708 = vmatprep.subr.bf16.mxu0 0
    %1709 = vmatpush1.bf16.msra.mxu0 0
    %1710 = vmatprep.subr.bf16.mxu0 0
    %1711 = vmatpush1.bf16.msra.mxu0 0
    %1712 = vmatprep.subr.bf16.mxu0 0
    %1713 = vmatpush1.bf16.msra.mxu0 0
    %1714 = vmatprep.subr.bf16.mxu0 0
    %1715 = vmatpush1.bf16.msra.mxu0 0
    %1716 = vmatprep.subr.bf16.mxu0 0
    %1717 = vmatpush1.bf16.msra.mxu0 0
    %1718 = vmatprep.subr.bf16.mxu0 0
    %1719 = vmatpush1.bf16.msra.mxu0 0
    %1720 = vmatprep.subr.bf16.mxu0 0
    %1721 = vmatpush1.bf16.msra.mxu0 0
    %1722 = vmatprep.subr.bf16.mxu0 0
    %1723 = vmatpush1.bf16.msra.mxu0 0
    %1724 = vmatprep.subr.bf16.mxu0 0
    %1725 = vmatpush1.bf16.msra.mxu0 0
    %1726 = vmatprep.subr.bf16.mxu0 0
    %1727 = vmatpush1.bf16.msra.mxu0 0
    %1728 = vmatprep.mubr.bf16.mxu0 0
    %1729 = vmatmul.mubr.bf16.gmra.mrb[0].mxu0 %v1691
    %v1730 = vpop.f32.mrb[0].mxu0
    %v1731 = vadd.f32 0.0, %v1730
    %v1732 = vpop.f32.mrb[0].mxu0
    %v1733 = vpop.f32.mrb[0].mxu0
    %v1734 = vpop.f32.mrb[0].mxu0
    %1735 = vdwg.mxu0
    %v1737 = vsel %vm474, %v1675, 0
    %v1740 = vsel %vm1494, %v1683, 0
    %1742 = vmatprep.subr.bf16.mxu0 0
    %1743 = vmatpush1.bf16.msra.mxu0 %v1740
    %1744 = vmatprep.subr.bf16.mxu0 0
    %1745 = vmatpush1.bf16.msra.mxu0 0
    %1746 = vmatprep.subr.bf16.mxu0 0
    %1747 = vmatpush1.bf16.msra.mxu0 0
    %1748 = vmatprep.subr.bf16.mxu0 0
    %1749 = vmatpush1.bf16.msra.mxu0 0
    %1750 = vmatprep.subr.bf16.mxu0 0
    %1751 = vmatpush1.bf16.msra.mxu0 0
    %1752 = vmatprep.subr.bf16.mxu0 0
    %1753 = vmatpush1.bf16.msra.mxu0 0
    %1754 = vmatprep.subr.bf16.mxu0 0
    %1755 = vmatpush1.bf16.msra.mxu0 0
    %1756 = vmatprep.subr.bf16.mxu0 0
    %1757 = vmatpush1.bf16.msra.mxu0 0
    %1758 = vmatprep.subr.bf16.mxu0 0
    %1759 = vmatpush1.bf16.msra.mxu0 0
    %1760 = vmatprep.subr.bf16.mxu0 0
    %1761 = vmatpush1.bf16.msra.mxu0 0
    %1762 = vmatprep.subr.bf16.mxu0 0
    %1763 = vmatpush1.bf16.msra.mxu0 0
    %1764 = vmatprep.subr.bf16.mxu0 0
    %1765 = vmatpush1.bf16.msra.mxu0 0
    %1766 = vmatprep.subr.bf16.mxu0 0
    %1767 = vmatpush1.bf16.msra.mxu0 0
    %1768 = vmatprep.subr.bf16.mxu0 0
    %1769 = vmatpush1.bf16.msra.mxu0 0
    %1770 = vmatprep.subr.bf16.mxu0 0
    %1771 = vmatpush1.bf16.msra.mxu0 0
    %1772 = vmatprep.subr.bf16.mxu0 0
    %1773 = vmatpush1.bf16.msra.mxu0 0
    %1774 = vmatprep.mubr.bf16.mxu0 0
    %1775 = vmatmul.mubr.bf16.gmra.mrb[0].mxu0 %v1737
    %v1776 = vpop.f32.mrb[0].mxu0
    %v1777 = vadd.f32 0.0, %v1776
    %v1778 = vpop.f32.mrb[0].mxu0
    %v1779 = vpop.f32.mrb[0].mxu0
    %v1780 = vpop.f32.mrb[0].mxu0
    %1781 = vdwg.mxu0
    %v1783 = vsel %vm474, %v1676, 0
    %v1786 = vsel %vm1494, %v1684, 0
    %1788 = vmatprep.subr.bf16.mxu0 0
    %1789 = vmatpush1.bf16.msra.mxu0 %v1786
    %1790 = vmatprep.subr.bf16.mxu0 0
    %1791 = vmatpush1.bf16.msra.mxu0 0
    %1792 = vmatprep.subr.bf16.mxu0 0
    %1793 = vmatpush1.bf16.msra.mxu0 0
    %1794 = vmatprep.subr.bf16.mxu0 0
    %1795 = vmatpush1.bf16.msra.mxu0 0
    %1796 = vmatprep.subr.bf16.mxu0 0
    %1797 = vmatpush1.bf16.msra.mxu0 0
    %1798 = vmatprep.subr.bf16.mxu0 0
    %1799 = vmatpush1.bf16.msra.mxu0 0
    %1800 = vmatprep.subr.bf16.mxu0 0
    %1801 = vmatpush1.bf16.msra.mxu0 0
    %1802 = vmatprep.subr.bf16.mxu0 0
    %1803 = vmatpush1.bf16.msra.mxu0 0
    %1804 = vmatprep.subr.bf16.mxu0 0
    %1805 = vmatpush1.bf16.msra.mxu0 0
    %1806 = vmatprep.subr.bf16.mxu0 0
    %1807 = vmatpush1.bf16.msra.mxu0 0
    %1808 = vmatprep.subr.bf16.mxu0 0
    %1809 = vmatpush1.bf16.msra.mxu0 0
    %1810 = vmatprep.subr.bf16.mxu0 0
    %1811 = vmatpush1.bf16.msra.mxu0 0
    %1812 = vmatprep.subr.bf16.mxu0 0
    %1813 = vmatpush1.bf16.msra.mxu0 0
    %1814 = vmatprep.subr.bf16.mxu0 0
    %1815 = vmatpush1.bf16.msra.mxu0 0
    %1816 = vmatprep.subr.bf16.mxu0 0
    %1817 = vmatpush1.bf16.msra.mxu0 0
    %1818 = vmatprep.subr.bf16.mxu0 0
    %1819 = vmatpush1.bf16.msra.mxu0 0
    %1820 = vmatprep.mubr.bf16.mxu0 0
    %1821 = vmatmul.mubr.bf16.gmra.mrb[0].mxu0 %v1783
    %v1822 = vpop.f32.mrb[0].mxu0
    %v1823 = vadd.f32 0.0, %v1822
    %v1824 = vpop.f32.mrb[0].mxu0
    %v1825 = vpop.f32.mrb[0].mxu0
    %v1826 = vpop.f32.mrb[0].mxu0
    %1827 = vdwg.mxu0
    %v1829 = vsel %vm474, %v1677, 0
    %v1832 = vsel %vm1494, %v1685, 0
    %1834 = vmatprep.subr.bf16.mxu0 0
    %1835 = vmatpush1.bf16.msra.mxu0 %v1832
    %1836 = vmatprep.subr.bf16.mxu0 0
    %1837 = vmatpush1.bf16.msra.mxu0 0
    %1838 = vmatprep.subr.bf16.mxu0 0
    %1839 = vmatpush1.bf16.msra.mxu0 0
    %1840 = vmatprep.subr.bf16.mxu0 0
    %1841 = vmatpush1.bf16.msra.mxu0 0
    %1842 = vmatprep.subr.bf16.mxu0 0
    %1843 = vmatpush1.bf16.msra.mxu0 0
    %1844 = vmatprep.subr.bf16.mxu0 0
    %1845 = vmatpush1.bf16.msra.mxu0 0
    %1846 = vmatprep.subr.bf16.mxu0 0
    %1847 = vmatpush1.bf16.msra.mxu0 0
    %1848 = vmatprep.subr.bf16.mxu0 0
    %1849 = vmatpush1.bf16.msra.mxu0 0
    %1850 = vmatprep.subr.bf16.mxu0 0
    %1851 = vmatpush1.bf16.msra.mxu0 0
    %1852 = vmatprep.subr.bf16.mxu0 0
    %1853 = vmatpush1.bf16.msra.mxu0 0
    %1854 = vmatprep.subr.bf16.mxu0 0
    %1855 = vmatpush1.bf16.msra.mxu0 0
    %1856 = vmatprep.subr.bf16.mxu0 0
    %1857 = vmatpush1.bf16.msra.mxu0 0
    %1858 = vmatprep.subr.bf16.mxu0 0
    %1859 = vmatpush1.bf16.msra.mxu0 0
    %1860 = vmatprep.subr.bf16.mxu0 0
    %1861 = vmatpush1.bf16.msra.mxu0 0
    %1862 = vmatprep.subr.bf16.mxu0 0
    %1863 = vmatpush1.bf16.msra.mxu0 0
    %1864 = vmatprep.subr.bf16.mxu0 0
    %1865 = vmatpush1.bf16.msra.mxu0 0
    %1866 = vmatprep.mubr.bf16.mxu0 0
    %1867 = vmatmul.mubr.bf16.gmra.mrb[0].mxu0 %v1829
    %v1868 = vpop.f32.mrb[0].mxu0
    %v1869 = vadd.f32 0.0, %v1868
    %v1870 = vpop.f32.mrb[0].mxu0
    %v1871 = vpop.f32.mrb[0].mxu0
    %v1872 = vpop.f32.mrb[0].mxu0
    %1873 = vdwg.mxu0
    %v1875 = vsel %vm474, %v1678, 0
    %v1878 = vsel %vm1494, %v1686, 0
    %1880 = vmatprep.subr.bf16.mxu0 0
    %1881 = vmatpush1.bf16.msra.mxu0 %v1878
    %1882 = vmatprep.subr.bf16.mxu0 0
    %1883 = vmatpush1.bf16.msra.mxu0 0
    %1884 = vmatprep.subr.bf16.mxu0 0
    %1885 = vmatpush1.bf16.msra.mxu0 0
    %1886 = vmatprep.subr.bf16.mxu0 0
    %1887 = vmatpush1.bf16.msra.mxu0 0
    %1888 = vmatprep.subr.bf16.mxu0 0
    %1889 = vmatpush1.bf16.msra.mxu0 0
    %1890 = vmatprep.subr.bf16.mxu0 0
    %1891 = vmatpush1.bf16.msra.mxu0 0
    %1892 = vmatprep.subr.bf16.mxu0 0
    %1893 = vmatpush1.bf16.msra.mxu0 0
    %1894 = vmatprep.subr.bf16.mxu0 0
    %1895 = vmatpush1.bf16.msra.mxu0 0
    %1896 = vmatprep.subr.bf16.mxu0 0
    %1897 = vmatpush1.bf16.msra.mxu0 0
    %1898 = vmatprep.subr.bf16.mxu0 0
    %1899 = vmatpush1.bf16.msra.mxu0 0
    %1900 = vmatprep.subr.bf16.mxu0 0
    %1901 = vmatpush1.bf16.msra.mxu0 0
    %1902 = vmatprep.subr.bf16.mxu0 0
    %1903 = vmatpush1.bf16.msra.mxu0 0
    %1904 = vmatprep.subr.bf16.mxu0 0
    %1905 = vmatpush1.bf16.msra.mxu0 0
    %1906 = vmatprep.subr.bf16.mxu0 0
    %1907 = vmatpush1.bf16.msra.mxu0 0
    %1908 = vmatprep.subr.bf16.mxu0 0
    %1909 = vmatpush1.bf16.msra.mxu0 0
    %1910 = vmatprep.subr.bf16.mxu0 0
    %1911 = vmatpush1.bf16.msra.mxu0 0
    %1912 = vmatprep.mubr.bf16.mxu0 0
    %1913 = vmatmul.mubr.bf16.gmra.mrb[0].mxu0 %v1875
    %v1914 = vpop.f32.mrb[0].mxu0
    %v1915 = vadd.f32 0.0, %v1914
    %v1916 = vpop.f32.mrb[0].mxu0
    %v1917 = vpop.f32.mrb[0].mxu0
    %v1918 = vpop.f32.mrb[0].mxu0
    %1919 = vdwg.mxu0
    %v1921 = vsel %vm474, %v1679, 0
    %v1924 = vsel %vm1494, %v1687, 0
    %1926 = vmatprep.subr.bf16.mxu0 0
    %1927 = vmatpush1.bf16.msra.mxu0 %v1924
    %1928 = vmatprep.subr.bf16.mxu0 0
    %1929 = vmatpush1.bf16.msra.mxu0 0
    %1930 = vmatprep.subr.bf16.mxu0 0
    %1931 = vmatpush1.bf16.msra.mxu0 0
    %1932 = vmatprep.subr.bf16.mxu0 0
    %1933 = vmatpush1.bf16.msra.mxu0 0
    %1934 = vmatprep.subr.bf16.mxu0 0
    %1935 = vmatpush1.bf16.msra.mxu0 0
    %1936 = vmatprep.subr.bf16.mxu0 0
    %1937 = vmatpush1.bf16.msra.mxu0 0
    %1938 = vmatprep.subr.bf16.mxu0 0
    %1939 = vmatpush1.bf16.msra.mxu0 0
    %1940 = vmatprep.subr.bf16.mxu0 0
    %1941 = vmatpush1.bf16.msra.mxu0 0
    %1942 = vmatprep.subr.bf16.mxu0 0
    %1943 = vmatpush1.bf16.msra.mxu0 0
    %1944 = vmatprep.subr.bf16.mxu0 0
    %1945 = vmatpush1.bf16.msra.mxu0 0
    %1946 = vmatprep.subr.bf16.mxu0 0
    %1947 = vmatpush1.bf16.msra.mxu0 0
    %1948 = vmatprep.subr.bf16.mxu0 0
    %1949 = vmatpush1.bf16.msra.mxu0 0
    %1950 = vmatprep.subr.bf16.mxu0 0
    %1951 = vmatpush1.bf16.msra.mxu0 0
    %1952 = vmatprep.subr.bf16.mxu0 0
    %1953 = vmatpush1.bf16.msra.mxu0 0
    %1954 = vmatprep.subr.bf16.mxu0 0
    %1955 = vmatpush1.bf16.msra.mxu0 0
    %1956 = vmatprep.subr.bf16.mxu0 0
    %1957 = vmatpush1.bf16.msra.mxu0 0
    %1958 = vmatprep.mubr.bf16.mxu0 0
    %1959 = vmatmul.mubr.bf16.gmra.mrb[0].mxu0 %v1921
    %v1960 = vpop.f32.mrb[0].mxu0
    %v1961 = vadd.f32 0.0, %v1960
    %v1962 = vpop.f32.mrb[0].mxu0
    %v1963 = vpop.f32.mrb[0].mxu0
    %v1964 = vpop.f32.mrb[0].mxu0
    %1965 = vdwg.mxu0
    %v1967 = vsel %vm474, %v1680, 0
    %v1970 = vsel %vm1494, %v1688, 0
    %1972 = vmatprep.subr.bf16.mxu0 0
    %1973 = vmatpush1.bf16.msra.mxu0 %v1970
    %1974 = vmatprep.subr.bf16.mxu0 0
    %1975 = vmatpush1.bf16.msra.mxu0 0
    %1976 = vmatprep.subr.bf16.mxu0 0
    %1977 = vmatpush1.bf16.msra.mxu0 0
    %1978 = vmatprep.subr.bf16.mxu0 0
    %1979 = vmatpush1.bf16.msra.mxu0 0
    %1980 = vmatprep.subr.bf16.mxu0 0
    %1981 = vmatpush1.bf16.msra.mxu0 0
    %1982 = vmatprep.subr.bf16.mxu0 0
    %1983 = vmatpush1.bf16.msra.mxu0 0
    %1984 = vmatprep.subr.bf16.mxu0 0
    %1985 = vmatpush1.bf16.msra.mxu0 0
    %1986 = vmatprep.subr.bf16.mxu0 0
    %1987 = vmatpush1.bf16.msra.mxu0 0
    %1988 = vmatprep.subr.bf16.mxu0 0
    %1989 = vmatpush1.bf16.msra.mxu0 0
    %1990 = vmatprep.subr.bf16.mxu0 0
    %1991 = vmatpush1.bf16.msra.mxu0 0
    %1992 = vmatprep.subr.bf16.mxu0 0
    %1993 = vmatpush1.bf16.msra.mxu0 0
    %1994 = vmatprep.subr.bf16.mxu0 0
    %1995 = vmatpush1.bf16.msra.mxu0 0
    %1996 = vmatprep.subr.bf16.mxu0 0
    %1997 = vmatpush1.bf16.msra.mxu0 0
    %1998 = vmatprep.subr.bf16.mxu0 0
    %1999 = vmatpush1.bf16.msra.mxu0 0
    %2000 = vmatprep.subr.bf16.mxu0 0
    %2001 = vmatpush1.bf16.msra.mxu0 0
    %2002 = vmatprep.subr.bf16.mxu0 0
    %2003 = vmatpush1.bf16.msra.mxu0 0
    %2004 = vmatprep.mubr.bf16.mxu0 0
    %2005 = vmatmul.mubr.bf16.gmra.mrb[0].mxu0 %v1967
    %v2006 = vpop.f32.mrb[0].mxu0
    %v2007 = vadd.f32 0.0, %v2006
    %v2008 = vpop.f32.mrb[0].mxu0
    %v2009 = vpop.f32.mrb[0].mxu0
    %v2010 = vpop.f32.mrb[0].mxu0
    %2011 = vdwg.mxu0
    %v2013 = vsel %vm474, %v1681, 0
    %v2016 = vsel %vm1494, %v1689, 0
    %2018 = vmatprep.subr.bf16.mxu0 0
    %2019 = vmatpush1.bf16.msra.mxu0 %v2016
    %2020 = vmatprep.subr.bf16.mxu0 0
    %2021 = vmatpush1.bf16.msra.mxu0 0
    %2022 = vmatprep.subr.bf16.mxu0 0
    %2023 = vmatpush1.bf16.msra.mxu0 0
    %2024 = vmatprep.subr.bf16.mxu0 0
    %2025 = vmatpush1.bf16.msra.mxu0 0
    %2026 = vmatprep.subr.bf16.mxu0 0
    %2027 = vmatpush1.bf16.msra.mxu0 0
    %2028 = vmatprep.subr.bf16.mxu0 0
    %2029 = vmatpush1.bf16.msra.mxu0 0
    %2030 = vmatprep.subr.bf16.mxu0 0
    %2031 = vmatpush1.bf16.msra.mxu0 0
    %2032 = vmatprep.subr.bf16.mxu0 0
    %2033 = vmatpush1.bf16.msra.mxu0 0
    %2034 = vmatprep.subr.bf16.mxu0 0
    %2035 = vmatpush1.bf16.msra.mxu0 0
    %2036 = vmatprep.subr.bf16.mxu0 0
    %2037 = vmatpush1.bf16.msra.mxu0 0
    %2038 = vmatprep.subr.bf16.mxu0 0
    %2039 = vmatpush1.bf16.msra.mxu0 0
    %2040 = vmatprep.subr.bf16.mxu0 0
    %2041 = vmatpush1.bf16.msra.mxu0 0
    %2042 = vmatprep.subr.bf16.mxu0 0
    %2043 = vmatpush1.bf16.msra.mxu0 0
    %2044 = vmatprep.subr.bf16.mxu0 0
    %2045 = vmatpush1.bf16.msra.mxu0 0
    %2046 = vmatprep.subr.bf16.mxu0 0
    %2047 = vmatpush1.bf16.msra.mxu0 0
    %2048 = vmatprep.subr.bf16.mxu0 0
    %2049 = vmatpush1.bf16.msra.mxu0 0
    %2050 = vmatprep.mubr.bf16.mxu0 0
    %2051 = vmatmul.mubr.bf16.gmra.mrb[0].mxu0 %v2013
    %v2052 = vpop.f32.mrb[0].mxu0
    %v2053 = vadd.f32 0.0, %v2052
    %v2054 = vpop.f32.mrb[0].mxu0
    %v2055 = vpop.f32.mrb[0].mxu0
    %v2056 = vpop.f32.mrb[0].mxu0
    %2057 = vdwg.mxu0
    %2060 = vrot.lane.b32.xlu0 %v1823, 8
    %v2061 = vpop.permute.xlu0 %2060
    %2062 = vrot.lane.b32.xlu0 %v1869, 8
    %v2063 = vpop.permute.xlu0 %2062
    %2068 = vrot.lane.b32.xlu0 %v1915, 16
    %v2069 = vpop.permute.xlu0 %2068
    %2070 = vrot.lane.b32.xlu0 %v1961, 16
    %v2071 = vpop.permute.xlu0 %2070
    %2076 = vrot.lane.b32.xlu0 %v2007, 24
    %v2077 = vpop.permute.xlu0 %2076
    %2078 = vrot.lane.b32.xlu0 %v2053, 24
    %v2079 = vpop.permute.xlu0 %2078
    %v2082 = vsel %vm474, %v1731, %v2061
    %v2083 = vsel %vm474, %v1777, %v2063
    %vm2084 = vcmask 130048
    %v2085 = vsel %vm2084, %v2082, %v2069
    %v2086 = vsel %vm2084, %v2083, %v2071
    %vm2087 = vcmask 195584
    %v2088 = vsel %vm2087, %v2085, %v2077
    %v2089 = vsel %vm2087, %v2086, %v2079
    %v2090 = vld [vmem:[#allocation13] sm:$0xff]
    %v2091 = vld [vmem:[#allocation13 + $0x8] sm:$0xff]
    %v2092 = vld [vmem:[#allocation13 + $0x10] sm:$0xff]
    %v2093 = vld [vmem:[#allocation13 + $0x18] sm:$0xff]
    %v2094 = vpack.c.bf16 %v2089, %v2088
    %v2095 = vpack.c.bf16 %v2091, %v2090
    %v2096 = vpack.c.bf16 %v2093, %v2092
    %v2098 = vsel %vm315, %v2094, 0
    %2100 = vmatprep.subr.bf16.mxu0 0
    %2101 = vmatpush1.bf16.msra.mxu0 %v2095
    %2102 = vmatprep.subr.bf16.mxu0 0
    %2103 = vmatpush1.bf16.msra.mxu0 %v2096
    %2104 = vmatprep.subr.bf16.mxu0 0
    %2105 = vmatpush1.bf16.msra.mxu0 0
    %2106 = vmatprep.subr.bf16.mxu0 0
    %2107 = vmatpush1.bf16.msra.mxu0 0
    %2108 = vmatprep.subr.bf16.mxu0 0
    %2109 = vmatpush1.bf16.msra.mxu0 0
    %2110 = vmatprep.subr.bf16.mxu0 0
    %2111 = vmatpush1.bf16.msra.mxu0 0
    %2112 = vmatprep.subr.bf16.mxu0 0
    %2113 = vmatpush1.bf16.msra.mxu0 0
    %2114 = vmatprep.subr.bf16.mxu0 0
    %2115 = vmatpush1.bf16.msra.mxu0 0
    %2116 = vmatprep.subr.bf16.mxu0 0
    %2117 = vmatpush1.bf16.msra.mxu0 0
    %2118 = vmatprep.subr.bf16.mxu0 0
    %2119 = vmatpush1.bf16.msra.mxu0 0
    %2120 = vmatprep.subr.bf16.mxu0 0
    %2121 = vmatpush1.bf16.msra.mxu0 0
    %2122 = vmatprep.subr.bf16.mxu0 0
    %2123 = vmatpush1.bf16.msra.mxu0 0
    %2124 = vmatprep.subr.bf16.mxu0 0
    %2125 = vmatpush1.bf16.msra.mxu0 0
    %2126 = vmatprep.subr.bf16.mxu0 0
    %2127 = vmatpush1.bf16.msra.mxu0 0
    %2128 = vmatprep.subr.bf16.mxu0 0
    %2129 = vmatpush1.bf16.msra.mxu0 0
    %2130 = vmatprep.subr.bf16.mxu0 0
    %2131 = vmatpush1.bf16.msra.mxu0 0
    %2132 = vmatprep.mubr.bf16.mxu0 0
    %2133 = vmatmul.mubr.bf16.gmra.mrb[0].mxu0 %v2098
    %v2134 = vpop.f32.mrb[0].mxu0
    %v2135 = vadd.f32 0.0, %v2134
    %v2136 = vpop.f32.mrb[0].mxu0
    %v2137 = vpop.f32.mrb[0].mxu0
    %v2138 = vadd.f32 0.0, %v2137
    %v2139 = vpop.f32.mrb[0].mxu0
    %2140 = vdwg.mxu0
    %v2141 = vadd.f32 %v299, %v2135
    %v2142 = vadd.f32 %v300, %v2138
    %v2143 = vld [vmem:[#allocation23] sm:$0x1]
    %v2144 = vld [vmem:[#allocation25] sm:$0x1]
    %v2145 = vsel %vm315, %v2141, 0.0
    %2146 = vadd.xlane.f32.xlu0 %v2145
    %v2147 = vpop.xlane.xlu0 %2146
    %v2148 = vsel %vm315, %v2142, 0.0
    %2149 = vadd.xlane.f32.xlu0 %v2148
    %v2150 = vpop.xlane.xlu0 %2149
    %v2151 = vrcp.pop 32.0
    %v2152 = vmul.f32 %v2147, %v2151
    %v2153 = vmul.f32 %v2150, %v2151
    %v2154 = vsub.f32 %v2141, %v2152
    %v2155 = vsub.f32 %v2142, %v2153
    %v2156 = vmul.f32 %v2154, %v2154
    %v2157 = vmul.f32 %v2155, %v2155
    %v2158 = vsel %vm315, %v2156, 0.0
    %2159 = vadd.xlane.f32.xlu0 %v2158
    %v2160 = vpop.xlane.xlu0 %2159
    %v2161 = vsel %vm315, %v2157, 0.0
    %2162 = vadd.xlane.f32.xlu0 %v2161
    %v2163 = vpop.xlane.xlu0 %2162
    %v2164 = vmul.f32 %v2160, %v2151
    %v2165 = vmul.f32 %v2163, %v2151
    %v2166 = vadd.f32 %v2164, 1e-05
    %v2167 = vadd.f32 %v2165, 1e-05
    %v2168 = vrsqrt.pop %v2166
    %v2169 = vrsqrt.pop %v2167
    %v2170 = vmul.f32 %v2154, %v2168
    %v2171 = vmul.f32 %v2155, %v2169
    %v2173 = vlaneseq
    %v2174 = vshrl.u32 %v2173, 7
    %v2175 = vsub.s32 0, %v2174
    %v2176 = vrot.slane %v2143, %v2175
    %v2178 = vmul.f32 %v2170, %v2176
    %v2179 = vmul.f32 %v2171, %v2176
    %v2181 = vlaneseq
    %v2182 = vshrl.u32 %v2181, 7
    %v2183 = vsub.s32 0, %v2182
    %v2184 = vrot.slane %v2144, %v2183
    %v2186 = vadd.f32 %v2178, %v2184
    %v2187 = vadd.f32 %v2179, %v2184
    %v2188 = vld [vmem:[#allocation17] sm:$0xff]
    %v2189 = vld [vmem:[#allocation17 + $0x8] sm:$0xff]
    %v2190 = vld [vmem:[#allocation17 + $0x10] sm:$0xff]
    %v2191 = vld [vmem:[#allocation17 + $0x18] sm:$0xff]
    %v2192 = vpack.c.bf16 %v2187, %v2186
    %v2193 = vpack.c.bf16 %v2189, %v2188
    %v2194 = vpack.c.bf16 %v2191, %v2190
    %v2195 = vld [vmem:[#allocation19] sm:$0x1]
    %v2197 = vlaneseq
    %v2198 = vshrl.u32 %v2197, 7
    %v2199 = vsub.s32 0, %v2198
    %v2200 = vrot.slane %v2195, %v2199
    %v2203 = vsel %vm315, %v2192, 0
    %2205 = vmatprep.subr.bf16.mxu0 0
    %2206 = vmatpush1.bf16.msra.mxu0 %v2193
    %2207 = vmatprep.subr.bf16.mxu0 0
    %2208 = vmatpush1.bf16.msra.mxu0 %v2194
    %2209 = vmatprep.subr.bf16.mxu0 0
    %2210 = vmatpush1.bf16.msra.mxu0 0
    %2211 = vmatprep.subr.bf16.mxu0 0
    %2212 = vmatpush1.bf16.msra.mxu0 0
    %2213 = vmatprep.subr.bf16.mxu0 0
    %2214 = vmatpush1.bf16.msra.mxu0 0
    %2215 = vmatprep.subr.bf16.mxu0 0
    %2216 = vmatpush1.bf16.msra.mxu0 0
    %2217 = vmatprep.subr.bf16.mxu0 0
    %2218 = vmatpush1.bf16.msra.mxu0 0
    %2219 = vmatprep.subr.bf16.mxu0 0
    %2220 = vmatpush1.bf16.msra.mxu0 0
    %2221 = vmatprep.subr.bf16.mxu0 0
    %2222 = vmatpush1.bf16.msra.mxu0 0
    %2223 = vmatprep.subr.bf16.mxu0 0
    %2224 = vmatpush1.bf16.msra.mxu0 0
    %2225 = vmatprep.subr.bf16.mxu0 0
    %2226 = vmatpush1.bf16.msra.mxu0 0
    %2227 = vmatprep.subr.bf16.mxu0 0
    %2228 = vmatpush1.bf16.msra.mxu0 0
    %2229 = vmatprep.subr.bf16.mxu0 0
    %2230 = vmatpush1.bf16.msra.mxu0 0
    %2231 = vmatprep.subr.bf16.mxu0 0
    %2232 = vmatpush1.bf16.msra.mxu0 0
    %2233 = vmatprep.subr.bf16.mxu0 0
    %2234 = vmatpush1.bf16.msra.mxu0 0
    %2235 = vmatprep.subr.bf16.mxu0 0
    %2236 = vmatpush1.bf16.msra.mxu0 0
    %2237 = vmatprep.mubr.bf16.mxu0 0
    %2238 = vmatmul.mubr.bf16.gmra.mrb[0].mxu0 %v2203
    %v2239 = vpop.f32.mrb[0].mxu0
    %v2240 = vadd.f32 %v2200, %v2239
    %v2241 = vpop.f32.mrb[0].mxu0
    %v2242 = vpop.f32.mrb[0].mxu0
    %v2243 = vadd.f32 %v2200, %v2242
    %v2244 = vpop.f32.mrb[0].mxu0
    %2245 = vdwg.mxu0
    %v2246 = vmul.f32 %v2240, %v2240
    %v2247 = vmul.f32 %v2243, %v2243
    %v2248 = vmul.f32 %v2240, %v2246
    %v2249 = vmul.f32 %v2243, %v2247
    %v2250 = vmul.f32 %v2248, 0.044715
    %v2251 = vmul.f32 %v2249, 0.044715
    %v2252 = vadd.f32 %v2240, %v2250
    %v2253 = vadd.f32 %v2243, %v2251
    %v2254 = vmul.f32 %v2252, 0.7978846
    %v2255 = vmul.f32 %v2253, 0.7978846
    %v2256 = vtanh.pop %v2254
    %v2257 = vtanh.pop %v2255
    %v2258 = vadd.f32 %v2256, 1.0
    %v2259 = vadd.f32 %v2257, 1.0
    %v2260 = vmul.f32 %v2258, 0.5
    %v2261 = vmul.f32 %v2259, 0.5
    %v2262 = vmul.f32 %v2240, %v2260
    %v2263 = vmul.f32 %v2243, %v2261
    %v2264 = vld [vmem:[#allocation20] sm:$0xff]
    %v2265 = vld [vmem:[#allocation20 + $0x8] sm:$0xff]
    %v2266 = vld [vmem:[#allocation20 + $0x10] sm:$0xff]
    %v2267 = vld [vmem:[#allocation20 + $0x18] sm:$0xff]
    %v2268 = vld [vmem:[#allocation20 + $0x20] sm:$0xff]
    %v2269 = vld [vmem:[#allocation20 + $0x28] sm:$0xff]
    %v2270 = vld [vmem:[#allocation20 + $0x30] sm:$0xff]
    %v2271 = vld [vmem:[#allocation20 + $0x38] sm:$0xff]
    %v2272 = vpack.c.bf16 %v2263, %v2262
    %v2273 = vpack.c.bf16 %v2265, %v2264
    %v2274 = vpack.c.bf16 %v2267, %v2266
    %v2275 = vpack.c.bf16 %v2269, %v2268
    %v2276 = vpack.c.bf16 %v2271, %v2270
    %v2277 = vld [vmem:[#allocation22] sm:$0x1]
    %v2279 = vlaneseq
    %v2280 = vshrl.u32 %v2279, 7
    %v2281 = vsub.s32 0, %v2280
    %v2282 = vrot.slane %v2277, %v2281
    %vm2284 = vcmask 523264
    %v2286 = vsel %vm2284, %v2272, 0
    %2288 = vmatprep.subr.bf16.mxu0 0
    %2289 = vmatpush1.bf16.msra.mxu0 %v2273
    %2290 = vmatprep.subr.bf16.mxu0 0
    %2291 = vmatpush1.bf16.msra.mxu0 %v2274
    %2292 = vmatprep.subr.bf16.mxu0 0
    %2293 = vmatpush1.bf16.msra.mxu0 %v2275
    %2294 = vmatprep.subr.bf16.mxu0 0
    %2295 = vmatpush1.bf16.msra.mxu0 %v2276
    %2296 = vmatprep.subr.bf16.mxu0 0
    %2297 = vmatpush1.bf16.msra.mxu0 0
    %2298 = vmatprep.subr.bf16.mxu0 0
    %2299 = vmatpush1.bf16.msra.mxu0 0
    %2300 = vmatprep.subr.bf16.mxu0 0
    %2301 = vmatpush1.bf16.msra.mxu0 0
    %2302 = vmatprep.subr.bf16.mxu0 0
    %2303 = vmatpush1.bf16.msra.mxu0 0
    %2304 = vmatprep.subr.bf16.mxu0 0
    %2305 = vmatpush1.bf16.msra.mxu0 0
    %2306 = vmatprep.subr.bf16.mxu0 0
    %2307 = vmatpush1.bf16.msra.mxu0 0
    %2308 = vmatprep.subr.bf16.mxu0 0
    %2309 = vmatpush1.bf16.msra.mxu0 0
    %2310 = vmatprep.subr.bf16.mxu0 0
    %2311 = vmatpush1.bf16.msra.mxu0 0
    %2312 = vmatprep.subr.bf16.mxu0 0
    %2313 = vmatpush1.bf16.msra.mxu0 0
    %2314 = vmatprep.subr.bf16.mxu0 0
    %2315 = vmatpush1.bf16.msra.mxu0 0
    %2316 = vmatprep.subr.bf16.mxu0 0
    %2317 = vmatpush1.bf16.msra.mxu0 0
    %2318 = vmatprep.subr.bf16.mxu0 0
    %2319 = vmatpush1.bf16.msra.mxu0 0
    %2320 = vmatprep.mubr.bf16.mxu0 0
    %2321 = vmatmul.mubr.bf16.gmra.mrb[0].mxu0 %v2286
    %v2322 = vpop.f32.mrb[0].mxu0
    %v2323 = vadd.f32 %v2282, %v2322
    %v2324 = vpop.f32.mrb[0].mxu0
    %v2325 = vpop.f32.mrb[0].mxu0
    %v2326 = vadd.f32 %v2282, %v2325
    %v2327 = vpop.f32.mrb[0].mxu0
    %2328 = vdwg.mxu0
    %v2329 = vadd.f32 %v2186, %v2323
    %v2330 = vadd.f32 %v2187, %v2326
    %v2331 = vld [vmem:[#allocation26] sm:$0x1]
    %v2332 = vld [vmem:[#allocation28] sm:$0x1]
    %v2333 = vsel %vm315, %v2329, 0.0
    %2334 = vadd.xlane.f32.xlu0 %v2333
    %v2335 = vpop.xlane.xlu0 %2334
    %v2336 = vsel %vm315, %v2330, 0.0
    %2337 = vadd.xlane.f32.xlu0 %v2336
    %v2338 = vpop.xlane.xlu0 %2337
    %v2339 = vmul.f32 %v2335, %v2151
    %v2340 = vmul.f32 %v2338, %v2151
    %v2341 = vsub.f32 %v2329, %v2339
    %v2342 = vsub.f32 %v2330, %v2340
    %v2343 = vmul.f32 %v2341, %v2341
    %v2344 = vmul.f32 %v2342, %v2342
    %v2345 = vsel %vm315, %v2343, 0.0
    %2346 = vadd.xlane.f32.xlu0 %v2345
    %v2347 = vpop.xlane.xlu0 %2346
    %v2348 = vsel %vm315, %v2344, 0.0
    %2349 = vadd.xlane.f32.xlu0 %v2348
    %v2350 = vpop.xlane.xlu0 %2349
    %v2351 = vmul.f32 %v2347, %v2151
    %v2352 = vmul.f32 %v2350, %v2151
    %v2353 = vadd.f32 %v2351, 1e-05
    %v2354 = vadd.f32 %v2352, 1e-05
    %v2355 = vrsqrt.pop %v2353
    %v2356 = vrsqrt.pop %v2354
    %v2357 = vmul.f32 %v2341, %v2355
    %v2358 = vmul.f32 %v2342, %v2356
    %v2360 = vlaneseq
    %v2361 = vshrl.u32 %v2360, 7
    %v2362 = vsub.s32 0, %v2361
    %v2363 = vrot.slane %v2331, %v2362
    %v2365 = vmul.f32 %v2357, %v2363
    %v2366 = vmul.f32 %v2358, %v2363
    %v2368 = vlaneseq
    %v2369 = vshrl.u32 %v2368, 7
    %v2370 = vsub.s32 0, %v2369
    %v2371 = vrot.slane %v2332, %v2370
    %v2373 = vadd.f32 %v2365, %v2371
    %v2374 = vadd.f32 %v2366, %v2371
    %v2375 = vld [vmem:[#allocation29] sm:$0x1]
    %v2376 = vld [vmem:[#allocation31] sm:$0x1]
    %v2377 = vsel %vm315, %v2373, 0.0
    %2378 = vadd.xlane.f32.xlu0 %v2377
    %v2379 = vpop.xlane.xlu0 %2378
    %v2380 = vsel %vm315, %v2374, 0.0
    %2381 = vadd.xlane.f32.xlu0 %v2380
    %v2382 = vpop.xlane.xlu0 %2381
    %v2383 = vmul.f32 %v2379, %v2151
    %v2384 = vmul.f32 %v2382, %v2151
    %v2385 = vsub.f32 %v2373, %v2383
    %v2386 = vsub.f32 %v2374, %v2384
    %v2387 = vmul.f32 %v2385, %v2385
    %v2388 = vmul.f32 %v2386, %v2386
    %v2389 = vsel %vm315, %v2387, 0.0
    %2390 = vadd.xlane.f32.xlu0 %v2389
    %v2391 = vpop.xlane.xlu0 %2390
    %v2392 = vsel %vm315, %v2388, 0.0
    %2393 = vadd.xlane.f32.xlu0 %v2392
    %v2394 = vpop.xlane.xlu0 %2393
    %v2395 = vmul.f32 %v2391, %v2151
    %v2396 = vmul.f32 %v2394, %v2151
    %v2397 = vadd.f32 %v2395, 1e-05
    %v2398 = vadd.f32 %v2396, 1e-05
    %v2399 = vrsqrt.pop %v2397
    %v2400 = vrsqrt.pop %v2398
    %v2401 = vmul.f32 %v2385, %v2399
    %v2402 = vmul.f32 %v2386, %v2400
    %v2404 = vlaneseq
    %v2405 = vshrl.u32 %v2404, 7
    %v2406 = vsub.s32 0, %v2405
    %v2407 = vrot.slane %v2375, %v2406
    %v2409 = vmul.f32 %v2401, %v2407
    %v2410 = vmul.f32 %v2402, %v2407
    %v2412 = vlaneseq
    %v2413 = vshrl.u32 %v2412, 7
    %v2414 = vsub.s32 0, %v2413
    %v2415 = vrot.slane %v2376, %v2414
    %v2417 = vadd.f32 %v2409, %v2415
    %v2418 = vadd.f32 %v2410, %v2415
    %2419 = vst.msk [vmem:[#allocation32] sm:$0xff] %vm315, %v2417
    %2420 = vst.msk [vmem:[#allocation32 + $0x8] sm:$0xff] %vm315, %v2418
    // Predicated region
    $region154: #{tpu_custom_call.1} parent=1 // pred_check
      _
    $region155: #{tpu_custom_call.1} parent=1 // pred_check_branch
      %2422 = sbr.rel (0) target = $region157
    $region156: #{tpu_custom_call.1} parent=1 // pred_region
      %s2424 = ssub.s32 256, 256
      %2425 = vsyncadd [#allocation4], %s2424
      %s2426 = sshll.u32 [#allocation32], 4
      %s2427 = int_to_ptr.vmem [resolvable:$true] %s2426
      %2432 = dma.vmem_to_hbm [thread:$0]  %s2427, 256, %s19, [#allocation4], 128, 128, 8
    $region157: #{tpu_custom_call.1} parent=1 // pred_fallthru
      _
    // Predicated region
    $region158: #{tpu_custom_call.1} parent=1 // pred_check
      _
    $region159: #{tpu_custom_call.1} parent=1 // pred_check_branch
      %2434 = sbr.rel (0) target = $region161
    $region160: #{tpu_custom_call.1} parent=1 // pred_region
      %2435 = dma.done [#allocation4], 256
    $region161: #{tpu_custom_call.1} parent=1 // pred_fallthru
      _
    %2436 = vsyncpa [#allocation3], 1
    %2437 = vsyncpa [#allocation6], 1
    %2438 = vsyncpa [#allocation9], 1
    %2439 = vsyncpa [#allocation12], 1
    %2440 = vsyncpa [#allocation15], 1
    %2441 = vsyncpa [#allocation18], 1
    %2442 = vsyncpa [#allocation21], 1
    %2443 = vsyncpa [#allocation24], 1
    %2444 = vsyncpa [#allocation27], 1
    %2445 = vsyncpa [#allocation30], 1
    %2446 = vsyncpa [#allocation4], 1

</llo_original>
